<compile_context>
chip_gen: v5e
topology: v5e:2x2
jax: 0.10.0
libtpu: 0.0.40
codegen_flags: <defaults>
</compile_context>

<pallas_src>
import jax
import jax.numpy as jnp
from jax import lax
from jax.experimental import pallas as pl
from jax.experimental.pallas import tpu as pltpu


# ----------------------------- Pallas kernel --------------------------------

def residual_xt_kernel(x_ref, wcat_ref, b1_ref, w2_ref, b2_ref, w3_ref, bo_ref,
                       o_ref):
    """B_TILE images per grid step; activations as a (B_TILE*H, W*C) slab."""
    B, H, WCin = x_ref.shape
    M = B * H
    WCout = o_ref.shape[2]                       # W * out_channels
    PWpad = wcat_ref.shape[1] - WCout            # lane-aligned (W+2)*width

    x = x_ref[...].reshape(M, WCin)              # bf16, leading-dim merge (free)

    # fused 1x1 conv1 + projection shortcut: single MXU matmul, BN folded.
    h0 = jnp.dot(x, wcat_ref[...], preferred_element_type=jnp.float32)
    sc = h0[:, :WCout]                           # shortcut (M, W*Cout); bias in bo
    h1p = jnp.maximum(h0[:, WCout:] + b1_ref[...], 0.0)  # (M, PWpad), zero side pads

    # grouped 3x3 conv: kx taps + group block-diagonal baked into a banded
    # weight; ky shifts via sublane roll + per-image border mask (row % H so
    # the roll does not bleed across stacked images). One fused matmul.
    rows = lax.broadcasted_iota(jnp.int32, (M, PWpad), 0)
    row_in_img = rows % H
    p0 = jnp.where(row_in_img == 0, 0.0,
                   pltpu.roll(h1p, shift=1, axis=0))          # row h-1
    p2 = jnp.where(row_in_img == H - 1, 0.0,
                   pltpu.roll(h1p, shift=M - 1, axis=0))       # row h+1

    pcat = jnp.concatenate([p0, h1p, p2], axis=1).astype(jnp.bfloat16)  # (M, 3*PWpad)
    acc = jnp.dot(pcat, w2_ref[...], preferred_element_type=jnp.float32)
    h2 = jnp.maximum(acc + b2_ref[...], 0.0)     # (M, W*width)

    # 1x1 conv3 + residual add + relu (bo = bn3 bias + shortcut-bn bias, tiled)
    h3 = jnp.dot(h2.astype(jnp.bfloat16), w3_ref[...],
                 preferred_element_type=jnp.float32)
    out = jnp.maximum(h3 + sc + bo_ref[...], 0.0)
    o_ref[...] = out.reshape(B, H, WCout).astype(o_ref.dtype)


# ----------------------------- wrapper ---------------------------------------

def residual_xt_block(x_nhwc, kparams, b_tile=32):
    wcat, b1p, w2_fused, b2t, w3_big, bo = kparams
    N, H, W, Cin = x_nhwc.shape
    WCin = W * Cin
    WCout = w3_big.shape[1]
    Cout = WCout // W

    # bf16 activations host-side (half the HBM->VMEM DMA); lane-dense (H, W*C).
    x2 = x_nhwc.astype(jnp.bfloat16).reshape(N, H, WCin)

    bt = min(b_tile, N)
    Np = ((N + bt - 1) // bt) * bt               # pad batch to a multiple of bt
    if Np != N:
        x2 = jnp.pad(x2, ((0, Np - N), (0, 0), (0, 0)))

    zero2 = lambda n: (0, 0)
    out = pl.pallas_call(
        residual_xt_kernel,
        out_shape=jax.ShapeDtypeStruct((Np, H, WCout), jnp.float32),
        grid_spec=pltpu.PrefetchScalarGridSpec(
            num_scalar_prefetch=0,
            grid=(Np // bt,),
            in_specs=[
                pl.BlockSpec((bt, H, WCin), lambda n: (n, 0, 0)),
                pl.BlockSpec(wcat.shape, zero2),
                pl.BlockSpec(b1p.shape, zero2),
                pl.BlockSpec(w2_fused.shape, zero2),
                pl.BlockSpec(b2t.shape, zero2),
                pl.BlockSpec(w3_big.shape, zero2),
                pl.BlockSpec(bo.shape, zero2),
            ],
            out_specs=pl.BlockSpec((bt, H, WCout), lambda n: (n, 0, 0)),
        ),
        compiler_params=pltpu.CompilerParams(
            dimension_semantics=("parallel",)),
    )(x2, wcat, b1p, w2_fused, b2t, w3_big, bo)
    return out[:N].reshape(N, H, W, Cout)


# ---------------- parameter construction (deterministic, in-script) ----------

def fold_bn(gamma, beta, mean, var, eps=1e-5):
    scale = gamma / jnp.sqrt(var + eps)
    bias = beta - mean * scale
    return scale.reshape(1, -1), bias.reshape(1, -1)


def make_bn_params(key, c):
    k1, k2, k3, k4 = jax.random.split(key, 4)
    gamma = 1.0 + 0.1 * jax.random.normal(k1, (c,), jnp.float32)
    beta = 0.1 * jax.random.normal(k2, (c,), jnp.float32)
    mean = 0.1 * jax.random.normal(k3, (c,), jnp.float32)
    var = jax.random.uniform(k4, (c,), jnp.float32, 0.5, 1.5)
    return fold_bn(gamma, beta, mean, var)


def expand_grouped_weight(w_g, cardinality):
    # torch layout (width_out, width//card, 3, 3) -> dense (3,3,width,width)
    # with [kh, kw, cin, cout] and group block-diagonal structure.
    width = w_g.shape[0]
    gsz = width // cardinality
    full = jnp.zeros((3, 3, width, width), jnp.float32)
    for g in range(cardinality):
        blk = w_g[g * gsz:(g + 1) * gsz]            # (gsz_out, gsz_in, 3, 3)
        blk = jnp.transpose(blk, (2, 3, 1, 0))      # (3, 3, gsz_in, gsz_out)
        full = full.at[:, :, g * gsz:(g + 1) * gsz,
                       g * gsz:(g + 1) * gsz].set(blk)
    return full


def build_kernel_params(torch_params, cardinality, W):
    (w1_t, bn1, w2_t, bn2, w3_t, bn3, ws_t, bns) = torch_params
    width, Cin = w1_t.shape[0], w1_t.shape[1]
    Cout = w3_t.shape[0]
    s1, b1 = bn1
    s2, b2 = bn2
    s3, b3 = bn3
    ss, bs = bns

    # BN scales folded into conv weights (host-side, then bf16 for the MXU).
    w1f = jnp.transpose(w1_t[:, :, 0, 0]) * s1          # (Cin, width)
    wsf = jnp.transpose(ws_t[:, :, 0, 0]) * ss          # (Cin, Cout)
    w3f = jnp.transpose(w3_t[:, :, 0, 0]) * s3          # (width, Cout)
    w2f = expand_grouped_weight(w2_t, cardinality) * s2.reshape(1, 1, 1, width)

    PW = (W + 2) * width                 # side-padded conv1 output width
    PWpad = ((PW + 127) // 128) * 128    # lane-aligned
    WCin, WW, WCout = W * Cin, W * width, W * Cout

    # shortcut: block-diagonal (W*Cin, W*Cout); conv1: block-diagonal shifted by
    # one pixel so its output comes out zero-side-padded for the 3x3 conv.
    ws_big = jnp.zeros((WCin, WCout), jnp.float32)
    w1_big = jnp.zeros((WCin, PWpad), jnp.float32)
    for w in range(W):
        ws_big = ws_big.at[w * Cin:(w + 1) * Cin, w * Cout:(w + 1) * Cout].set(wsf)
        w1_big = w1_big.at[w * Cin:(w + 1) * Cin,
                           (w + 1) * width:(w + 2) * width].set(w1f)
    wcat = jnp.concatenate([ws_big, w1_big], axis=1).astype(jnp.bfloat16)

    b1p = jnp.zeros((PWpad,), jnp.float32)
    b1p = b1p.at[width:width + W * width].set(jnp.tile(b1.reshape(-1), W))
    b1p = b1p.reshape(1, PWpad)

    # grouped 3x3: banded (PWpad, W*width) weight per kernel row ky, then
    # stacked along rows to match concat([p0, h1p, p2], lanes) -> K = 3*PWpad.
    w2_big = jnp.zeros((3, PWpad, WW), jnp.float32)
    for ky in range(3):
        for kx in range(3):
            for wo in range(W):
                r0 = (wo + kx) * width
                c0 = wo * width
                w2_big = w2_big.at[ky, r0:r0 + width, c0:c0 + width].set(w2f[ky, kx])
    w2_fused = w2_big.reshape(3 * PWpad, WW).astype(jnp.bfloat16)

    b2t = jnp.tile(b2.reshape(-1), W).reshape(1, WW)

    w3_big = jnp.zeros((WW, WCout), jnp.float32)
    for w in range(W):
        w3_big = w3_big.at[w * width:(w + 1) * width,
                           w * Cout:(w + 1) * Cout].set(w3f)
    w3_big = w3_big.astype(jnp.bfloat16)

    bo = jnp.tile((b3 + bs).reshape(-1), W).reshape(1, WCout)

    return (wcat, b1p, w2_fused, b2t, w3_big, bo)


# ----------------------------- reference -------------------------------------

def ref_forward(x, torch_params, cardinality):
    (w1_t, bn1, w2_t, bn2, w3_t, bn3, ws_t, bns) = torch_params

    def bn(v, sb):
        s, b = sb
        return v * s.reshape(1, 1, 1, -1) + b.reshape(1, 1, 1, -1)

    h = jnp.einsum('nhwc,cd->nhwd', x, jnp.transpose(w1_t[:, :, 0, 0]))
    h = jax.nn.relu(bn(h, bn1))
    w_hwio = jnp.transpose(w2_t, (2, 3, 1, 0))
    h = lax.conv_general_dilated(
        h, w_hwio, window_strides=(1, 1), padding='SAME',
        dimension_numbers=('NHWC', 'HWIO', 'NHWC'),
        feature_group_count=cardinality)
    h = jax.nn.relu(bn(h, bn2))
    h = jnp.einsum('nhwc,cd->nhwd', h, jnp.transpose(w3_t[:, :, 0, 0]))
    h = bn(h, bn3)
    sc = jnp.einsum('nhwc,cd->nhwd', x, jnp.transpose(ws_t[:, :, 0, 0]))
    sc = bn(sc, bns)
    return jax.nn.relu(h + sc)


if __name__ == "__main__":
    # small shapes consistent with the module (scaled down from 64/256/16/64);
    # N=64 with B_TILE=32 gives an even 2-step grid and 256-row MXU matmuls.
    N, H, W = 64, 8, 8
    in_channels, out_channels = 16, 32
    cardinality, width = 4, 16
    B_TILE = 32

    key = jax.random.PRNGKey(0)
    keys = jax.random.split(key, 10)

    x = jax.random.normal(keys[0], (N, H, W, in_channels), jnp.float32)

    # torch-layout conv weights (no bias)
    w1_t = 0.1 * jax.random.normal(keys[1], (width, in_channels, 1, 1), jnp.float32)
    w2_t = 0.1 * jax.random.normal(keys[2], (width, width // cardinality, 3, 3), jnp.float32)
    w3_t = 0.1 * jax.random.normal(keys[3], (out_channels, width, 1, 1), jnp.float32)
    ws_t = 0.1 * jax.random.normal(keys[4], (out_channels, in_channels, 1, 1), jnp.float32)

    bn1 = make_bn_params(keys[5], width)
    bn2 = make_bn_params(keys[6], width)
    bn3 = make_bn_params(keys[7], out_channels)
    bns = make_bn_params(keys[8], out_channels)

    torch_params = (w1_t, bn1, w2_t, bn2, w3_t, bn3, ws_t, bns)
    kparams = build_kernel_params(torch_params, cardinality, W)

    out = residual_xt_block(x, kparams, b_tile=B_TILE)
    out = jax.block_until_ready(out)

    ref = ref_forward(x, torch_params, cardinality)
    ref = jax.block_until_ready(ref)

    assert out.shape == (N, H, W, out_channels)
    max_err = float(jnp.max(jnp.abs(out - ref)))
    # bf16 MXU inputs (and bf16 activation I/O) -> tolerance loosened vs f32 ref
    assert jnp.allclose(out, ref, atol=3e-2, rtol=3e-2), f"max err {max_err}"
    print("KERNEL_OK")
</pallas_src>

<mosaic_0001>
module attributes {stable_mosaic.version = 11 : i64} {
  func.func @residual_xt_kernel(%arg0: i32, %arg1: memref<32x8x128xbf16, #tpu.memory_space<vmem>>, %arg2: memref<128x512xbf16, #tpu.memory_space<vmem>>, %arg3: memref<1x256xf32, #tpu.memory_space<vmem>>, %arg4: memref<768x128xbf16, #tpu.memory_space<vmem>>, %arg5: memref<1x128xf32, #tpu.memory_space<vmem>>, %arg6: memref<128x256xbf16, #tpu.memory_space<vmem>>, %arg7: memref<1x256xf32, #tpu.memory_space<vmem>>, %arg8: memref<32x8x256xf32, #tpu.memory_space<vmem>>) attributes {dimension_semantics = [#tpu.dimension_semantics<parallel>], iteration_bounds = array<i64: 2>, scalar_prefetch = 0 : i64, scratch_operands = 0 : i64, tpu.core_type = #tpu.core_type<tc>, window_params = [{transform_indices = @transform_0, window_bounds = array<i64: 32, 8, 128>}, {pipeline_mode = #tpu.pipeline_mode<synchronous>, transform_indices = @transform_1, window_bounds = array<i64: 128, 512>}, {pipeline_mode = #tpu.pipeline_mode<synchronous>, transform_indices = @transform_2, window_bounds = array<i64: 1, 256>}, {pipeline_mode = #tpu.pipeline_mode<synchronous>, transform_indices = @transform_3, window_bounds = array<i64: 768, 128>}, {pipeline_mode = #tpu.pipeline_mode<synchronous>, transform_indices = @transform_4, window_bounds = array<i64: 1, 128>}, {pipeline_mode = #tpu.pipeline_mode<synchronous>, transform_indices = @transform_5, window_bounds = array<i64: 128, 256>}, {pipeline_mode = #tpu.pipeline_mode<synchronous>, transform_indices = @transform_6, window_bounds = array<i64: 1, 256>}, {transform_indices = @transform_7, window_bounds = array<i64: 32, 8, 256>}]} {
    %c0 = arith.constant 0 : index
    %c0_0 = arith.constant 0 : index
    %c0_1 = arith.constant 0 : index
    %0 = vector.load %arg1[%c0, %c0_0, %c0_1] : memref<32x8x128xbf16, #tpu.memory_space<vmem>>, vector<32x8x128xbf16>
    %1 = vector.shape_cast %0 : vector<32x8x128xbf16> to vector<256x128xbf16>
    %c0_2 = arith.constant 0 : index
    %c0_3 = arith.constant 0 : index
    %2 = vector.load %arg2[%c0_2, %c0_3] : memref<128x512xbf16, #tpu.memory_space<vmem>>, vector<128x512xbf16>
    %cst = arith.constant dense<0.000000e+00> : vector<256x512xf32>
    %3 = tpu.matmul %1, %2, %cst {dimension_numbers = #tpu.dot_dimension_numbers<[1], [0], [0], [1], [0, 0, 1, 1], [], []>} : vector<256x128xbf16>, vector<128x512xbf16>, vector<256x512xf32> -> vector<256x512xf32>
    %4 = vector.extract_strided_slice %3 {offsets = [0, 0], sizes = [256, 256], strides = [1, 1]} : vector<256x512xf32> to vector<256x256xf32>
    %5 = vector.extract_strided_slice %3 {offsets = [0, 256], sizes = [256, 256], strides = [1, 1]} : vector<256x512xf32> to vector<256x256xf32>
    %c0_4 = arith.constant 0 : index
    %c0_5 = arith.constant 0 : index
    %6 = vector.load %arg3[%c0_4, %c0_5] : memref<1x256xf32, #tpu.memory_space<vmem>>, vector<1x256xf32>
    %7 = vector.broadcast %6 : vector<1x256xf32> to vector<256x256xf32>
    %8 = arith.addf %5, %7 : vector<256x256xf32>
    %cst_6 = arith.constant 0.000000e+00 : f32
    %9 = vector.broadcast %cst_6 : f32 to vector<256x256xf32>
    %10 = arith.maximumf %8, %9 : vector<256x256xf32>
    %11 = tpu.iota {dimensions = array<i32: 0>} : vector<256x256xi32>
    %c8_i32 = arith.constant 8 : i32
    %c0_i32 = arith.constant 0 : i32
    %12 = arith.cmpi eq, %c8_i32, %c0_i32 : i32
    %c1_i32 = arith.constant 1 : i32
    %13 = arith.select %12, %c1_i32, %c8_i32 : i32
    %14 = vector.broadcast %13 : i32 to vector<256x256xi32>
    %15 = arith.remsi %11, %14 : vector<256x256xi32>
    %c0_i32_7 = arith.constant 0 : i32
    %16 = vector.broadcast %c0_i32_7 : i32 to vector<256x256xi32>
    %17 = arith.cmpi ne, %15, %16 : vector<256x256xi32>
    %c0_i32_8 = arith.constant 0 : i32
    %18 = vector.broadcast %c0_i32_8 : i32 to vector<256x256xi32>
    %19 = arith.cmpi slt, %15, %18 : vector<256x256xi32>
    %c0_i32_9 = arith.constant 0 : i32
    %20 = arith.cmpi slt, %13, %c0_i32_9 : i32
    %21 = vector.broadcast %20 : i1 to vector<256x256xi1>
    %22 = vector.broadcast %21 : vector<256x256xi1> to vector<256x256xi1>
    %23 = arith.xori %19, %22 : vector<256x256xi1>
    %24 = arith.andi %23, %17 : vector<256x256xi1>
    %25 = vector.broadcast %13 : i32 to vector<256x256xi32>
    %26 = arith.addi %15, %25 : vector<256x256xi32>
    %27 = arith.select %24, %26, %15 : vector<256x256xi1>, vector<256x256xi32>
    %c0_i32_10 = arith.constant 0 : i32
    %28 = vector.broadcast %c0_i32_10 : i32 to vector<256x256xi32>
    %29 = arith.cmpi eq, %27, %28 : vector<256x256xi32>
    %c1_i32_11 = arith.constant 1 : i32
    %30 = tpu.dynamic_rotate %10 by %c1_i32_11 dim 0 : vector<256x256xf32>, i32 -> vector<256x256xf32>
    %cst_12 = arith.constant 0.000000e+00 : f32
    %31 = vector.broadcast %cst_12 : f32 to vector<256x256xf32>
    %32 = arith.select %29, %31, %30 : vector<256x256xi1>, vector<256x256xf32>
    %c7_i32 = arith.constant 7 : i32
    %33 = vector.broadcast %c7_i32 : i32 to vector<256x256xi32>
    %34 = arith.cmpi eq, %27, %33 : vector<256x256xi32>
    %c255_i32 = arith.constant 255 : i32
    %35 = tpu.dynamic_rotate %10 by %c255_i32 dim 0 : vector<256x256xf32>, i32 -> vector<256x256xf32>
    %cst_13 = arith.constant 0.000000e+00 : f32
    %36 = vector.broadcast %cst_13 : f32 to vector<256x256xf32>
    %37 = arith.select %34, %36, %35 : vector<256x256xi1>, vector<256x256xf32>
    %38 = tpu.concatenate %32, %10, %37 in 1 : vector<256x256xf32>, vector<256x256xf32>, vector<256x256xf32> -> vector<256x768xf32>
    %39 = arith.truncf %38 : vector<256x768xf32> to vector<256x768xbf16>
    %c0_14 = arith.constant 0 : index
    %c0_15 = arith.constant 0 : index
    %40 = vector.load %arg4[%c0_14, %c0_15] : memref<768x128xbf16, #tpu.memory_space<vmem>>, vector<768x128xbf16>
    %cst_16 = arith.constant dense<0.000000e+00> : vector<256x128xf32>
    %41 = tpu.matmul %39, %40, %cst_16 {dimension_numbers = #tpu.dot_dimension_numbers<[1], [0], [0], [1], [0, 0, 1, 1], [], []>} : vector<256x768xbf16>, vector<768x128xbf16>, vector<256x128xf32> -> vector<256x128xf32>
    %c0_17 = arith.constant 0 : index
    %c0_18 = arith.constant 0 : index
    %42 = vector.load %arg5[%c0_17, %c0_18] : memref<1x128xf32, #tpu.memory_space<vmem>>, vector<1x128xf32>
    %43 = vector.broadcast %42 : vector<1x128xf32> to vector<256x128xf32>
    %44 = arith.addf %41, %43 : vector<256x128xf32>
    %cst_19 = arith.constant 0.000000e+00 : f32
    %45 = vector.broadcast %cst_19 : f32 to vector<256x128xf32>
    %46 = arith.maximumf %44, %45 : vector<256x128xf32>
    %47 = arith.truncf %46 : vector<256x128xf32> to vector<256x128xbf16>
    %c0_20 = arith.constant 0 : index
    %c0_21 = arith.constant 0 : index
    %48 = vector.load %arg6[%c0_20, %c0_21] : memref<128x256xbf16, #tpu.memory_space<vmem>>, vector<128x256xbf16>
    %cst_22 = arith.constant dense<0.000000e+00> : vector<256x256xf32>
    %49 = tpu.matmul %47, %48, %cst_22 {dimension_numbers = #tpu.dot_dimension_numbers<[1], [0], [0], [1], [0, 0, 1, 1], [], []>} : vector<256x128xbf16>, vector<128x256xbf16>, vector<256x256xf32> -> vector<256x256xf32>
    %50 = arith.addf %49, %4 : vector<256x256xf32>
    %c0_23 = arith.constant 0 : index
    %c0_24 = arith.constant 0 : index
    %51 = vector.load %arg7[%c0_23, %c0_24] : memref<1x256xf32, #tpu.memory_space<vmem>>, vector<1x256xf32>
    %52 = vector.broadcast %51 : vector<1x256xf32> to vector<256x256xf32>
    %53 = arith.addf %50, %52 : vector<256x256xf32>
    %cst_25 = arith.constant 0.000000e+00 : f32
    %54 = vector.broadcast %cst_25 : f32 to vector<256x256xf32>
    %55 = arith.maximumf %53, %54 : vector<256x256xf32>
    %56 = vector.shape_cast %55 : vector<256x256xf32> to vector<32x8x256xf32>
    %c0_26 = arith.constant 0 : index
    %c0_27 = arith.constant 0 : index
    %c0_28 = arith.constant 0 : index
    %57 = vector.load %arg8[%c0_26, %c0_27, %c0_28] : memref<32x8x256xf32, #tpu.memory_space<vmem>>, vector<32x8x256xf32>
    tpu.vector_store %arg8[%c0_26, %c0_27, %c0_28], %56 {strides = array<i32>} : memref<32x8x256xf32, #tpu.memory_space<vmem>>, vector<32x8x256xf32>,
    return
  }
  func.func @transform_0(%arg0: i32) -> (i32, i32, i32) {
    %c0_i32 = arith.constant 0 : i32
    %c0_i32_0 = arith.constant 0 : i32
    %c0_i32_1 = arith.constant 0 : i32
    return %arg0, %c0_i32, %c0_i32_0 : i32, i32, i32
  }
  func.func @transform_1(%arg0: i32) -> (i32, i32) {
    %c0_i32 = arith.constant 0 : i32
    %c0_i32_0 = arith.constant 0 : i32
    %c0_i32_1 = arith.constant 0 : i32
    return %c0_i32, %c0_i32_0 : i32, i32
  }
  func.func @transform_2(%arg0: i32) -> (i32, i32) {
    %c0_i32 = arith.constant 0 : i32
    %c0_i32_0 = arith.constant 0 : i32
    %c0_i32_1 = arith.constant 0 : i32
    return %c0_i32, %c0_i32_0 : i32, i32
  }
  func.func @transform_3(%arg0: i32) -> (i32, i32) {
    %c0_i32 = arith.constant 0 : i32
    %c0_i32_0 = arith.constant 0 : i32
    %c0_i32_1 = arith.constant 0 : i32
    return %c0_i32, %c0_i32_0 : i32, i32
  }
  func.func @transform_4(%arg0: i32) -> (i32, i32) {
    %c0_i32 = arith.constant 0 : i32
    %c0_i32_0 = arith.constant 0 : i32
    %c0_i32_1 = arith.constant 0 : i32
    return %c0_i32, %c0_i32_0 : i32, i32
  }
  func.func @transform_5(%arg0: i32) -> (i32, i32) {
    %c0_i32 = arith.constant 0 : i32
    %c0_i32_0 = arith.constant 0 : i32
    %c0_i32_1 = arith.constant 0 : i32
    return %c0_i32, %c0_i32_0 : i32, i32
  }
  func.func @transform_6(%arg0: i32) -> (i32, i32) {
    %c0_i32 = arith.constant 0 : i32
    %c0_i32_0 = arith.constant 0 : i32
    %c0_i32_1 = arith.constant 0 : i32
    return %c0_i32, %c0_i32_0 : i32, i32
  }
  func.func @transform_7(%arg0: i32) -> (i32, i32, i32) {
    %c0_i32 = arith.constant 0 : i32
    %c0_i32_0 = arith.constant 0 : i32
    %c0_i32_1 = arith.constant 0 : i32
    return %arg0, %c0_i32, %c0_i32_0 : i32, i32, i32
  }
}

</mosaic_0001>

<llo_original>
// kernel: tpu_custom_call.1
$region0: #{tpu_custom_call.1}
  #allocation0 [shape = 'u32[]', space=smem, size = 0x4, offset = 0x4, fixed_abs, tag = 'smem constant byte address 0x4 - core index']
  #allocation1 [shape = 'u32[72,128]{1,0:T(1,128)}', space=vmem, size = 0x9000, scoped, tag = 'internal scratch']
  %s0 = inlined_call_operand.hbm [shape: bf16[64,8,128], index: 0, kind: input, shape index: {}]
  %s1 = inlined_call_operand.hbm [shape: bf16[128,512], index: 1, kind: input, shape index: {}]
  %s2 = inlined_call_operand.hbm [shape: f32[1,256], index: 2, kind: input, shape index: {}]
  %s3 = inlined_call_operand.hbm [shape: bf16[768,128], index: 3, kind: input, shape index: {}]
  %s4 = inlined_call_operand.vmem [shape: f32[1,128], index: 4, kind: input, shape index: {}]
  %s5 = inlined_call_operand.hbm [shape: bf16[128,256], index: 5, kind: input, shape index: {}]
  %s6 = inlined_call_operand.vmem [shape: f32[1,256], index: 6, kind: input, shape index: {}]
  %s7 = inlined_call_operand.hbm [shape: f32[64,8,256], index: 7, kind: output, shape index: {}]
  %s8 = sld [smem:[#allocation0]]
  $region81: #{tpu_custom_call.1} parent=0
    _
  %s10 = ssub.s32 1, %s8
  %s11 = scalar_select 0, %s10, %s8
  $region1: #{tpu_custom_call.1} parent=0
    #allocation2 [shape = 'u8[131072]{0}', space=vmem, size = 0x20000, scoped, tag = 'input window, operand 0']
    #allocation3 [shape = 's32[2]{0}', space=sflag, size = 0x8, scoped, tag = 'scoped memory for tpu_custom_call.1']
    #allocation4 [shape = 's32[2]{0}', space=sflag, size = 0x8, scoped, tag = 'scoped memory for tpu_custom_call.1']
    #allocation5 [shape = 'u8[131072]{0}', space=vmem, size = 0x20000, scoped, tag = 'input window, operand 1, single buffered']
    #allocation6 [shape = 's32[1]{0}', space=sflag, size = 0x4, scoped, tag = 'scoped memory for tpu_custom_call.1']
    #allocation7 [shape = 'u8[1024]{0}', space=vmem, size = 0x400, scoped, tag = 'input window, operand 2, single buffered']
    #allocation8 [shape = 'u8[196608]{0}', space=vmem, size = 0x30000, scoped, tag = 'input window, operand 3, single buffered']
    #allocation9 [shape = 's32[1]{0}', space=sflag, size = 0x4, scoped, tag = 'scoped memory for tpu_custom_call.1']
    #allocation10 [shape = 'u8[65536]{0}', space=vmem, size = 0x10000, scoped, tag = 'input window, operand 5, single buffered']
    #allocation11 [shape = 'u8[524288]{0}', space=vmem, size = 0x80000, scoped, tag = 'output window, operand 0']
    %12 = vsyncpa [#allocation3], 0
    %s13 = scalar_lea.sflag [#allocation3], 1
    %14 = vsyncpa %s13, 0
    %15 = vsyncpa [#allocation6], 0
    %16 = vsyncpa [#allocation9], 0
    %17 = vsyncpa [#allocation4], 0
    %s18 = scalar_lea.sflag [#allocation4], 1
    %19 = vsyncpa %s18, 0
    loop: start=0, step=1, limit=4
    $region2: #{tpu_custom_call.1} parent=1 // loop_pre_header
      _
    $region3: #{tpu_custom_call.1} parent=1 // loop_header
      %s21 = sphi 0, %s25
      %p22 = scmp.ge.s32.totalorder %s21, 4
      %s31 = sphi 0, %s33
      %s34 = sphi 0, %s31
      %s35 = sphi 0, %s34
      %s51 = sphi 0, %s35
      %s55 = sphi 0, %s55
      %s57 = sphi 0, %s55
      %s58 = sphi 0, %s57
      %s72 = sphi 0, %s58
      %s76 = sphi 0, %s76
      %s78 = sphi 0, %s76
      %s79 = sphi 0, %s78
      %s93 = sphi 0, %s79
      %s97 = sphi 0, %s97
      %s99 = sphi 0, %s97
      %s100 = sphi 0, %s99
      %s114 = sphi 0, %s100
      %s118 = sphi 0, %s118
      %s120 = sphi 0, %s118
      %s121 = sphi 0, %s120
      %s135 = sphi 0, %s121
      %s139 = sphi 0, %s139
      %s141 = sphi 0, %s139
      %s142 = sphi 0, %s141
      %s156 = sphi 0, %s142
      %s160 = sphi 0, %s160
      %s162 = sphi 0, %s160
      %s163 = sphi 0, %s162
      %s177 = sphi 0, %s163
      %s183 = sphi 0, %s185
      %s186 = sphi 0, %s183
      %s187 = sphi 0, %s186
      %s203 = sphi 0, %s187
    $region4: #{tpu_custom_call.1} parent=1 // loop_header_branch
      %24 = sbr.rel (%p22) target = $region8
    $region5: #{tpu_custom_call.1} parent=1 // loop_body
      %s26 = ssub.s32 %s21, 1
      %s27 = ssub.s32 %s21, 2
      %s28 = sadd.s32 %s21, 1
      %s29 = ssub.s32 %s21, %s28
      %p30 = scmp.eq.s32.totalorder %s29, 0
      %s32 = sadd.s32 %s31, 1
      %s33 = scalar_select %p30, %s31, %s32
      %p36 = pneg %p30
      %p37 = scmp.eq.s32.totalorder %s21, 1
      %p38 = por %p36, %p37
      %p39 = scmp.ne.s32.totalorder %s31, %s34
      %p40 = scmp.eq.s32.totalorder %s21, 0
      %p41 = por %p39, %p40
      %p42 = scmp.ne.s32.totalorder %s31, %s34
      %p43 = scmp.eq.s32.totalorder %s26, 1
      %p44 = por %p42, %p43
      %p45 = scmp.ne.s32.totalorder %s34, %s35
      %p46 = scmp.eq.s32.totalorder %s26, 0
      %p47 = por %p45, %p46
      %p48 = scmp.ne.s32.totalorder %s34, %s35
      %p49 = scmp.eq.s32.totalorder %s27, 1
      %p50 = por %p48, %p49
      %p52 = scmp.ne.s32.totalorder %s35, %s51
      %p53 = scmp.eq.s32.totalorder %s27, 0
      %p54 = por %p52, %p53
      %s56 = sadd.s32 %s55, 1
      %p59 = scmp.eq.s32.totalorder %s21, 1
      %p60 = scmp.ne.s32.totalorder %s55, %s57
      %p61 = scmp.eq.s32.totalorder %s21, 0
      %p62 = por %p60, %p61
      %p63 = scmp.ne.s32.totalorder %s55, %s57
      %p64 = scmp.eq.s32.totalorder %s26, 1
      %p65 = por %p63, %p64
      %p66 = scmp.ne.s32.totalorder %s57, %s58
      %p67 = scmp.eq.s32.totalorder %s26, 0
      %p68 = por %p66, %p67
      %p69 = scmp.ne.s32.totalorder %s57, %s58
      %p70 = scmp.eq.s32.totalorder %s27, 1
      %p71 = por %p69, %p70
      %p73 = scmp.ne.s32.totalorder %s58, %s72
      %p74 = scmp.eq.s32.totalorder %s27, 0
      %p75 = por %p73, %p74
      %s77 = sadd.s32 %s76, 1
      %p80 = scmp.eq.s32.totalorder %s21, 1
      %p81 = scmp.ne.s32.totalorder %s76, %s78
      %p82 = scmp.eq.s32.totalorder %s21, 0
      %p83 = por %p81, %p82
      %p84 = scmp.ne.s32.totalorder %s76, %s78
      %p85 = scmp.eq.s32.totalorder %s26, 1
      %p86 = por %p84, %p85
      %p87 = scmp.ne.s32.totalorder %s78, %s79
      %p88 = scmp.eq.s32.totalorder %s26, 0
      %p89 = por %p87, %p88
      %p90 = scmp.ne.s32.totalorder %s78, %s79
      %p91 = scmp.eq.s32.totalorder %s27, 1
      %p92 = por %p90, %p91
      %p94 = scmp.ne.s32.totalorder %s79, %s93
      %p95 = scmp.eq.s32.totalorder %s27, 0
      %p96 = por %p94, %p95
      %s98 = sadd.s32 %s97, 1
      %p101 = scmp.eq.s32.totalorder %s21, 1
      %p102 = scmp.ne.s32.totalorder %s97, %s99
      %p103 = scmp.eq.s32.totalorder %s21, 0
      %p104 = por %p102, %p103
      %p105 = scmp.ne.s32.totalorder %s97, %s99
      %p106 = scmp.eq.s32.totalorder %s26, 1
      %p107 = por %p105, %p106
      %p108 = scmp.ne.s32.totalorder %s99, %s100
      %p109 = scmp.eq.s32.totalorder %s26, 0
      %p110 = por %p108, %p109
      %p111 = scmp.ne.s32.totalorder %s99, %s100
      %p112 = scmp.eq.s32.totalorder %s27, 1
      %p113 = por %p111, %p112
      %p115 = scmp.ne.s32.totalorder %s100, %s114
      %p116 = scmp.eq.s32.totalorder %s27, 0
      %p117 = por %p115, %p116
      %s119 = sadd.s32 %s118, 1
      %p122 = scmp.eq.s32.totalorder %s21, 1
      %p123 = scmp.ne.s32.totalorder %s118, %s120
      %p124 = scmp.eq.s32.totalorder %s21, 0
      %p125 = por %p123, %p124
      %p126 = scmp.ne.s32.totalorder %s118, %s120
      %p127 = scmp.eq.s32.totalorder %s26, 1
      %p128 = por %p126, %p127
      %p129 = scmp.ne.s32.totalorder %s120, %s121
      %p130 = scmp.eq.s32.totalorder %s26, 0
      %p131 = por %p129, %p130
      %p132 = scmp.ne.s32.totalorder %s120, %s121
      %p133 = scmp.eq.s32.totalorder %s27, 1
      %p134 = por %p132, %p133
      %p136 = scmp.ne.s32.totalorder %s121, %s135
      %p137 = scmp.eq.s32.totalorder %s27, 0
      %p138 = por %p136, %p137
      %s140 = sadd.s32 %s139, 1
      %p143 = scmp.eq.s32.totalorder %s21, 1
      %p144 = scmp.ne.s32.totalorder %s139, %s141
      %p145 = scmp.eq.s32.totalorder %s21, 0
      %p146 = por %p144, %p145
      %p147 = scmp.ne.s32.totalorder %s139, %s141
      %p148 = scmp.eq.s32.totalorder %s26, 1
      %p149 = por %p147, %p148
      %p150 = scmp.ne.s32.totalorder %s141, %s142
      %p151 = scmp.eq.s32.totalorder %s26, 0
      %p152 = por %p150, %p151
      %p153 = scmp.ne.s32.totalorder %s141, %s142
      %p154 = scmp.eq.s32.totalorder %s27, 1
      %p155 = por %p153, %p154
      %p157 = scmp.ne.s32.totalorder %s142, %s156
      %p158 = scmp.eq.s32.totalorder %s27, 0
      %p159 = por %p157, %p158
      %s161 = sadd.s32 %s160, 1
      %p164 = scmp.eq.s32.totalorder %s21, 1
      %p165 = scmp.ne.s32.totalorder %s160, %s162
      %p166 = scmp.eq.s32.totalorder %s21, 0
      %p167 = por %p165, %p166
      %p168 = scmp.ne.s32.totalorder %s160, %s162
      %p169 = scmp.eq.s32.totalorder %s26, 1
      %p170 = por %p168, %p169
      %p171 = scmp.ne.s32.totalorder %s162, %s163
      %p172 = scmp.eq.s32.totalorder %s26, 0
      %p173 = por %p171, %p172
      %p174 = scmp.ne.s32.totalorder %s162, %s163
      %p175 = scmp.eq.s32.totalorder %s27, 1
      %p176 = por %p174, %p175
      %p178 = scmp.ne.s32.totalorder %s163, %s177
      %p179 = scmp.eq.s32.totalorder %s27, 0
      %p180 = por %p178, %p179
      %s181 = ssub.s32 %s21, %s28
      %p182 = scmp.eq.s32.totalorder %s181, 0
      %s184 = sadd.s32 %s183, 1
      %s185 = scalar_select %p182, %s183, %s184
      %p188 = pneg %p182
      %p189 = scmp.eq.s32.totalorder %s21, 1
      %p190 = por %p188, %p189
      %p191 = scmp.ne.s32.totalorder %s183, %s186
      %p192 = scmp.eq.s32.totalorder %s21, 0
      %p193 = por %p191, %p192
      %p194 = scmp.ne.s32.totalorder %s183, %s186
      %p195 = scmp.eq.s32.totalorder %s26, 1
      %p196 = por %p194, %p195
      %p197 = scmp.ne.s32.totalorder %s186, %s187
      %p198 = scmp.eq.s32.totalorder %s26, 0
      %p199 = por %p197, %p198
      %p200 = scmp.ne.s32.totalorder %s186, %s187
      %p201 = scmp.eq.s32.totalorder %s27, 1
      %p202 = por %p200, %p201
      %p204 = scmp.ne.s32.totalorder %s187, %s203
      %p205 = scmp.eq.s32.totalorder %s27, 0
      %p206 = por %p204, %p205
      %p207 = scmp.le.s32.totalorder 1, %s21
      %p208 = scmp.lt.s32.totalorder %s21, 3
      %p209 = pnand %p207, %p208
      %p210 = pneg %p209
      // Predicated region
      $region9: #{tpu_custom_call.1} parent=5 // pred_check
        _
      $region10: #{tpu_custom_call.1} parent=5 // pred_check_branch
        %212 = sbr.rel (%p209) target = $region12
      $region11: #{tpu_custom_call.1} parent=5 // pred_region
        %s213 = ssub.s32 %s21, 1
        // Predicated region
        $region13: #{tpu_custom_call.1} parent=11 // pred_check
          %p214 = pneg %p68
        $region14: #{tpu_custom_call.1} parent=11 // pred_check_branch
          %216 = sbr.rel (%p214) target = $region16
        $region15: #{tpu_custom_call.1} parent=11 // pred_region
          %218 = vsyncadd [#allocation6], 0
          %s219 = sshll.u32 %s1, 4
          %s220 = int_to_ptr.hbm [resolvable:$true] %s219
          %s221 = sshll.u32 [#allocation5], 4
          %s222 = int_to_ptr.vmem [resolvable:$true] %s221
          %227 = dma.hbm_to_vmem [thread:$0]  %s220, 4096, %s222, [#allocation6], 256, 256, 16
        $region16: #{tpu_custom_call.1} parent=11 // pred_fallthru
          _
        // Predicated region
        $region17: #{tpu_custom_call.1} parent=11 // pred_check
          %p228 = pneg %p89
        $region18: #{tpu_custom_call.1} parent=11 // pred_check_branch
          %230 = sbr.rel (%p228) target = $region20
        $region19: #{tpu_custom_call.1} parent=11 // pred_region
          %232 = vsyncadd [#allocation6], 0
          %s234 = sshll.u32 %s2, 4
          %s235 = int_to_ptr.hbm [resolvable:$true] %s234
          %s236 = sshll.u32 [#allocation7], 4
          %s237 = int_to_ptr.vmem [resolvable:$true] %s236
          %239 = dma.hbm_to_vmem [thread:$0]  %s235, 32, %s237, [#allocation6]
        $region20: #{tpu_custom_call.1} parent=11 // pred_fallthru
          _
        // Predicated region
        $region21: #{tpu_custom_call.1} parent=11 // pred_check
          %p240 = pneg %p110
        $region22: #{tpu_custom_call.1} parent=11 // pred_check_branch
          %242 = sbr.rel (%p240) target = $region24
        $region23: #{tpu_custom_call.1} parent=11 // pred_region
          %244 = vsyncadd [#allocation9], 0
          %s245 = sshll.u32 %s3, 4
          %s246 = int_to_ptr.hbm [resolvable:$true] %s245
          %s247 = sshll.u32 [#allocation8], 4
          %s248 = int_to_ptr.vmem [resolvable:$true] %s247
          %253 = dma.hbm_to_vmem [thread:$0]  %s246, 6144, %s248, [#allocation9], 64, 64, 4
        $region24: #{tpu_custom_call.1} parent=11 // pred_fallthru
          _
        // Predicated region
        $region25: #{tpu_custom_call.1} parent=11 // pred_check
          %p254 = pneg %p131
        $region26: #{tpu_custom_call.1} parent=11 // pred_check_branch
          %256 = sbr.rel (%p254) target = $region28
        $region27: #{tpu_custom_call.1} parent=11 // pred_region
          _
        $region28: #{tpu_custom_call.1} parent=11 // pred_fallthru
          _
        // Predicated region
        $region29: #{tpu_custom_call.1} parent=11 // pred_check
          %p257 = pneg %p152
        $region30: #{tpu_custom_call.1} parent=11 // pred_check_branch
          %259 = sbr.rel (%p257) target = $region32
        $region31: #{tpu_custom_call.1} parent=11 // pred_region
          %261 = vsyncadd [#allocation9], 0
          %s262 = sshll.u32 %s5, 4
          %s263 = int_to_ptr.hbm [resolvable:$true] %s262
          %s264 = sshll.u32 [#allocation10], 4
          %s265 = int_to_ptr.vmem [resolvable:$true] %s264
          %270 = dma.hbm_to_vmem [thread:$0]  %s263, 2048, %s265, [#allocation9], 128, 128, 8
        $region32: #{tpu_custom_call.1} parent=11 // pred_fallthru
          _
        // Predicated region
        $region33: #{tpu_custom_call.1} parent=11 // pred_check
          %p271 = pneg %p173
        $region34: #{tpu_custom_call.1} parent=11 // pred_check_branch
          %273 = sbr.rel (%p271) target = $region36
        $region35: #{tpu_custom_call.1} parent=11 // pred_region
          _
        $region36: #{tpu_custom_call.1} parent=11 // pred_fallthru
          _
      $region12: #{tpu_custom_call.1} parent=5 // pred_fallthru
        _
      %p274 = scmp.lt.s32.totalorder %s21, 2
      // Predicated region
      $region37: #{tpu_custom_call.1} parent=5 // pred_check
        %p275 = pneg %p274
      $region38: #{tpu_custom_call.1} parent=5 // pred_check_branch
        %277 = sbr.rel (%p275) target = $region40
      $region39: #{tpu_custom_call.1} parent=5 // pred_region
        // Predicated region
        $region41: #{tpu_custom_call.1} parent=39 // pred_check
          %p278 = pneg %p41
        $region42: #{tpu_custom_call.1} parent=39 // pred_check_branch
          %280 = sbr.rel (%p278) target = $region44
        $region43: #{tpu_custom_call.1} parent=39 // pred_region
          %s281 = sand.u32 %s31, 1
          %s282 = scalar_lea.sflag [#allocation3], %s281
          %s283 = sand.u32 %s31, 1
          %s284 = smul.addr %s283, 128
          %s285 = scalar_lea.vmem [#allocation2], %s284
          %s286 = smul.u32 32, %s21
          %288 = vsyncadd %s282, 0
          %s289 = smul.addr %s286, 4
          %s290 = scalar_lea.hbm %s0, %s289
          %s291 = sshll.u32 %s290, 4
          %s292 = int_to_ptr.hbm [resolvable:$true] %s291
          %s293 = sshll.u32 %s285, 4
          %s294 = int_to_ptr.vmem [resolvable:$true] %s293
          %299 = dma.hbm_to_vmem [thread:$0]  %s292, 2048, %s294, %s282, 64, 64, 4
        $region44: #{tpu_custom_call.1} parent=39 // pred_fallthru
          _
      $region40: #{tpu_custom_call.1} parent=5 // pred_fallthru
        _
      %p300 = scmp.le.s32.totalorder 1, %s21
      %p301 = scmp.lt.s32.totalorder %s21, 3
      %p302 = pnand %p300, %p301
      %p303 = pneg %p302
      // Predicated region
      $region45: #{tpu_custom_call.1} parent=5 // pred_check
        _
      $region46: #{tpu_custom_call.1} parent=5 // pred_check_branch
        %305 = sbr.rel (%p302) target = $region48
      $region47: #{tpu_custom_call.1} parent=5 // pred_region
        %s306 = ssub.s32 %s21, 1
        %s307 = sand.u32 %s34, 1
        %s308 = scalar_lea.sflag [#allocation3], %s307
        %s309 = sand.u32 %s34, 1
        %s310 = smul.addr %s309, 128
        %s311 = scalar_lea.vmem [#allocation2], %s310
        // Predicated region
        $region49: #{tpu_custom_call.1} parent=47 // pred_check
          %p312 = pneg %p47
        $region50: #{tpu_custom_call.1} parent=47 // pred_check_branch
          %314 = sbr.rel (%p312) target = $region52
        $region51: #{tpu_custom_call.1} parent=47 // pred_region
          %316 = dma.done %s308, 2048
        $region52: #{tpu_custom_call.1} parent=47 // pred_fallthru
          _
        // Predicated region
        $region53: #{tpu_custom_call.1} parent=47 // pred_check
          %p317 = pneg %p68
        $region54: #{tpu_custom_call.1} parent=47 // pred_check_branch
          %319 = sbr.rel (%p317) target = $region56
        $region55: #{tpu_custom_call.1} parent=47 // pred_region
          %321 = dma.done [#allocation6], 4096
        $region56: #{tpu_custom_call.1} parent=47 // pred_fallthru
          _
        // Predicated region
        $region57: #{tpu_custom_call.1} parent=47 // pred_check
          %p322 = pneg %p89
        $region58: #{tpu_custom_call.1} parent=47 // pred_check_branch
          %324 = sbr.rel (%p322) target = $region60
        $region59: #{tpu_custom_call.1} parent=47 // pred_region
          %326 = dma.done [#allocation6], 32
        $region60: #{tpu_custom_call.1} parent=47 // pred_fallthru
          _
        // Predicated region
        $region61: #{tpu_custom_call.1} parent=47 // pred_check
          %p327 = pneg %p110
        $region62: #{tpu_custom_call.1} parent=47 // pred_check_branch
          %329 = sbr.rel (%p327) target = $region64
        $region63: #{tpu_custom_call.1} parent=47 // pred_region
          %331 = dma.done [#allocation9], 6144
        $region64: #{tpu_custom_call.1} parent=47 // pred_fallthru
          _
        // Predicated region
        $region65: #{tpu_custom_call.1} parent=47 // pred_check
          %p332 = pneg %p152
        $region66: #{tpu_custom_call.1} parent=47 // pred_check_branch
          %334 = sbr.rel (%p332) target = $region68
        $region67: #{tpu_custom_call.1} parent=47 // pred_region
          %336 = dma.done [#allocation9], 2048
        $region68: #{tpu_custom_call.1} parent=47 // pred_fallthru
          _
        %s337 = sand.u32 %s34, 1
        %s338 = scalar_lea.sflag [#allocation3], %s337
        %s339 = sand.u32 %s34, 1
        %s340 = smul.addr %s339, 128
        %s341 = scalar_lea.vmem [#allocation2], %s340
        %p342 = pneg %p47
        %p343 = pneg %p44
        %p344 = pneg %p68
        %p345 = pneg %p65
        %p346 = pneg %p89
        %p347 = pneg %p86
        %p348 = pneg %p110
        %p349 = pneg %p107
        %p350 = pneg %p131
        %p351 = pneg %p128
        %p352 = pneg %p152
        %p353 = pneg %p149
        %p354 = pneg %p173
        %p355 = pneg %p170
        %p356 = pneg %p199
        %p357 = pneg %p196
        %s358 = sand.u32 %s186, 1
        %s359 = scalar_lea.sflag [#allocation4], %s358
        %s360 = sand.u32 %s186, 1
        %s361 = smul.addr %s360, 512
        %s362 = scalar_lea.vmem [#allocation11], %s361
        %s363 = smul.u32 32, %s26
        %s364 = smul.u32 32, %s26
        %v365 = vld [vmem:[%s311] sm:$0xf]
        %v366 = vld [vmem:[%s311 + $0x4] sm:$0xf]
        %v367 = vld [vmem:[%s311 + $0x8] sm:$0xf]
        %v368 = vld [vmem:[%s311 + $0xc] sm:$0xf]
        %v369 = vld [vmem:[%s311 + $0x10] sm:$0xf]
        %v370 = vld [vmem:[%s311 + $0x14] sm:$0xf]
        %v371 = vld [vmem:[%s311 + $0x18] sm:$0xf]
        %v372 = vld [vmem:[%s311 + $0x1c] sm:$0xf]
        %v373 = vld [vmem:[%s311 + $0x20] sm:$0xf]
        %v374 = vld [vmem:[%s311 + $0x24] sm:$0xf]
        %v375 = vld [vmem:[%s311 + $0x28] sm:$0xf]
        %v376 = vld [vmem:[%s311 + $0x2c] sm:$0xf]
        %v377 = vld [vmem:[%s311 + $0x30] sm:$0xf]
        %v378 = vld [vmem:[%s311 + $0x34] sm:$0xf]
        %v379 = vld [vmem:[%s311 + $0x38] sm:$0xf]
        %v380 = vld [vmem:[%s311 + $0x3c] sm:$0xf]
        %v381 = vld [vmem:[%s311 + $0x40] sm:$0xf]
        %v382 = vld [vmem:[%s311 + $0x44] sm:$0xf]
        %v383 = vld [vmem:[%s311 + $0x48] sm:$0xf]
        %v384 = vld [vmem:[%s311 + $0x4c] sm:$0xf]
        %v385 = vld [vmem:[%s311 + $0x50] sm:$0xf]
        %v386 = vld [vmem:[%s311 + $0x54] sm:$0xf]
        %v387 = vld [vmem:[%s311 + $0x58] sm:$0xf]
        %v388 = vld [vmem:[%s311 + $0x5c] sm:$0xf]
        %v389 = vld [vmem:[%s311 + $0x60] sm:$0xf]
        %v390 = vld [vmem:[%s311 + $0x64] sm:$0xf]
        %v391 = vld [vmem:[%s311 + $0x68] sm:$0xf]
        %v392 = vld [vmem:[%s311 + $0x6c] sm:$0xf]
        %v393 = vld [vmem:[%s311 + $0x70] sm:$0xf]
        %v394 = vld [vmem:[%s311 + $0x74] sm:$0xf]
        %v395 = vld [vmem:[%s311 + $0x78] sm:$0xf]
        %v396 = vld [vmem:[%s311 + $0x7c] sm:$0xf]
        %v397 = vld [vmem:[#allocation5] sm:$0xff]
        %v398 = vld [vmem:[#allocation5 + $0x8] sm:$0xff]
        %v399 = vld [vmem:[#allocation5 + $0x10] sm:$0xff]
        %v400 = vld [vmem:[#allocation5 + $0x18] sm:$0xff]
        %v401 = vld [vmem:[#allocation5 + $0x20] sm:$0xff]
        %v402 = vld [vmem:[#allocation5 + $0x28] sm:$0xff]
        %v403 = vld [vmem:[#allocation5 + $0x30] sm:$0xff]
        %v404 = vld [vmem:[#allocation5 + $0x38] sm:$0xff]
        %v405 = vld [vmem:[#allocation5 + $0x40] sm:$0xff]
        %v406 = vld [vmem:[#allocation5 + $0x48] sm:$0xff]
        %v407 = vld [vmem:[#allocation5 + $0x50] sm:$0xff]
        %v408 = vld [vmem:[#allocation5 + $0x58] sm:$0xff]
        %v409 = vld [vmem:[#allocation5 + $0x60] sm:$0xff]
        %v410 = vld [vmem:[#allocation5 + $0x68] sm:$0xff]
        %v411 = vld [vmem:[#allocation5 + $0x70] sm:$0xff]
        %v412 = vld [vmem:[#allocation5 + $0x78] sm:$0xff]
        %v413 = vld [vmem:[#allocation5 + $0x80] sm:$0xff]
        %v414 = vld [vmem:[#allocation5 + $0x88] sm:$0xff]
        %v415 = vld [vmem:[#allocation5 + $0x90] sm:$0xff]
        %v416 = vld [vmem:[#allocation5 + $0x98] sm:$0xff]
        %v417 = vld [vmem:[#allocation5 + $0xa0] sm:$0xff]
        %v418 = vld [vmem:[#allocation5 + $0xa8] sm:$0xff]
        %v419 = vld [vmem:[#allocation5 + $0xb0] sm:$0xff]
        %v420 = vld [vmem:[#allocation5 + $0xb8] sm:$0xff]
        %v421 = vld [vmem:[#allocation5 + $0xc0] sm:$0xff]
        %v422 = vld [vmem:[#allocation5 + $0xc8] sm:$0xff]
        %v423 = vld [vmem:[#allocation5 + $0xd0] sm:$0xff]
        %v424 = vld [vmem:[#allocation5 + $0xd8] sm:$0xff]
        %v425 = vld [vmem:[#allocation5 + $0xe0] sm:$0xff]
        %v426 = vld [vmem:[#allocation5 + $0xe8] sm:$0xff]
        %v427 = vld [vmem:[#allocation5 + $0xf0] sm:$0xff]
        %v428 = vld [vmem:[#allocation5 + $0xf8] sm:$0xff]
        %v461 = vunpack.c.l.b16 %v365
        %v462 = vunpack.c.l.b16 %v366
        %v463 = vunpack.c.l.b16 %v367
        %v464 = vunpack.c.l.b16 %v368
        %v465 = vunpack.c.l.b16 %v369
        %v466 = vunpack.c.l.b16 %v370
        %v467 = vunpack.c.l.b16 %v371
        %v468 = vunpack.c.l.b16 %v372
        %v469 = vunpack.c.l.b16 %v373
        %v470 = vunpack.c.l.b16 %v374
        %v471 = vunpack.c.l.b16 %v375
        %v472 = vunpack.c.l.b16 %v376
        %v473 = vunpack.c.l.b16 %v377
        %v474 = vunpack.c.l.b16 %v378
        %v475 = vunpack.c.l.b16 %v379
        %v476 = vunpack.c.l.b16 %v380
        %v477 = vunpack.c.l.b16 %v381
        %v478 = vunpack.c.l.b16 %v382
        %v479 = vunpack.c.l.b16 %v383
        %v480 = vunpack.c.l.b16 %v384
        %v481 = vunpack.c.l.b16 %v385
        %v482 = vunpack.c.l.b16 %v386
        %v483 = vunpack.c.l.b16 %v387
        %v484 = vunpack.c.l.b16 %v388
        %v485 = vunpack.c.l.b16 %v389
        %v486 = vunpack.c.l.b16 %v390
        %v487 = vunpack.c.l.b16 %v391
        %v488 = vunpack.c.l.b16 %v392
        %v489 = vunpack.c.l.b16 %v393
        %v490 = vunpack.c.l.b16 %v394
        %v491 = vunpack.c.l.b16 %v395
        %v492 = vunpack.c.l.b16 %v396
        %v493 = vpack.c.b16 %v462, %v461
        %v494 = vpack.c.b16 %v464, %v463
        %v495 = vpack.c.b16 %v466, %v465
        %v496 = vpack.c.b16 %v468, %v467
        %v497 = vpack.c.b16 %v470, %v469
        %v498 = vpack.c.b16 %v472, %v471
        %v499 = vpack.c.b16 %v474, %v473
        %v500 = vpack.c.b16 %v476, %v475
        %v501 = vpack.c.b16 %v478, %v477
        %v502 = vpack.c.b16 %v480, %v479
        %v503 = vpack.c.b16 %v482, %v481
        %v504 = vpack.c.b16 %v484, %v483
        %v505 = vpack.c.b16 %v486, %v485
        %v506 = vpack.c.b16 %v488, %v487
        %v507 = vpack.c.b16 %v490, %v489
        %v508 = vpack.c.b16 %v492, %v491
        %v557 = vunpack.c.l.b16 %v397
        %v558 = vunpack.c.h.b16 %v397
        %v559 = vunpack.c.l.b16 %v398
        %v560 = vunpack.c.h.b16 %v398
        %v561 = vunpack.c.l.b16 %v399
        %v562 = vunpack.c.h.b16 %v399
        %v563 = vunpack.c.l.b16 %v400
        %v564 = vunpack.c.h.b16 %v400
        %v565 = vunpack.c.l.b16 %v401
        %v566 = vunpack.c.h.b16 %v401
        %v567 = vunpack.c.l.b16 %v402
        %v568 = vunpack.c.h.b16 %v402
        %v569 = vunpack.c.l.b16 %v403
        %v570 = vunpack.c.h.b16 %v403
        %v571 = vunpack.c.l.b16 %v404
        %v572 = vunpack.c.h.b16 %v404
        %v573 = vunpack.c.l.b16 %v405
        %v574 = vunpack.c.h.b16 %v405
        %v575 = vunpack.c.l.b16 %v406
        %v576 = vunpack.c.h.b16 %v406
        %v577 = vunpack.c.l.b16 %v407
        %v578 = vunpack.c.h.b16 %v407
        %v579 = vunpack.c.l.b16 %v408
        %v580 = vunpack.c.h.b16 %v408
        %v581 = vunpack.c.l.b16 %v409
        %v582 = vunpack.c.h.b16 %v409
        %v583 = vunpack.c.l.b16 %v410
        %v584 = vunpack.c.h.b16 %v410
        %v585 = vunpack.c.l.b16 %v411
        %v586 = vunpack.c.h.b16 %v411
        %v587 = vunpack.c.l.b16 %v412
        %v588 = vunpack.c.h.b16 %v412
        %v589 = vunpack.c.l.b16 %v413
        %v590 = vunpack.c.h.b16 %v413
        %v591 = vunpack.c.l.b16 %v414
        %v592 = vunpack.c.h.b16 %v414
        %v593 = vunpack.c.l.b16 %v415
        %v594 = vunpack.c.h.b16 %v415
        %v595 = vunpack.c.l.b16 %v416
        %v596 = vunpack.c.h.b16 %v416
        %v597 = vunpack.c.l.b16 %v417
        %v598 = vunpack.c.h.b16 %v417
        %v599 = vunpack.c.l.b16 %v418
        %v600 = vunpack.c.h.b16 %v418
        %v601 = vunpack.c.l.b16 %v419
        %v602 = vunpack.c.h.b16 %v419
        %v603 = vunpack.c.l.b16 %v420
        %v604 = vunpack.c.h.b16 %v420
        %v605 = vunpack.c.l.b16 %v421
        %v606 = vunpack.c.h.b16 %v421
        %v607 = vunpack.c.l.b16 %v422
        %v608 = vunpack.c.h.b16 %v422
        %v609 = vunpack.c.l.b16 %v423
        %v610 = vunpack.c.h.b16 %v423
        %v611 = vunpack.c.l.b16 %v424
        %v612 = vunpack.c.h.b16 %v424
        %v613 = vunpack.c.l.b16 %v425
        %v614 = vunpack.c.h.b16 %v425
        %v615 = vunpack.c.l.b16 %v426
        %v616 = vunpack.c.h.b16 %v426
        %v617 = vunpack.c.l.b16 %v427
        %v618 = vunpack.c.h.b16 %v427
        %v619 = vunpack.c.l.b16 %v428
        %v620 = vunpack.c.h.b16 %v428
        %v621 = vpack.c.b16 %v561, %v557
        %v622 = vpack.c.b16 %v562, %v558
        %v623 = vpack.c.b16 %v563, %v559
        %v624 = vpack.c.b16 %v564, %v560
        %v625 = vpack.c.b16 %v569, %v565
        %v626 = vpack.c.b16 %v570, %v566
        %v627 = vpack.c.b16 %v571, %v567
        %v628 = vpack.c.b16 %v572, %v568
        %v629 = vpack.c.b16 %v577, %v573
        %v630 = vpack.c.b16 %v578, %v574
        %v631 = vpack.c.b16 %v579, %v575
        %v632 = vpack.c.b16 %v580, %v576
        %v633 = vpack.c.b16 %v585, %v581
        %v634 = vpack.c.b16 %v586, %v582
        %v635 = vpack.c.b16 %v587, %v583
        %v636 = vpack.c.b16 %v588, %v584
        %v637 = vpack.c.b16 %v593, %v589
        %v638 = vpack.c.b16 %v594, %v590
        %v639 = vpack.c.b16 %v595, %v591
        %v640 = vpack.c.b16 %v596, %v592
        %v641 = vpack.c.b16 %v601, %v597
        %v642 = vpack.c.b16 %v602, %v598
        %v643 = vpack.c.b16 %v603, %v599
        %v644 = vpack.c.b16 %v604, %v600
        %v645 = vpack.c.b16 %v609, %v605
        %v646 = vpack.c.b16 %v610, %v606
        %v647 = vpack.c.b16 %v611, %v607
        %v648 = vpack.c.b16 %v612, %v608
        %v649 = vpack.c.b16 %v617, %v613
        %v650 = vpack.c.b16 %v618, %v614
        %v651 = vpack.c.b16 %v619, %v615
        %v652 = vpack.c.b16 %v620, %v616
        %685 = vmatpush.bf16.msra.mxu0 %v649
        %686 = vmatpush.bf16.msra.mxu0 %v645
        %687 = vmatpush.bf16.msra.mxu0 %v641
        %688 = vmatpush.bf16.msra.mxu0 %v637
        %689 = vmatpush.bf16.msra.mxu0 %v633
        %690 = vmatpush.bf16.msra.mxu0 %v629
        %691 = vmatpush.bf16.msra.mxu0 %v625
        %692 = vmatpush.bf16.msra.mxu0 %v621
        %693 = vmatmul.bf16.gmra.mxu0 %v493
        %v694 = vpop.f32.mrf.mxu0
        %v695 = vadd.f32 0.0, %v694
        %v696 = vpop.f32.mrf.mxu0
        %v697 = vadd.f32 0.0, %v696
        %698 = vmatmul.bf16.gmra.mxu0 %v494
        %v699 = vpop.f32.mrf.mxu0
        %v700 = vadd.f32 0.0, %v699
        %v701 = vpop.f32.mrf.mxu0
        %v702 = vadd.f32 0.0, %v701
        %703 = vmatmul.bf16.gmra.mxu0 %v495
        %v704 = vpop.f32.mrf.mxu0
        %v705 = vadd.f32 0.0, %v704
        %v706 = vpop.f32.mrf.mxu0
        %v707 = vadd.f32 0.0, %v706
        %708 = vmatmul.bf16.gmra.mxu0 %v496
        %v709 = vpop.f32.mrf.mxu0
        %v710 = vadd.f32 0.0, %v709
        %v711 = vpop.f32.mrf.mxu0
        %v712 = vadd.f32 0.0, %v711
        %713 = vmatmul.bf16.gmra.mxu0 %v497
        %v714 = vpop.f32.mrf.mxu0
        %v715 = vadd.f32 0.0, %v714
        %v716 = vpop.f32.mrf.mxu0
        %v717 = vadd.f32 0.0, %v716
        %718 = vmatmul.bf16.gmra.mxu0 %v498
        %v719 = vpop.f32.mrf.mxu0
        %v720 = vadd.f32 0.0, %v719
        %v721 = vpop.f32.mrf.mxu0
        %v722 = vadd.f32 0.0, %v721
        %723 = vmatmul.bf16.gmra.mxu0 %v499
        %v724 = vpop.f32.mrf.mxu0
        %v725 = vadd.f32 0.0, %v724
        %v726 = vpop.f32.mrf.mxu0
        %v727 = vadd.f32 0.0, %v726
        %728 = vmatmul.bf16.gmra.mxu0 %v500
        %v729 = vpop.f32.mrf.mxu0
        %v730 = vadd.f32 0.0, %v729
        %v731 = vpop.f32.mrf.mxu0
        %v732 = vadd.f32 0.0, %v731
        %733 = vmatmul.bf16.gmra.mxu0 %v501
        %v734 = vpop.f32.mrf.mxu0
        %v735 = vadd.f32 0.0, %v734
        %v736 = vpop.f32.mrf.mxu0
        %v737 = vadd.f32 0.0, %v736
        %738 = vmatmul.bf16.gmra.mxu0 %v502
        %v739 = vpop.f32.mrf.mxu0
        %v740 = vadd.f32 0.0, %v739
        %v741 = vpop.f32.mrf.mxu0
        %v742 = vadd.f32 0.0, %v741
        %743 = vmatmul.bf16.gmra.mxu0 %v503
        %v744 = vpop.f32.mrf.mxu0
        %v745 = vadd.f32 0.0, %v744
        %v746 = vpop.f32.mrf.mxu0
        %v747 = vadd.f32 0.0, %v746
        %748 = vmatmul.bf16.gmra.mxu0 %v504
        %v749 = vpop.f32.mrf.mxu0
        %v750 = vadd.f32 0.0, %v749
        %v751 = vpop.f32.mrf.mxu0
        %v752 = vadd.f32 0.0, %v751
        %753 = vmatmul.bf16.gmra.mxu0 %v505
        %v754 = vpop.f32.mrf.mxu0
        %v755 = vadd.f32 0.0, %v754
        %v756 = vpop.f32.mrf.mxu0
        %v757 = vadd.f32 0.0, %v756
        %758 = vmatmul.bf16.gmra.mxu0 %v506
        %v759 = vpop.f32.mrf.mxu0
        %v760 = vadd.f32 0.0, %v759
        %v761 = vpop.f32.mrf.mxu0
        %v762 = vadd.f32 0.0, %v761
        %763 = vmatmul.bf16.gmra.mxu0 %v507
        %v764 = vpop.f32.mrf.mxu0
        %v765 = vadd.f32 0.0, %v764
        %v766 = vpop.f32.mrf.mxu0
        %v767 = vadd.f32 0.0, %v766
        %768 = vmatmul.bf16.gmra.mxu0 %v508
        %v769 = vpop.f32.mrf.mxu0
        %v770 = vadd.f32 0.0, %v769
        %v771 = vpop.f32.mrf.mxu0
        %v772 = vadd.f32 0.0, %v771
        %773 = vdwg.mxu0
        %774 = vmatpush.bf16.msra.mxu0 %v650
        %775 = vmatpush.bf16.msra.mxu0 %v646
        %776 = vmatpush.bf16.msra.mxu0 %v642
        %777 = vmatpush.bf16.msra.mxu0 %v638
        %778 = vmatpush.bf16.msra.mxu0 %v634
        %779 = vmatpush.bf16.msra.mxu0 %v630
        %780 = vmatpush.bf16.msra.mxu0 %v626
        %781 = vmatpush.bf16.msra.mxu0 %v622
        %782 = vmatmul.bf16.gmra.mxu0 %v493
        %v783 = vpop.f32.mrf.mxu0
        %v784 = vadd.f32 0.0, %v783
        %v785 = vpop.f32.mrf.mxu0
        %v786 = vadd.f32 0.0, %v785
        %787 = vmatmul.bf16.gmra.mxu0 %v494
        %v788 = vpop.f32.mrf.mxu0
        %v789 = vadd.f32 0.0, %v788
        %v790 = vpop.f32.mrf.mxu0
        %v791 = vadd.f32 0.0, %v790
        %792 = vmatmul.bf16.gmra.mxu0 %v495
        %v793 = vpop.f32.mrf.mxu0
        %v794 = vadd.f32 0.0, %v793
        %v795 = vpop.f32.mrf.mxu0
        %v796 = vadd.f32 0.0, %v795
        %797 = vmatmul.bf16.gmra.mxu0 %v496
        %v798 = vpop.f32.mrf.mxu0
        %v799 = vadd.f32 0.0, %v798
        %v800 = vpop.f32.mrf.mxu0
        %v801 = vadd.f32 0.0, %v800
        %802 = vmatmul.bf16.gmra.mxu0 %v497
        %v803 = vpop.f32.mrf.mxu0
        %v804 = vadd.f32 0.0, %v803
        %v805 = vpop.f32.mrf.mxu0
        %v806 = vadd.f32 0.0, %v805
        %807 = vmatmul.bf16.gmra.mxu0 %v498
        %v808 = vpop.f32.mrf.mxu0
        %v809 = vadd.f32 0.0, %v808
        %v810 = vpop.f32.mrf.mxu0
        %v811 = vadd.f32 0.0, %v810
        %812 = vmatmul.bf16.gmra.mxu0 %v499
        %v813 = vpop.f32.mrf.mxu0
        %v814 = vadd.f32 0.0, %v813
        %v815 = vpop.f32.mrf.mxu0
        %v816 = vadd.f32 0.0, %v815
        %817 = vmatmul.bf16.gmra.mxu0 %v500
        %v818 = vpop.f32.mrf.mxu0
        %v819 = vadd.f32 0.0, %v818
        %v820 = vpop.f32.mrf.mxu0
        %v821 = vadd.f32 0.0, %v820
        %822 = vmatmul.bf16.gmra.mxu0 %v501
        %v823 = vpop.f32.mrf.mxu0
        %v824 = vadd.f32 0.0, %v823
        %v825 = vpop.f32.mrf.mxu0
        %v826 = vadd.f32 0.0, %v825
        %827 = vmatmul.bf16.gmra.mxu0 %v502
        %v828 = vpop.f32.mrf.mxu0
        %v829 = vadd.f32 0.0, %v828
        %v830 = vpop.f32.mrf.mxu0
        %v831 = vadd.f32 0.0, %v830
        %832 = vmatmul.bf16.gmra.mxu0 %v503
        %v833 = vpop.f32.mrf.mxu0
        %v834 = vadd.f32 0.0, %v833
        %v835 = vpop.f32.mrf.mxu0
        %v836 = vadd.f32 0.0, %v835
        %837 = vmatmul.bf16.gmra.mxu0 %v504
        %v838 = vpop.f32.mrf.mxu0
        %v839 = vadd.f32 0.0, %v838
        %v840 = vpop.f32.mrf.mxu0
        %v841 = vadd.f32 0.0, %v840
        %842 = vmatmul.bf16.gmra.mxu0 %v505
        %v843 = vpop.f32.mrf.mxu0
        %v844 = vadd.f32 0.0, %v843
        %v845 = vpop.f32.mrf.mxu0
        %v846 = vadd.f32 0.0, %v845
        %847 = vmatmul.bf16.gmra.mxu0 %v506
        %v848 = vpop.f32.mrf.mxu0
        %v849 = vadd.f32 0.0, %v848
        %v850 = vpop.f32.mrf.mxu0
        %v851 = vadd.f32 0.0, %v850
        %852 = vmatmul.bf16.gmra.mxu0 %v507
        %v853 = vpop.f32.mrf.mxu0
        %v854 = vadd.f32 0.0, %v853
        %v855 = vpop.f32.mrf.mxu0
        %v856 = vadd.f32 0.0, %v855
        %857 = vmatmul.bf16.gmra.mxu0 %v508
        %v858 = vpop.f32.mrf.mxu0
        %v859 = vadd.f32 0.0, %v858
        %v860 = vpop.f32.mrf.mxu0
        %v861 = vadd.f32 0.0, %v860
        %862 = vdwg.mxu0
        %863 = vmatpush.bf16.msra.mxu0 %v651
        %864 = vmatpush.bf16.msra.mxu0 %v647
        %865 = vmatpush.bf16.msra.mxu0 %v643
        %866 = vmatpush.bf16.msra.mxu0 %v639
        %867 = vmatpush.bf16.msra.mxu0 %v635
        %868 = vmatpush.bf16.msra.mxu0 %v631
        %869 = vmatpush.bf16.msra.mxu0 %v627
        %870 = vmatpush.bf16.msra.mxu0 %v623
        %871 = vmatmul.bf16.gmra.mxu0 %v493
        %v872 = vpop.f32.mrf.mxu0
        %v873 = vadd.f32 0.0, %v872
        %v874 = vpop.f32.mrf.mxu0
        %v875 = vadd.f32 0.0, %v874
        %876 = vmatmul.bf16.gmra.mxu0 %v494
        %v877 = vpop.f32.mrf.mxu0
        %v878 = vadd.f32 0.0, %v877
        %v879 = vpop.f32.mrf.mxu0
        %v880 = vadd.f32 0.0, %v879
        %881 = vmatmul.bf16.gmra.mxu0 %v495
        %v882 = vpop.f32.mrf.mxu0
        %v883 = vadd.f32 0.0, %v882
        %v884 = vpop.f32.mrf.mxu0
        %v885 = vadd.f32 0.0, %v884
        %886 = vmatmul.bf16.gmra.mxu0 %v496
        %v887 = vpop.f32.mrf.mxu0
        %v888 = vadd.f32 0.0, %v887
        %v889 = vpop.f32.mrf.mxu0
        %v890 = vadd.f32 0.0, %v889
        %891 = vmatmul.bf16.gmra.mxu0 %v497
        %v892 = vpop.f32.mrf.mxu0
        %v893 = vadd.f32 0.0, %v892
        %v894 = vpop.f32.mrf.mxu0
        %v895 = vadd.f32 0.0, %v894
        %896 = vmatmul.bf16.gmra.mxu0 %v498
        %v897 = vpop.f32.mrf.mxu0
        %v898 = vadd.f32 0.0, %v897
        %v899 = vpop.f32.mrf.mxu0
        %v900 = vadd.f32 0.0, %v899
        %901 = vmatmul.bf16.gmra.mxu0 %v499
        %v902 = vpop.f32.mrf.mxu0
        %v903 = vadd.f32 0.0, %v902
        %v904 = vpop.f32.mrf.mxu0
        %v905 = vadd.f32 0.0, %v904
        %906 = vmatmul.bf16.gmra.mxu0 %v500
        %v907 = vpop.f32.mrf.mxu0
        %v908 = vadd.f32 0.0, %v907
        %v909 = vpop.f32.mrf.mxu0
        %v910 = vadd.f32 0.0, %v909
        %911 = vmatmul.bf16.gmra.mxu0 %v501
        %v912 = vpop.f32.mrf.mxu0
        %v913 = vadd.f32 0.0, %v912
        %v914 = vpop.f32.mrf.mxu0
        %v915 = vadd.f32 0.0, %v914
        %916 = vmatmul.bf16.gmra.mxu0 %v502
        %v917 = vpop.f32.mrf.mxu0
        %v918 = vadd.f32 0.0, %v917
        %v919 = vpop.f32.mrf.mxu0
        %v920 = vadd.f32 0.0, %v919
        %921 = vmatmul.bf16.gmra.mxu0 %v503
        %v922 = vpop.f32.mrf.mxu0
        %v923 = vadd.f32 0.0, %v922
        %v924 = vpop.f32.mrf.mxu0
        %v925 = vadd.f32 0.0, %v924
        %926 = vmatmul.bf16.gmra.mxu0 %v504
        %v927 = vpop.f32.mrf.mxu0
        %v928 = vadd.f32 0.0, %v927
        %v929 = vpop.f32.mrf.mxu0
        %v930 = vadd.f32 0.0, %v929
        %931 = vmatmul.bf16.gmra.mxu0 %v505
        %v932 = vpop.f32.mrf.mxu0
        %v933 = vadd.f32 0.0, %v932
        %v934 = vpop.f32.mrf.mxu0
        %v935 = vadd.f32 0.0, %v934
        %936 = vmatmul.bf16.gmra.mxu0 %v506
        %v937 = vpop.f32.mrf.mxu0
        %v938 = vadd.f32 0.0, %v937
        %v939 = vpop.f32.mrf.mxu0
        %v940 = vadd.f32 0.0, %v939
        %941 = vmatmul.bf16.gmra.mxu0 %v507
        %v942 = vpop.f32.mrf.mxu0
        %v943 = vadd.f32 0.0, %v942
        %v944 = vpop.f32.mrf.mxu0
        %v945 = vadd.f32 0.0, %v944
        %946 = vmatmul.bf16.gmra.mxu0 %v508
        %v947 = vpop.f32.mrf.mxu0
        %v948 = vadd.f32 0.0, %v947
        %v949 = vpop.f32.mrf.mxu0
        %v950 = vadd.f32 0.0, %v949
        %951 = vdwg.mxu0
        %952 = vmatpush.bf16.msra.mxu0 %v652
        %953 = vmatpush.bf16.msra.mxu0 %v648
        %954 = vmatpush.bf16.msra.mxu0 %v644
        %955 = vmatpush.bf16.msra.mxu0 %v640
        %956 = vmatpush.bf16.msra.mxu0 %v636
        %957 = vmatpush.bf16.msra.mxu0 %v632
        %958 = vmatpush.bf16.msra.mxu0 %v628
        %959 = vmatpush.bf16.msra.mxu0 %v624
        %960 = vmatmul.bf16.gmra.mxu0 %v493
        %v961 = vpop.f32.mrf.mxu0
        %v962 = vadd.f32 0.0, %v961
        %v963 = vpop.f32.mrf.mxu0
        %v964 = vadd.f32 0.0, %v963
        %965 = vmatmul.bf16.gmra.mxu0 %v494
        %v966 = vpop.f32.mrf.mxu0
        %v967 = vadd.f32 0.0, %v966
        %v968 = vpop.f32.mrf.mxu0
        %v969 = vadd.f32 0.0, %v968
        %970 = vmatmul.bf16.gmra.mxu0 %v495
        %v971 = vpop.f32.mrf.mxu0
        %v972 = vadd.f32 0.0, %v971
        %v973 = vpop.f32.mrf.mxu0
        %v974 = vadd.f32 0.0, %v973
        %975 = vmatmul.bf16.gmra.mxu0 %v496
        %v976 = vpop.f32.mrf.mxu0
        %v977 = vadd.f32 0.0, %v976
        %v978 = vpop.f32.mrf.mxu0
        %v979 = vadd.f32 0.0, %v978
        %980 = vmatmul.bf16.gmra.mxu0 %v497
        %v981 = vpop.f32.mrf.mxu0
        %v982 = vadd.f32 0.0, %v981
        %v983 = vpop.f32.mrf.mxu0
        %v984 = vadd.f32 0.0, %v983
        %985 = vmatmul.bf16.gmra.mxu0 %v498
        %v986 = vpop.f32.mrf.mxu0
        %v987 = vadd.f32 0.0, %v986
        %v988 = vpop.f32.mrf.mxu0
        %v989 = vadd.f32 0.0, %v988
        %990 = vmatmul.bf16.gmra.mxu0 %v499
        %v991 = vpop.f32.mrf.mxu0
        %v992 = vadd.f32 0.0, %v991
        %v993 = vpop.f32.mrf.mxu0
        %v994 = vadd.f32 0.0, %v993
        %995 = vmatmul.bf16.gmra.mxu0 %v500
        %v996 = vpop.f32.mrf.mxu0
        %v997 = vadd.f32 0.0, %v996
        %v998 = vpop.f32.mrf.mxu0
        %v999 = vadd.f32 0.0, %v998
        %1000 = vmatmul.bf16.gmra.mxu0 %v501
        %v1001 = vpop.f32.mrf.mxu0
        %v1002 = vadd.f32 0.0, %v1001
        %v1003 = vpop.f32.mrf.mxu0
        %v1004 = vadd.f32 0.0, %v1003
        %1005 = vmatmul.bf16.gmra.mxu0 %v502
        %v1006 = vpop.f32.mrf.mxu0
        %v1007 = vadd.f32 0.0, %v1006
        %v1008 = vpop.f32.mrf.mxu0
        %v1009 = vadd.f32 0.0, %v1008
        %1010 = vmatmul.bf16.gmra.mxu0 %v503
        %v1011 = vpop.f32.mrf.mxu0
        %v1012 = vadd.f32 0.0, %v1011
        %v1013 = vpop.f32.mrf.mxu0
        %v1014 = vadd.f32 0.0, %v1013
        %1015 = vmatmul.bf16.gmra.mxu0 %v504
        %v1016 = vpop.f32.mrf.mxu0
        %v1017 = vadd.f32 0.0, %v1016
        %v1018 = vpop.f32.mrf.mxu0
        %v1019 = vadd.f32 0.0, %v1018
        %1020 = vmatmul.bf16.gmra.mxu0 %v505
        %v1021 = vpop.f32.mrf.mxu0
        %v1022 = vadd.f32 0.0, %v1021
        %v1023 = vpop.f32.mrf.mxu0
        %v1024 = vadd.f32 0.0, %v1023
        %1025 = vmatmul.bf16.gmra.mxu0 %v506
        %v1026 = vpop.f32.mrf.mxu0
        %v1027 = vadd.f32 0.0, %v1026
        %v1028 = vpop.f32.mrf.mxu0
        %v1029 = vadd.f32 0.0, %v1028
        %1030 = vmatmul.bf16.gmra.mxu0 %v507
        %v1031 = vpop.f32.mrf.mxu0
        %v1032 = vadd.f32 0.0, %v1031
        %v1033 = vpop.f32.mrf.mxu0
        %v1034 = vadd.f32 0.0, %v1033
        %1035 = vmatmul.bf16.gmra.mxu0 %v508
        %v1036 = vpop.f32.mrf.mxu0
        %v1037 = vadd.f32 0.0, %v1036
        %v1038 = vpop.f32.mrf.mxu0
        %v1039 = vadd.f32 0.0, %v1038
        %1040 = vdwg.mxu0
        %v1041 = vld [vmem:[#allocation7] sm:$0x3]
        %v1043 = vperm.slane %v1041, 0
        %v1044 = vperm.slane %v1041, 1
        %v1047 = vadd.f32 %v873, %v1043
        %v1048 = vadd.f32 %v962, %v1044
        %v1049 = vadd.f32 %v875, %v1043
        %v1050 = vadd.f32 %v964, %v1044
        %v1051 = vadd.f32 %v878, %v1043
        %v1052 = vadd.f32 %v967, %v1044
        %v1053 = vadd.f32 %v880, %v1043
        %v1054 = vadd.f32 %v969, %v1044
        %v1055 = vadd.f32 %v883, %v1043
        %v1056 = vadd.f32 %v972, %v1044
        %v1057 = vadd.f32 %v885, %v1043
        %v1058 = vadd.f32 %v974, %v1044
        %v1059 = vadd.f32 %v888, %v1043
        %v1060 = vadd.f32 %v977, %v1044
        %v1061 = vadd.f32 %v890, %v1043
        %v1062 = vadd.f32 %v979, %v1044
        %v1063 = vadd.f32 %v893, %v1043
        %v1064 = vadd.f32 %v982, %v1044
        %v1065 = vadd.f32 %v895, %v1043
        %v1066 = vadd.f32 %v984, %v1044
        %v1067 = vadd.f32 %v898, %v1043
        %v1068 = vadd.f32 %v987, %v1044
        %v1069 = vadd.f32 %v900, %v1043
        %v1070 = vadd.f32 %v989, %v1044
        %v1071 = vadd.f32 %v903, %v1043
        %v1072 = vadd.f32 %v992, %v1044
        %v1073 = vadd.f32 %v905, %v1043
        %v1074 = vadd.f32 %v994, %v1044
        %v1075 = vadd.f32 %v908, %v1043
        %v1076 = vadd.f32 %v997, %v1044
        %v1077 = vadd.f32 %v910, %v1043
        %v1078 = vadd.f32 %v999, %v1044
        %v1079 = vadd.f32 %v913, %v1043
        %v1080 = vadd.f32 %v1002, %v1044
        %v1081 = vadd.f32 %v915, %v1043
        %v1082 = vadd.f32 %v1004, %v1044
        %v1083 = vadd.f32 %v918, %v1043
        %v1084 = vadd.f32 %v1007, %v1044
        %v1085 = vadd.f32 %v920, %v1043
        %v1086 = vadd.f32 %v1009, %v1044
        %v1087 = vadd.f32 %v923, %v1043
        %v1088 = vadd.f32 %v1012, %v1044
        %v1089 = vadd.f32 %v925, %v1043
        %v1090 = vadd.f32 %v1014, %v1044
        %v1091 = vadd.f32 %v928, %v1043
        %v1092 = vadd.f32 %v1017, %v1044
        %v1093 = vadd.f32 %v930, %v1043
        %v1094 = vadd.f32 %v1019, %v1044
        %v1095 = vadd.f32 %v933, %v1043
        %v1096 = vadd.f32 %v1022, %v1044
        %v1097 = vadd.f32 %v935, %v1043
        %v1098 = vadd.f32 %v1024, %v1044
        %v1099 = vadd.f32 %v938, %v1043
        %v1100 = vadd.f32 %v1027, %v1044
        %v1101 = vadd.f32 %v940, %v1043
        %v1102 = vadd.f32 %v1029, %v1044
        %v1103 = vadd.f32 %v943, %v1043
        %v1104 = vadd.f32 %v1032, %v1044
        %v1105 = vadd.f32 %v945, %v1043
        %v1106 = vadd.f32 %v1034, %v1044
        %v1107 = vadd.f32 %v948, %v1043
        %v1108 = vadd.f32 %v1037, %v1044
        %v1109 = vadd.f32 %v950, %v1043
        %v1110 = vadd.f32 %v1039, %v1044
        %v1111 = vmax.f32 %v1047, 0.0
        %v1112 = vmax.f32 %v1048, 0.0
        %v1113 = vmax.f32 %v1049, 0.0
        %v1114 = vmax.f32 %v1050, 0.0
        %v1115 = vmax.f32 %v1051, 0.0
        %v1116 = vmax.f32 %v1052, 0.0
        %v1117 = vmax.f32 %v1053, 0.0
        %v1118 = vmax.f32 %v1054, 0.0
        %v1119 = vmax.f32 %v1055, 0.0
        %v1120 = vmax.f32 %v1056, 0.0
        %v1121 = vmax.f32 %v1057, 0.0
        %v1122 = vmax.f32 %v1058, 0.0
        %v1123 = vmax.f32 %v1059, 0.0
        %v1124 = vmax.f32 %v1060, 0.0
        %v1125 = vmax.f32 %v1061, 0.0
        %v1126 = vmax.f32 %v1062, 0.0
        %v1127 = vmax.f32 %v1063, 0.0
        %v1128 = vmax.f32 %v1064, 0.0
        %v1129 = vmax.f32 %v1065, 0.0
        %v1130 = vmax.f32 %v1066, 0.0
        %v1131 = vmax.f32 %v1067, 0.0
        %v1132 = vmax.f32 %v1068, 0.0
        %v1133 = vmax.f32 %v1069, 0.0
        %v1134 = vmax.f32 %v1070, 0.0
        %v1135 = vmax.f32 %v1071, 0.0
        %v1136 = vmax.f32 %v1072, 0.0
        %v1137 = vmax.f32 %v1073, 0.0
        %v1138 = vmax.f32 %v1074, 0.0
        %v1139 = vmax.f32 %v1075, 0.0
        %v1140 = vmax.f32 %v1076, 0.0
        %v1141 = vmax.f32 %v1077, 0.0
        %v1142 = vmax.f32 %v1078, 0.0
        %v1143 = vmax.f32 %v1079, 0.0
        %v1144 = vmax.f32 %v1080, 0.0
        %v1145 = vmax.f32 %v1081, 0.0
        %v1146 = vmax.f32 %v1082, 0.0
        %v1147 = vmax.f32 %v1083, 0.0
        %v1148 = vmax.f32 %v1084, 0.0
        %v1149 = vmax.f32 %v1085, 0.0
        %v1150 = vmax.f32 %v1086, 0.0
        %v1151 = vmax.f32 %v1087, 0.0
        %v1152 = vmax.f32 %v1088, 0.0
        %v1153 = vmax.f32 %v1089, 0.0
        %v1154 = vmax.f32 %v1090, 0.0
        %v1155 = vmax.f32 %v1091, 0.0
        %v1156 = vmax.f32 %v1092, 0.0
        %v1157 = vmax.f32 %v1093, 0.0
        %v1158 = vmax.f32 %v1094, 0.0
        %v1159 = vmax.f32 %v1095, 0.0
        %v1160 = vmax.f32 %v1096, 0.0
        %v1161 = vmax.f32 %v1097, 0.0
        %v1162 = vmax.f32 %v1098, 0.0
        %v1163 = vmax.f32 %v1099, 0.0
        %v1164 = vmax.f32 %v1100, 0.0
        %v1165 = vmax.f32 %v1101, 0.0
        %v1166 = vmax.f32 %v1102, 0.0
        %v1167 = vmax.f32 %v1103, 0.0
        %v1168 = vmax.f32 %v1104, 0.0
        %v1169 = vmax.f32 %v1105, 0.0
        %v1170 = vmax.f32 %v1106, 0.0
        %v1171 = vmax.f32 %v1107, 0.0
        %v1172 = vmax.f32 %v1108, 0.0
        %v1173 = vmax.f32 %v1109, 0.0
        %v1174 = vmax.f32 %v1110, 0.0
        %v1175 = vlaneseq
        %v1176 = vshrl.u32 %v1175, 7
        %v1177 = vadd.s32 %v1176, 8
        %v1178 = vadd.s32 %v1176, 16
        %v1179 = vadd.s32 %v1176, 24
        %v1180 = vadd.s32 %v1176, 32
        %v1181 = vadd.s32 %v1176, 40
        %v1182 = vadd.s32 %v1176, 48
        %v1183 = vadd.s32 %v1176, 56
        %v1184 = vadd.s32 %v1176, 64
        %v1185 = vadd.s32 %v1176, 72
        %v1186 = vadd.s32 %v1176, 80
        %v1187 = vadd.s32 %v1176, 88
        %v1188 = vadd.s32 %v1176, 96
        %v1189 = vadd.s32 %v1176, 104
        %v1190 = vadd.s32 %v1176, 112
        %v1191 = vadd.s32 %v1176, 120
        %v1192 = vadd.s32 %v1176, 128
        %v1193 = vadd.s32 %v1176, 136
        %v1194 = vadd.s32 %v1176, 144
        %v1195 = vadd.s32 %v1176, 152
        %v1196 = vadd.s32 %v1176, 160
        %v1197 = vadd.s32 %v1176, 168
        %v1198 = vadd.s32 %v1176, 176
        %v1199 = vadd.s32 %v1176, 184
        %v1200 = vadd.s32 %v1176, 192
        %v1201 = vadd.s32 %v1176, 200
        %v1202 = vadd.s32 %v1176, 208
        %v1203 = vadd.s32 %v1176, 216
        %v1204 = vadd.s32 %v1176, 224
        %v1205 = vadd.s32 %v1176, 232
        %v1206 = vadd.s32 %v1176, 240
        %v1207 = vadd.s32 %v1176, 248
        %vm1208 = vcmp.lt.s32.totalorder %v1176, 0
        %v1209 = vsub.s32 0, %v1176
        %v1210 = vsel %vm1208, %v1209, %v1176
        %v1211 = vshrl.u32 %v1210, 3
        %v1212 = vand.u32 %v1210, 7
        %v1213 = vsub.s32 0, %v1212
        %v1214 = vsel %vm1208, %v1213, %v1212
        %vm1215 = vcmp.lt.s32.totalorder %v1177, 0
        %v1216 = vsub.s32 0, %v1177
        %v1217 = vsel %vm1215, %v1216, %v1177
        %v1218 = vshrl.u32 %v1217, 3
        %v1219 = vand.u32 %v1217, 7
        %v1220 = vsub.s32 0, %v1219
        %v1221 = vsel %vm1215, %v1220, %v1219
        %vm1222 = vcmp.lt.s32.totalorder %v1178, 0
        %v1223 = vsub.s32 0, %v1178
        %v1224 = vsel %vm1222, %v1223, %v1178
        %v1225 = vshrl.u32 %v1224, 3
        %v1226 = vand.u32 %v1224, 7
        %v1227 = vsub.s32 0, %v1226
        %v1228 = vsel %vm1222, %v1227, %v1226
        %vm1229 = vcmp.lt.s32.totalorder %v1179, 0
        %v1230 = vsub.s32 0, %v1179
        %v1231 = vsel %vm1229, %v1230, %v1179
        %v1232 = vshrl.u32 %v1231, 3
        %v1233 = vand.u32 %v1231, 7
        %v1234 = vsub.s32 0, %v1233
        %v1235 = vsel %vm1229, %v1234, %v1233
        %vm1236 = vcmp.lt.s32.totalorder %v1180, 0
        %v1237 = vsub.s32 0, %v1180
        %v1238 = vsel %vm1236, %v1237, %v1180
        %v1239 = vshrl.u32 %v1238, 3
        %v1240 = vand.u32 %v1238, 7
        %v1241 = vsub.s32 0, %v1240
        %v1242 = vsel %vm1236, %v1241, %v1240
        %vm1243 = vcmp.lt.s32.totalorder %v1181, 0
        %v1244 = vsub.s32 0, %v1181
        %v1245 = vsel %vm1243, %v1244, %v1181
        %v1246 = vshrl.u32 %v1245, 3
        %v1247 = vand.u32 %v1245, 7
        %v1248 = vsub.s32 0, %v1247
        %v1249 = vsel %vm1243, %v1248, %v1247
        %vm1250 = vcmp.lt.s32.totalorder %v1182, 0
        %v1251 = vsub.s32 0, %v1182
        %v1252 = vsel %vm1250, %v1251, %v1182
        %v1253 = vshrl.u32 %v1252, 3
        %v1254 = vand.u32 %v1252, 7
        %v1255 = vsub.s32 0, %v1254
        %v1256 = vsel %vm1250, %v1255, %v1254
        %vm1257 = vcmp.lt.s32.totalorder %v1183, 0
        %v1258 = vsub.s32 0, %v1183
        %v1259 = vsel %vm1257, %v1258, %v1183
        %v1260 = vshrl.u32 %v1259, 3
        %v1261 = vand.u32 %v1259, 7
        %v1262 = vsub.s32 0, %v1261
        %v1263 = vsel %vm1257, %v1262, %v1261
        %vm1264 = vcmp.lt.s32.totalorder %v1184, 0
        %v1265 = vsub.s32 0, %v1184
        %v1266 = vsel %vm1264, %v1265, %v1184
        %v1267 = vshrl.u32 %v1266, 3
        %v1268 = vand.u32 %v1266, 7
        %v1269 = vsub.s32 0, %v1268
        %v1270 = vsel %vm1264, %v1269, %v1268
        %vm1271 = vcmp.lt.s32.totalorder %v1185, 0
        %v1272 = vsub.s32 0, %v1185
        %v1273 = vsel %vm1271, %v1272, %v1185
        %v1274 = vshrl.u32 %v1273, 3
        %v1275 = vand.u32 %v1273, 7
        %v1276 = vsub.s32 0, %v1275
        %v1277 = vsel %vm1271, %v1276, %v1275
        %vm1278 = vcmp.lt.s32.totalorder %v1186, 0
        %v1279 = vsub.s32 0, %v1186
        %v1280 = vsel %vm1278, %v1279, %v1186
        %v1281 = vshrl.u32 %v1280, 3
        %v1282 = vand.u32 %v1280, 7
        %v1283 = vsub.s32 0, %v1282
        %v1284 = vsel %vm1278, %v1283, %v1282
        %vm1285 = vcmp.lt.s32.totalorder %v1187, 0
        %v1286 = vsub.s32 0, %v1187
        %v1287 = vsel %vm1285, %v1286, %v1187
        %v1288 = vshrl.u32 %v1287, 3
        %v1289 = vand.u32 %v1287, 7
        %v1290 = vsub.s32 0, %v1289
        %v1291 = vsel %vm1285, %v1290, %v1289
        %vm1292 = vcmp.lt.s32.totalorder %v1188, 0
        %v1293 = vsub.s32 0, %v1188
        %v1294 = vsel %vm1292, %v1293, %v1188
        %v1295 = vshrl.u32 %v1294, 3
        %v1296 = vand.u32 %v1294, 7
        %v1297 = vsub.s32 0, %v1296
        %v1298 = vsel %vm1292, %v1297, %v1296
        %vm1299 = vcmp.lt.s32.totalorder %v1189, 0
        %v1300 = vsub.s32 0, %v1189
        %v1301 = vsel %vm1299, %v1300, %v1189
        %v1302 = vshrl.u32 %v1301, 3
        %v1303 = vand.u32 %v1301, 7
        %v1304 = vsub.s32 0, %v1303
        %v1305 = vsel %vm1299, %v1304, %v1303
        %vm1306 = vcmp.lt.s32.totalorder %v1190, 0
        %v1307 = vsub.s32 0, %v1190
        %v1308 = vsel %vm1306, %v1307, %v1190
        %v1309 = vshrl.u32 %v1308, 3
        %v1310 = vand.u32 %v1308, 7
        %v1311 = vsub.s32 0, %v1310
        %v1312 = vsel %vm1306, %v1311, %v1310
        %vm1313 = vcmp.lt.s32.totalorder %v1191, 0
        %v1314 = vsub.s32 0, %v1191
        %v1315 = vsel %vm1313, %v1314, %v1191
        %v1316 = vshrl.u32 %v1315, 3
        %v1317 = vand.u32 %v1315, 7
        %v1318 = vsub.s32 0, %v1317
        %v1319 = vsel %vm1313, %v1318, %v1317
        %vm1320 = vcmp.lt.s32.totalorder %v1192, 0
        %v1321 = vsub.s32 0, %v1192
        %v1322 = vsel %vm1320, %v1321, %v1192
        %v1323 = vshrl.u32 %v1322, 3
        %v1324 = vand.u32 %v1322, 7
        %v1325 = vsub.s32 0, %v1324
        %v1326 = vsel %vm1320, %v1325, %v1324
        %vm1327 = vcmp.lt.s32.totalorder %v1193, 0
        %v1328 = vsub.s32 0, %v1193
        %v1329 = vsel %vm1327, %v1328, %v1193
        %v1330 = vshrl.u32 %v1329, 3
        %v1331 = vand.u32 %v1329, 7
        %v1332 = vsub.s32 0, %v1331
        %v1333 = vsel %vm1327, %v1332, %v1331
        %vm1334 = vcmp.lt.s32.totalorder %v1194, 0
        %v1335 = vsub.s32 0, %v1194
        %v1336 = vsel %vm1334, %v1335, %v1194
        %v1337 = vshrl.u32 %v1336, 3
        %v1338 = vand.u32 %v1336, 7
        %v1339 = vsub.s32 0, %v1338
        %v1340 = vsel %vm1334, %v1339, %v1338
        %vm1341 = vcmp.lt.s32.totalorder %v1195, 0
        %v1342 = vsub.s32 0, %v1195
        %v1343 = vsel %vm1341, %v1342, %v1195
        %v1344 = vshrl.u32 %v1343, 3
        %v1345 = vand.u32 %v1343, 7
        %v1346 = vsub.s32 0, %v1345
        %v1347 = vsel %vm1341, %v1346, %v1345
        %vm1348 = vcmp.lt.s32.totalorder %v1196, 0
        %v1349 = vsub.s32 0, %v1196
        %v1350 = vsel %vm1348, %v1349, %v1196
        %v1351 = vshrl.u32 %v1350, 3
        %v1352 = vand.u32 %v1350, 7
        %v1353 = vsub.s32 0, %v1352
        %v1354 = vsel %vm1348, %v1353, %v1352
        %vm1355 = vcmp.lt.s32.totalorder %v1197, 0
        %v1356 = vsub.s32 0, %v1197
        %v1357 = vsel %vm1355, %v1356, %v1197
        %v1358 = vshrl.u32 %v1357, 3
        %v1359 = vand.u32 %v1357, 7
        %v1360 = vsub.s32 0, %v1359
        %v1361 = vsel %vm1355, %v1360, %v1359
        %vm1362 = vcmp.lt.s32.totalorder %v1198, 0
        %v1363 = vsub.s32 0, %v1198
        %v1364 = vsel %vm1362, %v1363, %v1198
        %v1365 = vshrl.u32 %v1364, 3
        %v1366 = vand.u32 %v1364, 7
        %v1367 = vsub.s32 0, %v1366
        %v1368 = vsel %vm1362, %v1367, %v1366
        %vm1369 = vcmp.lt.s32.totalorder %v1199, 0
        %v1370 = vsub.s32 0, %v1199
        %v1371 = vsel %vm1369, %v1370, %v1199
        %v1372 = vshrl.u32 %v1371, 3
        %v1373 = vand.u32 %v1371, 7
        %v1374 = vsub.s32 0, %v1373
        %v1375 = vsel %vm1369, %v1374, %v1373
        %vm1376 = vcmp.lt.s32.totalorder %v1200, 0
        %v1377 = vsub.s32 0, %v1200
        %v1378 = vsel %vm1376, %v1377, %v1200
        %v1379 = vshrl.u32 %v1378, 3
        %v1380 = vand.u32 %v1378, 7
        %v1381 = vsub.s32 0, %v1380
        %v1382 = vsel %vm1376, %v1381, %v1380
        %vm1383 = vcmp.lt.s32.totalorder %v1201, 0
        %v1384 = vsub.s32 0, %v1201
        %v1385 = vsel %vm1383, %v1384, %v1201
        %v1386 = vshrl.u32 %v1385, 3
        %v1387 = vand.u32 %v1385, 7
        %v1388 = vsub.s32 0, %v1387
        %v1389 = vsel %vm1383, %v1388, %v1387
        %vm1390 = vcmp.lt.s32.totalorder %v1202, 0
        %v1391 = vsub.s32 0, %v1202
        %v1392 = vsel %vm1390, %v1391, %v1202
        %v1393 = vshrl.u32 %v1392, 3
        %v1394 = vand.u32 %v1392, 7
        %v1395 = vsub.s32 0, %v1394
        %v1396 = vsel %vm1390, %v1395, %v1394
        %vm1397 = vcmp.lt.s32.totalorder %v1203, 0
        %v1398 = vsub.s32 0, %v1203
        %v1399 = vsel %vm1397, %v1398, %v1203
        %v1400 = vshrl.u32 %v1399, 3
        %v1401 = vand.u32 %v1399, 7
        %v1402 = vsub.s32 0, %v1401
        %v1403 = vsel %vm1397, %v1402, %v1401
        %vm1404 = vcmp.lt.s32.totalorder %v1204, 0
        %v1405 = vsub.s32 0, %v1204
        %v1406 = vsel %vm1404, %v1405, %v1204
        %v1407 = vshrl.u32 %v1406, 3
        %v1408 = vand.u32 %v1406, 7
        %v1409 = vsub.s32 0, %v1408
        %v1410 = vsel %vm1404, %v1409, %v1408
        %vm1411 = vcmp.lt.s32.totalorder %v1205, 0
        %v1412 = vsub.s32 0, %v1205
        %v1413 = vsel %vm1411, %v1412, %v1205
        %v1414 = vshrl.u32 %v1413, 3
        %v1415 = vand.u32 %v1413, 7
        %v1416 = vsub.s32 0, %v1415
        %v1417 = vsel %vm1411, %v1416, %v1415
        %vm1418 = vcmp.lt.s32.totalorder %v1206, 0
        %v1419 = vsub.s32 0, %v1206
        %v1420 = vsel %vm1418, %v1419, %v1206
        %v1421 = vshrl.u32 %v1420, 3
        %v1422 = vand.u32 %v1420, 7
        %v1423 = vsub.s32 0, %v1422
        %v1424 = vsel %vm1418, %v1423, %v1422
        %vm1425 = vcmp.lt.s32.totalorder %v1207, 0
        %v1426 = vsub.s32 0, %v1207
        %v1427 = vsel %vm1425, %v1426, %v1207
        %v1428 = vshrl.u32 %v1427, 3
        %v1429 = vand.u32 %v1427, 7
        %v1430 = vsub.s32 0, %v1429
        %v1431 = vsel %vm1425, %v1430, %v1429
        %vm1432 = vcmp.ne.s32.totalorder %v1214, 0
        %vm1433 = vcmp.ne.s32.totalorder %v1221, 0
        %vm1434 = vcmp.ne.s32.totalorder %v1228, 0
        %vm1435 = vcmp.ne.s32.totalorder %v1235, 0
        %vm1436 = vcmp.ne.s32.totalorder %v1242, 0
        %vm1437 = vcmp.ne.s32.totalorder %v1249, 0
        %vm1438 = vcmp.ne.s32.totalorder %v1256, 0
        %vm1439 = vcmp.ne.s32.totalorder %v1263, 0
        %vm1440 = vcmp.ne.s32.totalorder %v1270, 0
        %vm1441 = vcmp.ne.s32.totalorder %v1277, 0
        %vm1442 = vcmp.ne.s32.totalorder %v1284, 0
        %vm1443 = vcmp.ne.s32.totalorder %v1291, 0
        %vm1444 = vcmp.ne.s32.totalorder %v1298, 0
        %vm1445 = vcmp.ne.s32.totalorder %v1305, 0
        %vm1446 = vcmp.ne.s32.totalorder %v1312, 0
        %vm1447 = vcmp.ne.s32.totalorder %v1319, 0
        %vm1448 = vcmp.ne.s32.totalorder %v1326, 0
        %vm1449 = vcmp.ne.s32.totalorder %v1333, 0
        %vm1450 = vcmp.ne.s32.totalorder %v1340, 0
        %vm1451 = vcmp.ne.s32.totalorder %v1347, 0
        %vm1452 = vcmp.ne.s32.totalorder %v1354, 0
        %vm1453 = vcmp.ne.s32.totalorder %v1361, 0
        %vm1454 = vcmp.ne.s32.totalorder %v1368, 0
        %vm1455 = vcmp.ne.s32.totalorder %v1375, 0
        %vm1456 = vcmp.ne.s32.totalorder %v1382, 0
        %vm1457 = vcmp.ne.s32.totalorder %v1389, 0
        %vm1458 = vcmp.ne.s32.totalorder %v1396, 0
        %vm1459 = vcmp.ne.s32.totalorder %v1403, 0
        %vm1460 = vcmp.ne.s32.totalorder %v1410, 0
        %vm1461 = vcmp.ne.s32.totalorder %v1417, 0
        %vm1462 = vcmp.ne.s32.totalorder %v1424, 0
        %vm1463 = vcmp.ne.s32.totalorder %v1431, 0
        %vm1464 = vcmp.lt.s32.totalorder %v1214, 0
        %vm1465 = vcmp.lt.s32.totalorder %v1221, 0
        %vm1466 = vcmp.lt.s32.totalorder %v1228, 0
        %vm1467 = vcmp.lt.s32.totalorder %v1235, 0
        %vm1468 = vcmp.lt.s32.totalorder %v1242, 0
        %vm1469 = vcmp.lt.s32.totalorder %v1249, 0
        %vm1470 = vcmp.lt.s32.totalorder %v1256, 0
        %vm1471 = vcmp.lt.s32.totalorder %v1263, 0
        %vm1472 = vcmp.lt.s32.totalorder %v1270, 0
        %vm1473 = vcmp.lt.s32.totalorder %v1277, 0
        %vm1474 = vcmp.lt.s32.totalorder %v1284, 0
        %vm1475 = vcmp.lt.s32.totalorder %v1291, 0
        %vm1476 = vcmp.lt.s32.totalorder %v1298, 0
        %vm1477 = vcmp.lt.s32.totalorder %v1305, 0
        %vm1478 = vcmp.lt.s32.totalorder %v1312, 0
        %vm1479 = vcmp.lt.s32.totalorder %v1319, 0
        %vm1480 = vcmp.lt.s32.totalorder %v1326, 0
        %vm1481 = vcmp.lt.s32.totalorder %v1333, 0
        %vm1482 = vcmp.lt.s32.totalorder %v1340, 0
        %vm1483 = vcmp.lt.s32.totalorder %v1347, 0
        %vm1484 = vcmp.lt.s32.totalorder %v1354, 0
        %vm1485 = vcmp.lt.s32.totalorder %v1361, 0
        %vm1486 = vcmp.lt.s32.totalorder %v1368, 0
        %vm1487 = vcmp.lt.s32.totalorder %v1375, 0
        %vm1488 = vcmp.lt.s32.totalorder %v1382, 0
        %vm1489 = vcmp.lt.s32.totalorder %v1389, 0
        %vm1490 = vcmp.lt.s32.totalorder %v1396, 0
        %vm1491 = vcmp.lt.s32.totalorder %v1403, 0
        %vm1492 = vcmp.lt.s32.totalorder %v1410, 0
        %vm1493 = vcmp.lt.s32.totalorder %v1417, 0
        %vm1494 = vcmp.lt.s32.totalorder %v1424, 0
        %vm1495 = vcmp.lt.s32.totalorder %v1431, 0
        %vm1496 = vmand %vm1464, %vm1432
        %vm1497 = vmand %vm1465, %vm1433
        %vm1498 = vmand %vm1466, %vm1434
        %vm1499 = vmand %vm1467, %vm1435
        %vm1500 = vmand %vm1468, %vm1436
        %vm1501 = vmand %vm1469, %vm1437
        %vm1502 = vmand %vm1470, %vm1438
        %vm1503 = vmand %vm1471, %vm1439
        %vm1504 = vmand %vm1472, %vm1440
        %vm1505 = vmand %vm1473, %vm1441
        %vm1506 = vmand %vm1474, %vm1442
        %vm1507 = vmand %vm1475, %vm1443
        %vm1508 = vmand %vm1476, %vm1444
        %vm1509 = vmand %vm1477, %vm1445
        %vm1510 = vmand %vm1478, %vm1446
        %vm1511 = vmand %vm1479, %vm1447
        %vm1512 = vmand %vm1480, %vm1448
        %vm1513 = vmand %vm1481, %vm1449
        %vm1514 = vmand %vm1482, %vm1450
        %vm1515 = vmand %vm1483, %vm1451
        %vm1516 = vmand %vm1484, %vm1452
        %vm1517 = vmand %vm1485, %vm1453
        %vm1518 = vmand %vm1486, %vm1454
        %vm1519 = vmand %vm1487, %vm1455
        %vm1520 = vmand %vm1488, %vm1456
        %vm1521 = vmand %vm1489, %vm1457
        %vm1522 = vmand %vm1490, %vm1458
        %vm1523 = vmand %vm1491, %vm1459
        %vm1524 = vmand %vm1492, %vm1460
        %vm1525 = vmand %vm1493, %vm1461
        %vm1526 = vmand %vm1494, %vm1462
        %vm1527 = vmand %vm1495, %vm1463
        %v1528 = vadd.s32 %v1214, 8
        %v1529 = vadd.s32 %v1221, 8
        %v1530 = vadd.s32 %v1228, 8
        %v1531 = vadd.s32 %v1235, 8
        %v1532 = vadd.s32 %v1242, 8
        %v1533 = vadd.s32 %v1249, 8
        %v1534 = vadd.s32 %v1256, 8
        %v1535 = vadd.s32 %v1263, 8
        %v1536 = vadd.s32 %v1270, 8
        %v1537 = vadd.s32 %v1277, 8
        %v1538 = vadd.s32 %v1284, 8
        %v1539 = vadd.s32 %v1291, 8
        %v1540 = vadd.s32 %v1298, 8
        %v1541 = vadd.s32 %v1305, 8
        %v1542 = vadd.s32 %v1312, 8
        %v1543 = vadd.s32 %v1319, 8
        %v1544 = vadd.s32 %v1326, 8
        %v1545 = vadd.s32 %v1333, 8
        %v1546 = vadd.s32 %v1340, 8
        %v1547 = vadd.s32 %v1347, 8
        %v1548 = vadd.s32 %v1354, 8
        %v1549 = vadd.s32 %v1361, 8
        %v1550 = vadd.s32 %v1368, 8
        %v1551 = vadd.s32 %v1375, 8
        %v1552 = vadd.s32 %v1382, 8
        %v1553 = vadd.s32 %v1389, 8
        %v1554 = vadd.s32 %v1396, 8
        %v1555 = vadd.s32 %v1403, 8
        %v1556 = vadd.s32 %v1410, 8
        %v1557 = vadd.s32 %v1417, 8
        %v1558 = vadd.s32 %v1424, 8
        %v1559 = vadd.s32 %v1431, 8
        %v1560 = vsel %vm1496, %v1528, %v1214
        %v1561 = vsel %vm1497, %v1529, %v1221
        %v1562 = vsel %vm1498, %v1530, %v1228
        %v1563 = vsel %vm1499, %v1531, %v1235
        %v1564 = vsel %vm1500, %v1532, %v1242
        %v1565 = vsel %vm1501, %v1533, %v1249
        %v1566 = vsel %vm1502, %v1534, %v1256
        %v1567 = vsel %vm1503, %v1535, %v1263
        %v1568 = vsel %vm1504, %v1536, %v1270
        %v1569 = vsel %vm1505, %v1537, %v1277
        %v1570 = vsel %vm1506, %v1538, %v1284
        %v1571 = vsel %vm1507, %v1539, %v1291
        %v1572 = vsel %vm1508, %v1540, %v1298
        %v1573 = vsel %vm1509, %v1541, %v1305
        %v1574 = vsel %vm1510, %v1542, %v1312
        %v1575 = vsel %vm1511, %v1543, %v1319
        %v1576 = vsel %vm1512, %v1544, %v1326
        %v1577 = vsel %vm1513, %v1545, %v1333
        %v1578 = vsel %vm1514, %v1546, %v1340
        %v1579 = vsel %vm1515, %v1547, %v1347
        %v1580 = vsel %vm1516, %v1548, %v1354
        %v1581 = vsel %vm1517, %v1549, %v1361
        %v1582 = vsel %vm1518, %v1550, %v1368
        %v1583 = vsel %vm1519, %v1551, %v1375
        %v1584 = vsel %vm1520, %v1552, %v1382
        %v1585 = vsel %vm1521, %v1553, %v1389
        %v1586 = vsel %vm1522, %v1554, %v1396
        %v1587 = vsel %vm1523, %v1555, %v1403
        %v1588 = vsel %vm1524, %v1556, %v1410
        %v1589 = vsel %vm1525, %v1557, %v1417
        %v1590 = vsel %vm1526, %v1558, %v1424
        %v1591 = vsel %vm1527, %v1559, %v1431
        %vm1592 = vcmp.eq.s32.totalorder %v1560, 0
        %vm1593 = vcmp.eq.s32.totalorder %v1561, 0
        %vm1594 = vcmp.eq.s32.totalorder %v1562, 0
        %vm1595 = vcmp.eq.s32.totalorder %v1563, 0
        %vm1596 = vcmp.eq.s32.totalorder %v1564, 0
        %vm1597 = vcmp.eq.s32.totalorder %v1565, 0
        %vm1598 = vcmp.eq.s32.totalorder %v1566, 0
        %vm1599 = vcmp.eq.s32.totalorder %v1567, 0
        %vm1600 = vcmp.eq.s32.totalorder %v1568, 0
        %vm1601 = vcmp.eq.s32.totalorder %v1569, 0
        %vm1602 = vcmp.eq.s32.totalorder %v1570, 0
        %vm1603 = vcmp.eq.s32.totalorder %v1571, 0
        %vm1604 = vcmp.eq.s32.totalorder %v1572, 0
        %vm1605 = vcmp.eq.s32.totalorder %v1573, 0
        %vm1606 = vcmp.eq.s32.totalorder %v1574, 0
        %vm1607 = vcmp.eq.s32.totalorder %v1575, 0
        %vm1608 = vcmp.eq.s32.totalorder %v1576, 0
        %vm1609 = vcmp.eq.s32.totalorder %v1577, 0
        %vm1610 = vcmp.eq.s32.totalorder %v1578, 0
        %vm1611 = vcmp.eq.s32.totalorder %v1579, 0
        %vm1612 = vcmp.eq.s32.totalorder %v1580, 0
        %vm1613 = vcmp.eq.s32.totalorder %v1581, 0
        %vm1614 = vcmp.eq.s32.totalorder %v1582, 0
        %vm1615 = vcmp.eq.s32.totalorder %v1583, 0
        %vm1616 = vcmp.eq.s32.totalorder %v1584, 0
        %vm1617 = vcmp.eq.s32.totalorder %v1585, 0
        %vm1618 = vcmp.eq.s32.totalorder %v1586, 0
        %vm1619 = vcmp.eq.s32.totalorder %v1587, 0
        %vm1620 = vcmp.eq.s32.totalorder %v1588, 0
        %vm1621 = vcmp.eq.s32.totalorder %v1589, 0
        %vm1622 = vcmp.eq.s32.totalorder %v1590, 0
        %vm1623 = vcmp.eq.s32.totalorder %v1591, 0
        %v1624 = vrot.slane %v1111, 7
        %v1625 = vrot.slane %v1112, 7
        %v1626 = vrot.slane %v1113, 7
        %v1627 = vrot.slane %v1114, 7
        %v1628 = vrot.slane %v1115, 7
        %v1629 = vrot.slane %v1116, 7
        %v1630 = vrot.slane %v1117, 7
        %v1631 = vrot.slane %v1118, 7
        %v1632 = vrot.slane %v1119, 7
        %v1633 = vrot.slane %v1120, 7
        %v1634 = vrot.slane %v1121, 7
        %v1635 = vrot.slane %v1122, 7
        %v1636 = vrot.slane %v1123, 7
        %v1637 = vrot.slane %v1124, 7
        %v1638 = vrot.slane %v1125, 7
        %v1639 = vrot.slane %v1126, 7
        %v1640 = vrot.slane %v1127, 7
        %v1641 = vrot.slane %v1128, 7
        %v1642 = vrot.slane %v1129, 7
        %v1643 = vrot.slane %v1130, 7
        %v1644 = vrot.slane %v1131, 7
        %v1645 = vrot.slane %v1132, 7
        %v1646 = vrot.slane %v1133, 7
        %v1647 = vrot.slane %v1134, 7
        %v1648 = vrot.slane %v1135, 7
        %v1649 = vrot.slane %v1136, 7
        %v1650 = vrot.slane %v1137, 7
        %v1651 = vrot.slane %v1138, 7
        %v1652 = vrot.slane %v1139, 7
        %v1653 = vrot.slane %v1140, 7
        %v1654 = vrot.slane %v1141, 7
        %v1655 = vrot.slane %v1142, 7
        %v1656 = vrot.slane %v1143, 7
        %v1657 = vrot.slane %v1144, 7
        %v1658 = vrot.slane %v1145, 7
        %v1659 = vrot.slane %v1146, 7
        %v1660 = vrot.slane %v1147, 7
        %v1661 = vrot.slane %v1148, 7
        %v1662 = vrot.slane %v1149, 7
        %v1663 = vrot.slane %v1150, 7
        %v1664 = vrot.slane %v1151, 7
        %v1665 = vrot.slane %v1152, 7
        %v1666 = vrot.slane %v1153, 7
        %v1667 = vrot.slane %v1154, 7
        %v1668 = vrot.slane %v1155, 7
        %v1669 = vrot.slane %v1156, 7
        %v1670 = vrot.slane %v1157, 7
        %v1671 = vrot.slane %v1158, 7
        %v1672 = vrot.slane %v1159, 7
        %v1673 = vrot.slane %v1160, 7
        %v1674 = vrot.slane %v1161, 7
        %v1675 = vrot.slane %v1162, 7
        %v1676 = vrot.slane %v1163, 7
        %v1677 = vrot.slane %v1164, 7
        %v1678 = vrot.slane %v1165, 7
        %v1679 = vrot.slane %v1166, 7
        %v1680 = vrot.slane %v1167, 7
        %v1681 = vrot.slane %v1168, 7
        %v1682 = vrot.slane %v1169, 7
        %v1683 = vrot.slane %v1170, 7
        %v1684 = vrot.slane %v1171, 7
        %v1685 = vrot.slane %v1172, 7
        %v1686 = vrot.slane %v1173, 7
        %v1687 = vrot.slane %v1174, 7
        %vm1688 = vcmp.lt.s32.totalorder %v1176, 1
        %v1689 = vsel %vm1688, %v1684, %v1686
        %v1690 = vsel %vm1688, %v1685, %v1687
        %v1691 = vsel %vm1688, %v1682, %v1684
        %v1692 = vsel %vm1688, %v1683, %v1685
        %v1693 = vsel %vm1688, %v1680, %v1682
        %v1694 = vsel %vm1688, %v1681, %v1683
        %v1695 = vsel %vm1688, %v1678, %v1680
        %v1696 = vsel %vm1688, %v1679, %v1681
        %v1697 = vsel %vm1688, %v1676, %v1678
        %v1698 = vsel %vm1688, %v1677, %v1679
        %v1699 = vsel %vm1688, %v1674, %v1676
        %v1700 = vsel %vm1688, %v1675, %v1677
        %v1701 = vsel %vm1688, %v1672, %v1674
        %v1702 = vsel %vm1688, %v1673, %v1675
        %v1703 = vsel %vm1688, %v1670, %v1672
        %v1704 = vsel %vm1688, %v1671, %v1673
        %v1705 = vsel %vm1688, %v1668, %v1670
        %v1706 = vsel %vm1688, %v1669, %v1671
        %v1707 = vsel %vm1688, %v1666, %v1668
        %v1708 = vsel %vm1688, %v1667, %v1669
        %v1709 = vsel %vm1688, %v1664, %v1666
        %v1710 = vsel %vm1688, %v1665, %v1667
        %v1711 = vsel %vm1688, %v1662, %v1664
        %v1712 = vsel %vm1688, %v1663, %v1665
        %v1713 = vsel %vm1688, %v1660, %v1662
        %v1714 = vsel %vm1688, %v1661, %v1663
        %v1715 = vsel %vm1688, %v1658, %v1660
        %v1716 = vsel %vm1688, %v1659, %v1661
        %v1717 = vsel %vm1688, %v1656, %v1658
        %v1718 = vsel %vm1688, %v1657, %v1659
        %v1719 = vsel %vm1688, %v1654, %v1656
        %v1720 = vsel %vm1688, %v1655, %v1657
        %v1721 = vsel %vm1688, %v1652, %v1654
        %v1722 = vsel %vm1688, %v1653, %v1655
        %v1723 = vsel %vm1688, %v1650, %v1652
        %v1724 = vsel %vm1688, %v1651, %v1653
        %v1725 = vsel %vm1688, %v1648, %v1650
        %v1726 = vsel %vm1688, %v1649, %v1651
        %v1727 = vsel %vm1688, %v1646, %v1648
        %v1728 = vsel %vm1688, %v1647, %v1649
        %v1729 = vsel %vm1688, %v1644, %v1646
        %v1730 = vsel %vm1688, %v1645, %v1647
        %v1731 = vsel %vm1688, %v1642, %v1644
        %v1732 = vsel %vm1688, %v1643, %v1645
        %v1733 = vsel %vm1688, %v1640, %v1642
        %v1734 = vsel %vm1688, %v1641, %v1643
        %v1735 = vsel %vm1688, %v1638, %v1640
        %v1736 = vsel %vm1688, %v1639, %v1641
        %v1737 = vsel %vm1688, %v1636, %v1638
        %v1738 = vsel %vm1688, %v1637, %v1639
        %v1739 = vsel %vm1688, %v1634, %v1636
        %v1740 = vsel %vm1688, %v1635, %v1637
        %v1741 = vsel %vm1688, %v1632, %v1634
        %v1742 = vsel %vm1688, %v1633, %v1635
        %v1743 = vsel %vm1688, %v1630, %v1632
        %v1744 = vsel %vm1688, %v1631, %v1633
        %v1745 = vsel %vm1688, %v1628, %v1630
        %v1746 = vsel %vm1688, %v1629, %v1631
        %v1747 = vsel %vm1688, %v1626, %v1628
        %v1748 = vsel %vm1688, %v1627, %v1629
        %v1749 = vsel %vm1688, %v1624, %v1626
        %v1750 = vsel %vm1688, %v1625, %v1627
        %v1751 = vsel %vm1688, %v1686, %v1624
        %v1752 = vsel %vm1688, %v1687, %v1625
        %v1753 = vsel %vm1592, 0.0, %v1751
        %v1754 = vsel %vm1592, 0.0, %v1752
        %v1755 = vsel %vm1593, 0.0, %v1749
        %v1756 = vsel %vm1593, 0.0, %v1750
        %v1757 = vsel %vm1594, 0.0, %v1747
        %v1758 = vsel %vm1594, 0.0, %v1748
        %v1759 = vsel %vm1595, 0.0, %v1745
        %v1760 = vsel %vm1595, 0.0, %v1746
        %v1761 = vsel %vm1596, 0.0, %v1743
        %v1762 = vsel %vm1596, 0.0, %v1744
        %v1763 = vsel %vm1597, 0.0, %v1741
        %v1764 = vsel %vm1597, 0.0, %v1742
        %v1765 = vsel %vm1598, 0.0, %v1739
        %v1766 = vsel %vm1598, 0.0, %v1740
        %v1767 = vsel %vm1599, 0.0, %v1737
        %v1768 = vsel %vm1599, 0.0, %v1738
        %v1769 = vsel %vm1600, 0.0, %v1735
        %v1770 = vsel %vm1600, 0.0, %v1736
        %v1771 = vsel %vm1601, 0.0, %v1733
        %v1772 = vsel %vm1601, 0.0, %v1734
        %v1773 = vsel %vm1602, 0.0, %v1731
        %v1774 = vsel %vm1602, 0.0, %v1732
        %v1775 = vsel %vm1603, 0.0, %v1729
        %v1776 = vsel %vm1603, 0.0, %v1730
        %v1777 = vsel %vm1604, 0.0, %v1727
        %v1778 = vsel %vm1604, 0.0, %v1728
        %v1779 = vsel %vm1605, 0.0, %v1725
        %v1780 = vsel %vm1605, 0.0, %v1726
        %v1781 = vsel %vm1606, 0.0, %v1723
        %v1782 = vsel %vm1606, 0.0, %v1724
        %v1783 = vsel %vm1607, 0.0, %v1721
        %v1784 = vsel %vm1607, 0.0, %v1722
        %v1785 = vsel %vm1608, 0.0, %v1719
        %v1786 = vsel %vm1608, 0.0, %v1720
        %v1787 = vsel %vm1609, 0.0, %v1717
        %v1788 = vsel %vm1609, 0.0, %v1718
        %v1789 = vsel %vm1610, 0.0, %v1715
        %v1790 = vsel %vm1610, 0.0, %v1716
        %v1791 = vsel %vm1611, 0.0, %v1713
        %v1792 = vsel %vm1611, 0.0, %v1714
        %v1793 = vsel %vm1612, 0.0, %v1711
        %v1794 = vsel %vm1612, 0.0, %v1712
        %v1795 = vsel %vm1613, 0.0, %v1709
        %v1796 = vsel %vm1613, 0.0, %v1710
        %v1797 = vsel %vm1614, 0.0, %v1707
        %v1798 = vsel %vm1614, 0.0, %v1708
        %v1799 = vsel %vm1615, 0.0, %v1705
        %v1800 = vsel %vm1615, 0.0, %v1706
        %v1801 = vsel %vm1616, 0.0, %v1703
        %v1802 = vsel %vm1616, 0.0, %v1704
        %v1803 = vsel %vm1617, 0.0, %v1701
        %v1804 = vsel %vm1617, 0.0, %v1702
        %v1805 = vsel %vm1618, 0.0, %v1699
        %v1806 = vsel %vm1618, 0.0, %v1700
        %v1807 = vsel %vm1619, 0.0, %v1697
        %v1808 = vsel %vm1619, 0.0, %v1698
        %v1809 = vsel %vm1620, 0.0, %v1695
        %v1810 = vsel %vm1620, 0.0, %v1696
        %v1811 = vsel %vm1621, 0.0, %v1693
        %v1812 = vsel %vm1621, 0.0, %v1694
        %v1813 = vsel %vm1622, 0.0, %v1691
        %v1814 = vsel %vm1622, 0.0, %v1692
        %v1815 = vsel %vm1623, 0.0, %v1689
        %v1816 = vsel %vm1623, 0.0, %v1690
        %vm1817 = vcmp.eq.s32.totalorder %v1560, 7
        %vm1818 = vcmp.eq.s32.totalorder %v1561, 7
        %vm1819 = vcmp.eq.s32.totalorder %v1562, 7
        %vm1820 = vcmp.eq.s32.totalorder %v1563, 7
        %vm1821 = vcmp.eq.s32.totalorder %v1564, 7
        %vm1822 = vcmp.eq.s32.totalorder %v1565, 7
        %vm1823 = vcmp.eq.s32.totalorder %v1566, 7
        %vm1824 = vcmp.eq.s32.totalorder %v1567, 7
        %vm1825 = vcmp.eq.s32.totalorder %v1568, 7
        %vm1826 = vcmp.eq.s32.totalorder %v1569, 7
        %vm1827 = vcmp.eq.s32.totalorder %v1570, 7
        %vm1828 = vcmp.eq.s32.totalorder %v1571, 7
        %vm1829 = vcmp.eq.s32.totalorder %v1572, 7
        %vm1830 = vcmp.eq.s32.totalorder %v1573, 7
        %vm1831 = vcmp.eq.s32.totalorder %v1574, 7
        %vm1832 = vcmp.eq.s32.totalorder %v1575, 7
        %vm1833 = vcmp.eq.s32.totalorder %v1576, 7
        %vm1834 = vcmp.eq.s32.totalorder %v1577, 7
        %vm1835 = vcmp.eq.s32.totalorder %v1578, 7
        %vm1836 = vcmp.eq.s32.totalorder %v1579, 7
        %vm1837 = vcmp.eq.s32.totalorder %v1580, 7
        %vm1838 = vcmp.eq.s32.totalorder %v1581, 7
        %vm1839 = vcmp.eq.s32.totalorder %v1582, 7
        %vm1840 = vcmp.eq.s32.totalorder %v1583, 7
        %vm1841 = vcmp.eq.s32.totalorder %v1584, 7
        %vm1842 = vcmp.eq.s32.totalorder %v1585, 7
        %vm1843 = vcmp.eq.s32.totalorder %v1586, 7
        %vm1844 = vcmp.eq.s32.totalorder %v1587, 7
        %vm1845 = vcmp.eq.s32.totalorder %v1588, 7
        %vm1846 = vcmp.eq.s32.totalorder %v1589, 7
        %vm1847 = vcmp.eq.s32.totalorder %v1590, 7
        %vm1848 = vcmp.eq.s32.totalorder %v1591, 7
        %v1849 = vrot.slane %v1111, 1
        %v1850 = vrot.slane %v1112, 1
        %v1851 = vrot.slane %v1113, 1
        %v1852 = vrot.slane %v1114, 1
        %v1853 = vrot.slane %v1115, 1
        %v1854 = vrot.slane %v1116, 1
        %v1855 = vrot.slane %v1117, 1
        %v1856 = vrot.slane %v1118, 1
        %v1857 = vrot.slane %v1119, 1
        %v1858 = vrot.slane %v1120, 1
        %v1859 = vrot.slane %v1121, 1
        %v1860 = vrot.slane %v1122, 1
        %v1861 = vrot.slane %v1123, 1
        %v1862 = vrot.slane %v1124, 1
        %v1863 = vrot.slane %v1125, 1
        %v1864 = vrot.slane %v1126, 1
        %v1865 = vrot.slane %v1127, 1
        %v1866 = vrot.slane %v1128, 1
        %v1867 = vrot.slane %v1129, 1
        %v1868 = vrot.slane %v1130, 1
        %v1869 = vrot.slane %v1131, 1
        %v1870 = vrot.slane %v1132, 1
        %v1871 = vrot.slane %v1133, 1
        %v1872 = vrot.slane %v1134, 1
        %v1873 = vrot.slane %v1135, 1
        %v1874 = vrot.slane %v1136, 1
        %v1875 = vrot.slane %v1137, 1
        %v1876 = vrot.slane %v1138, 1
        %v1877 = vrot.slane %v1139, 1
        %v1878 = vrot.slane %v1140, 1
        %v1879 = vrot.slane %v1141, 1
        %v1880 = vrot.slane %v1142, 1
        %v1881 = vrot.slane %v1143, 1
        %v1882 = vrot.slane %v1144, 1
        %v1883 = vrot.slane %v1145, 1
        %v1884 = vrot.slane %v1146, 1
        %v1885 = vrot.slane %v1147, 1
        %v1886 = vrot.slane %v1148, 1
        %v1887 = vrot.slane %v1149, 1
        %v1888 = vrot.slane %v1150, 1
        %v1889 = vrot.slane %v1151, 1
        %v1890 = vrot.slane %v1152, 1
        %v1891 = vrot.slane %v1153, 1
        %v1892 = vrot.slane %v1154, 1
        %v1893 = vrot.slane %v1155, 1
        %v1894 = vrot.slane %v1156, 1
        %v1895 = vrot.slane %v1157, 1
        %v1896 = vrot.slane %v1158, 1
        %v1897 = vrot.slane %v1159, 1
        %v1898 = vrot.slane %v1160, 1
        %v1899 = vrot.slane %v1161, 1
        %v1900 = vrot.slane %v1162, 1
        %v1901 = vrot.slane %v1163, 1
        %v1902 = vrot.slane %v1164, 1
        %v1903 = vrot.slane %v1165, 1
        %v1904 = vrot.slane %v1166, 1
        %v1905 = vrot.slane %v1167, 1
        %v1906 = vrot.slane %v1168, 1
        %v1907 = vrot.slane %v1169, 1
        %v1908 = vrot.slane %v1170, 1
        %v1909 = vrot.slane %v1171, 1
        %v1910 = vrot.slane %v1172, 1
        %v1911 = vrot.slane %v1173, 1
        %v1912 = vrot.slane %v1174, 1
        %vm1913 = vcmp.lt.s32.totalorder %v1176, 7
        %v1914 = vsel %vm1913, %v1909, %v1911
        %v1915 = vsel %vm1913, %v1910, %v1912
        %v1916 = vsel %vm1913, %v1907, %v1909
        %v1917 = vsel %vm1913, %v1908, %v1910
        %v1918 = vsel %vm1913, %v1905, %v1907
        %v1919 = vsel %vm1913, %v1906, %v1908
        %v1920 = vsel %vm1913, %v1903, %v1905
        %v1921 = vsel %vm1913, %v1904, %v1906
        %v1922 = vsel %vm1913, %v1901, %v1903
        %v1923 = vsel %vm1913, %v1902, %v1904
        %v1924 = vsel %vm1913, %v1899, %v1901
        %v1925 = vsel %vm1913, %v1900, %v1902
        %v1926 = vsel %vm1913, %v1897, %v1899
        %v1927 = vsel %vm1913, %v1898, %v1900
        %v1928 = vsel %vm1913, %v1895, %v1897
        %v1929 = vsel %vm1913, %v1896, %v1898
        %v1930 = vsel %vm1913, %v1893, %v1895
        %v1931 = vsel %vm1913, %v1894, %v1896
        %v1932 = vsel %vm1913, %v1891, %v1893
        %v1933 = vsel %vm1913, %v1892, %v1894
        %v1934 = vsel %vm1913, %v1889, %v1891
        %v1935 = vsel %vm1913, %v1890, %v1892
        %v1936 = vsel %vm1913, %v1887, %v1889
        %v1937 = vsel %vm1913, %v1888, %v1890
        %v1938 = vsel %vm1913, %v1885, %v1887
        %v1939 = vsel %vm1913, %v1886, %v1888
        %v1940 = vsel %vm1913, %v1883, %v1885
        %v1941 = vsel %vm1913, %v1884, %v1886
        %v1942 = vsel %vm1913, %v1881, %v1883
        %v1943 = vsel %vm1913, %v1882, %v1884
        %v1944 = vsel %vm1913, %v1879, %v1881
        %v1945 = vsel %vm1913, %v1880, %v1882
        %v1946 = vsel %vm1913, %v1877, %v1879
        %v1947 = vsel %vm1913, %v1878, %v1880
        %v1948 = vsel %vm1913, %v1875, %v1877
        %v1949 = vsel %vm1913, %v1876, %v1878
        %v1950 = vsel %vm1913, %v1873, %v1875
        %v1951 = vsel %vm1913, %v1874, %v1876
        %v1952 = vsel %vm1913, %v1871, %v1873
        %v1953 = vsel %vm1913, %v1872, %v1874
        %v1954 = vsel %vm1913, %v1869, %v1871
        %v1955 = vsel %vm1913, %v1870, %v1872
        %v1956 = vsel %vm1913, %v1867, %v1869
        %v1957 = vsel %vm1913, %v1868, %v1870
        %v1958 = vsel %vm1913, %v1865, %v1867
        %v1959 = vsel %vm1913, %v1866, %v1868
        %v1960 = vsel %vm1913, %v1863, %v1865
        %v1961 = vsel %vm1913, %v1864, %v1866
        %v1962 = vsel %vm1913, %v1861, %v1863
        %v1963 = vsel %vm1913, %v1862, %v1864
        %v1964 = vsel %vm1913, %v1859, %v1861
        %v1965 = vsel %vm1913, %v1860, %v1862
        %v1966 = vsel %vm1913, %v1857, %v1859
        %v1967 = vsel %vm1913, %v1858, %v1860
        %v1968 = vsel %vm1913, %v1855, %v1857
        %v1969 = vsel %vm1913, %v1856, %v1858
        %v1970 = vsel %vm1913, %v1853, %v1855
        %v1971 = vsel %vm1913, %v1854, %v1856
        %v1972 = vsel %vm1913, %v1851, %v1853
        %v1973 = vsel %vm1913, %v1852, %v1854
        %v1974 = vsel %vm1913, %v1849, %v1851
        %v1975 = vsel %vm1913, %v1850, %v1852
        %v1976 = vsel %vm1913, %v1911, %v1849
        %v1977 = vsel %vm1913, %v1912, %v1850
        %v1978 = vsel %vm1817, 0.0, %v1974
        %v1979 = vsel %vm1817, 0.0, %v1975
        %v1980 = vsel %vm1818, 0.0, %v1972
        %v1981 = vsel %vm1818, 0.0, %v1973
        %v1982 = vsel %vm1819, 0.0, %v1970
        %v1983 = vsel %vm1819, 0.0, %v1971
        %v1984 = vsel %vm1820, 0.0, %v1968
        %v1985 = vsel %vm1820, 0.0, %v1969
        %v1986 = vsel %vm1821, 0.0, %v1966
        %v1987 = vsel %vm1821, 0.0, %v1967
        %v1988 = vsel %vm1822, 0.0, %v1964
        %v1989 = vsel %vm1822, 0.0, %v1965
        %v1990 = vsel %vm1823, 0.0, %v1962
        %v1991 = vsel %vm1823, 0.0, %v1963
        %v1992 = vsel %vm1824, 0.0, %v1960
        %v1993 = vsel %vm1824, 0.0, %v1961
        %v1994 = vsel %vm1825, 0.0, %v1958
        %v1995 = vsel %vm1825, 0.0, %v1959
        %v1996 = vsel %vm1826, 0.0, %v1956
        %v1997 = vsel %vm1826, 0.0, %v1957
        %v1998 = vsel %vm1827, 0.0, %v1954
        %v1999 = vsel %vm1827, 0.0, %v1955
        %v2000 = vsel %vm1828, 0.0, %v1952
        %v2001 = vsel %vm1828, 0.0, %v1953
        %v2002 = vsel %vm1829, 0.0, %v1950
        %v2003 = vsel %vm1829, 0.0, %v1951
        %v2004 = vsel %vm1830, 0.0, %v1948
        %v2005 = vsel %vm1830, 0.0, %v1949
        %v2006 = vsel %vm1831, 0.0, %v1946
        %v2007 = vsel %vm1831, 0.0, %v1947
        %v2008 = vsel %vm1832, 0.0, %v1944
        %v2009 = vsel %vm1832, 0.0, %v1945
        %v2010 = vsel %vm1833, 0.0, %v1942
        %v2011 = vsel %vm1833, 0.0, %v1943
        %v2012 = vsel %vm1834, 0.0, %v1940
        %v2013 = vsel %vm1834, 0.0, %v1941
        %v2014 = vsel %vm1835, 0.0, %v1938
        %v2015 = vsel %vm1835, 0.0, %v1939
        %v2016 = vsel %vm1836, 0.0, %v1936
        %v2017 = vsel %vm1836, 0.0, %v1937
        %v2018 = vsel %vm1837, 0.0, %v1934
        %v2019 = vsel %vm1837, 0.0, %v1935
        %v2020 = vsel %vm1838, 0.0, %v1932
        %v2021 = vsel %vm1838, 0.0, %v1933
        %v2022 = vsel %vm1839, 0.0, %v1930
        %v2023 = vsel %vm1839, 0.0, %v1931
        %v2024 = vsel %vm1840, 0.0, %v1928
        %v2025 = vsel %vm1840, 0.0, %v1929
        %v2026 = vsel %vm1841, 0.0, %v1926
        %v2027 = vsel %vm1841, 0.0, %v1927
        %v2028 = vsel %vm1842, 0.0, %v1924
        %v2029 = vsel %vm1842, 0.0, %v1925
        %v2030 = vsel %vm1843, 0.0, %v1922
        %v2031 = vsel %vm1843, 0.0, %v1923
        %v2032 = vsel %vm1844, 0.0, %v1920
        %v2033 = vsel %vm1844, 0.0, %v1921
        %v2034 = vsel %vm1845, 0.0, %v1918
        %v2035 = vsel %vm1845, 0.0, %v1919
        %v2036 = vsel %vm1846, 0.0, %v1916
        %v2037 = vsel %vm1846, 0.0, %v1917
        %v2038 = vsel %vm1847, 0.0, %v1914
        %v2039 = vsel %vm1847, 0.0, %v1915
        %v2040 = vsel %vm1848, 0.0, %v1976
        %v2041 = vsel %vm1848, 0.0, %v1977
        %v2042 = vpack.c.bf16 %v1755, %v1753
        %v2043 = vpack.c.bf16 %v1756, %v1754
        %v2044 = vpack.c.bf16 %v1113, %v1111
        %v2045 = vpack.c.bf16 %v1114, %v1112
        %v2046 = vpack.c.bf16 %v1980, %v1978
        %v2047 = vpack.c.bf16 %v1981, %v1979
        %v2048 = vpack.c.bf16 %v1759, %v1757
        %v2049 = vpack.c.bf16 %v1760, %v1758
        %v2050 = vpack.c.bf16 %v1117, %v1115
        %v2051 = vpack.c.bf16 %v1118, %v1116
        %v2052 = vpack.c.bf16 %v1984, %v1982
        %v2053 = vpack.c.bf16 %v1985, %v1983
        %v2054 = vpack.c.bf16 %v1763, %v1761
        %v2055 = vpack.c.bf16 %v1764, %v1762
        %v2056 = vpack.c.bf16 %v1121, %v1119
        %v2057 = vpack.c.bf16 %v1122, %v1120
        %v2058 = vpack.c.bf16 %v1988, %v1986
        %v2059 = vpack.c.bf16 %v1989, %v1987
        %v2060 = vpack.c.bf16 %v1767, %v1765
        %v2061 = vpack.c.bf16 %v1768, %v1766
        %v2062 = vpack.c.bf16 %v1125, %v1123
        %v2063 = vpack.c.bf16 %v1126, %v1124
        %v2064 = vpack.c.bf16 %v1992, %v1990
        %v2065 = vpack.c.bf16 %v1993, %v1991
        %v2066 = vpack.c.bf16 %v1771, %v1769
        %v2067 = vpack.c.bf16 %v1772, %v1770
        %v2068 = vpack.c.bf16 %v1129, %v1127
        %v2069 = vpack.c.bf16 %v1130, %v1128
        %v2070 = vpack.c.bf16 %v1996, %v1994
        %v2071 = vpack.c.bf16 %v1997, %v1995
        %v2072 = vpack.c.bf16 %v1775, %v1773
        %v2073 = vpack.c.bf16 %v1776, %v1774
        %v2074 = vpack.c.bf16 %v1133, %v1131
        %v2075 = vpack.c.bf16 %v1134, %v1132
        %v2076 = vpack.c.bf16 %v2000, %v1998
        %v2077 = vpack.c.bf16 %v2001, %v1999
        %v2078 = vpack.c.bf16 %v1779, %v1777
        %v2079 = vpack.c.bf16 %v1780, %v1778
        %v2080 = vpack.c.bf16 %v1137, %v1135
        %v2081 = vpack.c.bf16 %v1138, %v1136
        %v2082 = vpack.c.bf16 %v2004, %v2002
        %v2083 = vpack.c.bf16 %v2005, %v2003
        %v2084 = vpack.c.bf16 %v1783, %v1781
        %v2085 = vpack.c.bf16 %v1784, %v1782
        %v2086 = vpack.c.bf16 %v1141, %v1139
        %v2087 = vpack.c.bf16 %v1142, %v1140
        %v2088 = vpack.c.bf16 %v2008, %v2006
        %v2089 = vpack.c.bf16 %v2009, %v2007
        %v2090 = vpack.c.bf16 %v1787, %v1785
        %v2091 = vpack.c.bf16 %v1788, %v1786
        %v2092 = vpack.c.bf16 %v1145, %v1143
        %v2093 = vpack.c.bf16 %v1146, %v1144
        %v2094 = vpack.c.bf16 %v2012, %v2010
        %v2095 = vpack.c.bf16 %v2013, %v2011
        %v2096 = vpack.c.bf16 %v1791, %v1789
        %v2097 = vpack.c.bf16 %v1792, %v1790
        %v2098 = vpack.c.bf16 %v1149, %v1147
        %v2099 = vpack.c.bf16 %v1150, %v1148
        %v2100 = vpack.c.bf16 %v2016, %v2014
        %v2101 = vpack.c.bf16 %v2017, %v2015
        %v2102 = vpack.c.bf16 %v1795, %v1793
        %v2103 = vpack.c.bf16 %v1796, %v1794
        %v2104 = vpack.c.bf16 %v1153, %v1151
        %v2105 = vpack.c.bf16 %v1154, %v1152
        %v2106 = vpack.c.bf16 %v2020, %v2018
        %v2107 = vpack.c.bf16 %v2021, %v2019
        %v2108 = vpack.c.bf16 %v1799, %v1797
        %v2109 = vpack.c.bf16 %v1800, %v1798
        %v2110 = vpack.c.bf16 %v1157, %v1155
        %v2111 = vpack.c.bf16 %v1158, %v1156
        %v2112 = vpack.c.bf16 %v2024, %v2022
        %v2113 = vpack.c.bf16 %v2025, %v2023
        %v2114 = vpack.c.bf16 %v1803, %v1801
        %v2115 = vpack.c.bf16 %v1804, %v1802
        %v2116 = vpack.c.bf16 %v1161, %v1159
        %v2117 = vpack.c.bf16 %v1162, %v1160
        %v2118 = vpack.c.bf16 %v2028, %v2026
        %v2119 = vpack.c.bf16 %v2029, %v2027
        %v2120 = vpack.c.bf16 %v1807, %v1805
        %v2121 = vpack.c.bf16 %v1808, %v1806
        %v2122 = vpack.c.bf16 %v1165, %v1163
        %v2123 = vpack.c.bf16 %v1166, %v1164
        %v2124 = vpack.c.bf16 %v2032, %v2030
        %v2125 = vpack.c.bf16 %v2033, %v2031
        %v2126 = vpack.c.bf16 %v1811, %v1809
        %v2127 = vpack.c.bf16 %v1812, %v1810
        %v2128 = vpack.c.bf16 %v1169, %v1167
        %v2129 = vpack.c.bf16 %v1170, %v1168
        %v2130 = vpack.c.bf16 %v2036, %v2034
        %v2131 = vpack.c.bf16 %v2037, %v2035
        %v2132 = vpack.c.bf16 %v1815, %v1813
        %v2133 = vpack.c.bf16 %v1816, %v1814
        %v2134 = vpack.c.bf16 %v1173, %v1171
        %v2135 = vpack.c.bf16 %v1174, %v1172
        %v2136 = vpack.c.bf16 %v2040, %v2038
        %v2137 = vpack.c.bf16 %v2041, %v2039
        %v2138 = vld [vmem:[#allocation8] sm:$0xf]
        %v2139 = vld [vmem:[#allocation8 + $0x4] sm:$0xf]
        %v2140 = vld [vmem:[#allocation8 + $0x8] sm:$0xf]
        %v2141 = vld [vmem:[#allocation8 + $0xc] sm:$0xf]
        %v2142 = vld [vmem:[#allocation8 + $0x10] sm:$0xf]
        %v2143 = vld [vmem:[#allocation8 + $0x14] sm:$0xf]
        %v2144 = vld [vmem:[#allocation8 + $0x18] sm:$0xf]
        %v2145 = vld [vmem:[#allocation8 + $0x1c] sm:$0xf]
        %v2146 = vld [vmem:[#allocation8 + $0x20] sm:$0xf]
        %v2147 = vld [vmem:[#allocation8 + $0x24] sm:$0xf]
        %v2148 = vld [vmem:[#allocation8 + $0x28] sm:$0xf]
        %v2149 = vld [vmem:[#allocation8 + $0x2c] sm:$0xf]
        %v2150 = vld [vmem:[#allocation8 + $0x30] sm:$0xf]
        %v2151 = vld [vmem:[#allocation8 + $0x34] sm:$0xf]
        %v2152 = vld [vmem:[#allocation8 + $0x38] sm:$0xf]
        %v2153 = vld [vmem:[#allocation8 + $0x3c] sm:$0xf]
        %v2154 = vld [vmem:[#allocation8 + $0x40] sm:$0xf]
        %v2155 = vld [vmem:[#allocation8 + $0x44] sm:$0xf]
        %v2156 = vld [vmem:[#allocation8 + $0x48] sm:$0xf]
        %v2157 = vld [vmem:[#allocation8 + $0x4c] sm:$0xf]
        %v2158 = vld [vmem:[#allocation8 + $0x50] sm:$0xf]
        %v2159 = vld [vmem:[#allocation8 + $0x54] sm:$0xf]
        %v2160 = vld [vmem:[#allocation8 + $0x58] sm:$0xf]
        %v2161 = vld [vmem:[#allocation8 + $0x5c] sm:$0xf]
        %v2162 = vld [vmem:[#allocation8 + $0x60] sm:$0xf]
        %v2163 = vld [vmem:[#allocation8 + $0x64] sm:$0xf]
        %v2164 = vld [vmem:[#allocation8 + $0x68] sm:$0xf]
        %v2165 = vld [vmem:[#allocation8 + $0x6c] sm:$0xf]
        %v2166 = vld [vmem:[#allocation8 + $0x70] sm:$0xf]
        %v2167 = vld [vmem:[#allocation8 + $0x74] sm:$0xf]
        %v2168 = vld [vmem:[#allocation8 + $0x78] sm:$0xf]
        %v2169 = vld [vmem:[#allocation8 + $0x7c] sm:$0xf]
        %v2170 = vld [vmem:[#allocation8 + $0x80] sm:$0xf]
        %v2171 = vld [vmem:[#allocation8 + $0x84] sm:$0xf]
        %v2172 = vld [vmem:[#allocation8 + $0x88] sm:$0xf]
        %v2173 = vld [vmem:[#allocation8 + $0x8c] sm:$0xf]
        %v2174 = vld [vmem:[#allocation8 + $0x90] sm:$0xf]
        %v2175 = vld [vmem:[#allocation8 + $0x94] sm:$0xf]
        %v2176 = vld [vmem:[#allocation8 + $0x98] sm:$0xf]
        %v2177 = vld [vmem:[#allocation8 + $0x9c] sm:$0xf]
        %v2178 = vld [vmem:[#allocation8 + $0xa0] sm:$0xf]
        %v2179 = vld [vmem:[#allocation8 + $0xa4] sm:$0xf]
        %v2180 = vld [vmem:[#allocation8 + $0xa8] sm:$0xf]
        %v2181 = vld [vmem:[#allocation8 + $0xac] sm:$0xf]
        %v2182 = vld [vmem:[#allocation8 + $0xb0] sm:$0xf]
        %v2183 = vld [vmem:[#allocation8 + $0xb4] sm:$0xf]
        %v2184 = vld [vmem:[#allocation8 + $0xb8] sm:$0xf]
        %v2185 = vld [vmem:[#allocation8 + $0xbc] sm:$0xf]
        %v2186 = vld [vmem:[#allocation8 + $0xc0] sm:$0xf]
        %v2187 = vld [vmem:[#allocation8 + $0xc4] sm:$0xf]
        %v2188 = vld [vmem:[#allocation8 + $0xc8] sm:$0xf]
        %v2189 = vld [vmem:[#allocation8 + $0xcc] sm:$0xf]
        %v2190 = vld [vmem:[#allocation8 + $0xd0] sm:$0xf]
        %v2191 = vld [vmem:[#allocation8 + $0xd4] sm:$0xf]
        %v2192 = vld [vmem:[#allocation8 + $0xd8] sm:$0xf]
        %v2193 = vld [vmem:[#allocation8 + $0xdc] sm:$0xf]
        %v2194 = vld [vmem:[#allocation8 + $0xe0] sm:$0xf]
        %v2195 = vld [vmem:[#allocation8 + $0xe4] sm:$0xf]
        %v2196 = vld [vmem:[#allocation8 + $0xe8] sm:$0xf]
        %v2197 = vld [vmem:[#allocation8 + $0xec] sm:$0xf]
        %v2198 = vld [vmem:[#allocation8 + $0xf0] sm:$0xf]
        %v2199 = vld [vmem:[#allocation8 + $0xf4] sm:$0xf]
        %v2200 = vld [vmem:[#allocation8 + $0xf8] sm:$0xf]
        %v2201 = vld [vmem:[#allocation8 + $0xfc] sm:$0xf]
        %v2202 = vld [vmem:[#allocation8 + $0x100] sm:$0xf]
        %v2203 = vld [vmem:[#allocation8 + $0x104] sm:$0xf]
        %v2204 = vld [vmem:[#allocation8 + $0x108] sm:$0xf]
        %v2205 = vld [vmem:[#allocation8 + $0x10c] sm:$0xf]
        %v2206 = vld [vmem:[#allocation8 + $0x110] sm:$0xf]
        %v2207 = vld [vmem:[#allocation8 + $0x114] sm:$0xf]
        %v2208 = vld [vmem:[#allocation8 + $0x118] sm:$0xf]
        %v2209 = vld [vmem:[#allocation8 + $0x11c] sm:$0xf]
        %v2210 = vld [vmem:[#allocation8 + $0x120] sm:$0xf]
        %v2211 = vld [vmem:[#allocation8 + $0x124] sm:$0xf]
        %v2212 = vld [vmem:[#allocation8 + $0x128] sm:$0xf]
        %v2213 = vld [vmem:[#allocation8 + $0x12c] sm:$0xf]
        %v2214 = vld [vmem:[#allocation8 + $0x130] sm:$0xf]
        %v2215 = vld [vmem:[#allocation8 + $0x134] sm:$0xf]
        %v2216 = vld [vmem:[#allocation8 + $0x138] sm:$0xf]
        %v2217 = vld [vmem:[#allocation8 + $0x13c] sm:$0xf]
        %v2218 = vld [vmem:[#allocation8 + $0x140] sm:$0xf]
        %v2219 = vld [vmem:[#allocation8 + $0x144] sm:$0xf]
        %v2220 = vld [vmem:[#allocation8 + $0x148] sm:$0xf]
        %v2221 = vld [vmem:[#allocation8 + $0x14c] sm:$0xf]
        %v2222 = vld [vmem:[#allocation8 + $0x150] sm:$0xf]
        %v2223 = vld [vmem:[#allocation8 + $0x154] sm:$0xf]
        %v2224 = vld [vmem:[#allocation8 + $0x158] sm:$0xf]
        %v2225 = vld [vmem:[#allocation8 + $0x15c] sm:$0xf]
        %v2226 = vld [vmem:[#allocation8 + $0x160] sm:$0xf]
        %v2227 = vld [vmem:[#allocation8 + $0x164] sm:$0xf]
        %v2228 = vld [vmem:[#allocation8 + $0x168] sm:$0xf]
        %v2229 = vld [vmem:[#allocation8 + $0x16c] sm:$0xf]
        %v2230 = vld [vmem:[#allocation8 + $0x170] sm:$0xf]
        %v2231 = vld [vmem:[#allocation8 + $0x174] sm:$0xf]
        %v2232 = vld [vmem:[#allocation8 + $0x178] sm:$0xf]
        %v2233 = vld [vmem:[#allocation8 + $0x17c] sm:$0xf]
        %v2234 = vld [vmem:[%s4] sm:$0x1]
        %v2236 = vperm.slane %v2234, 0
        %v2334 = vunpack.c.l.b16 %v2138
        %v2335 = vunpack.c.l.b16 %v2139
        %v2336 = vunpack.c.l.b16 %v2140
        %v2337 = vunpack.c.l.b16 %v2141
        %v2338 = vunpack.c.l.b16 %v2142
        %v2339 = vunpack.c.l.b16 %v2143
        %v2340 = vunpack.c.l.b16 %v2144
        %v2341 = vunpack.c.l.b16 %v2145
        %v2342 = vunpack.c.l.b16 %v2146
        %v2343 = vunpack.c.l.b16 %v2147
        %v2344 = vunpack.c.l.b16 %v2148
        %v2345 = vunpack.c.l.b16 %v2149
        %v2346 = vunpack.c.l.b16 %v2150
        %v2347 = vunpack.c.l.b16 %v2151
        %v2348 = vunpack.c.l.b16 %v2152
        %v2349 = vunpack.c.l.b16 %v2153
        %v2350 = vunpack.c.l.b16 %v2154
        %v2351 = vunpack.c.l.b16 %v2155
        %v2352 = vunpack.c.l.b16 %v2156
        %v2353 = vunpack.c.l.b16 %v2157
        %v2354 = vunpack.c.l.b16 %v2158
        %v2355 = vunpack.c.l.b16 %v2159
        %v2356 = vunpack.c.l.b16 %v2160
        %v2357 = vunpack.c.l.b16 %v2161
        %v2358 = vunpack.c.l.b16 %v2162
        %v2359 = vunpack.c.l.b16 %v2163
        %v2360 = vunpack.c.l.b16 %v2164
        %v2361 = vunpack.c.l.b16 %v2165
        %v2362 = vunpack.c.l.b16 %v2166
        %v2363 = vunpack.c.l.b16 %v2167
        %v2364 = vunpack.c.l.b16 %v2168
        %v2365 = vunpack.c.l.b16 %v2169
        %v2366 = vunpack.c.l.b16 %v2170
        %v2367 = vunpack.c.l.b16 %v2171
        %v2368 = vunpack.c.l.b16 %v2172
        %v2369 = vunpack.c.l.b16 %v2173
        %v2370 = vunpack.c.l.b16 %v2174
        %v2371 = vunpack.c.l.b16 %v2175
        %v2372 = vunpack.c.l.b16 %v2176
        %v2373 = vunpack.c.l.b16 %v2177
        %v2374 = vunpack.c.l.b16 %v2178
        %v2375 = vunpack.c.l.b16 %v2179
        %v2376 = vunpack.c.l.b16 %v2180
        %v2377 = vunpack.c.l.b16 %v2181
        %v2378 = vunpack.c.l.b16 %v2182
        %v2379 = vunpack.c.l.b16 %v2183
        %v2380 = vunpack.c.l.b16 %v2184
        %v2381 = vunpack.c.l.b16 %v2185
        %v2382 = vunpack.c.l.b16 %v2186
        %v2383 = vunpack.c.l.b16 %v2187
        %v2384 = vunpack.c.l.b16 %v2188
        %v2385 = vunpack.c.l.b16 %v2189
        %v2386 = vunpack.c.l.b16 %v2190
        %v2387 = vunpack.c.l.b16 %v2191
        %v2388 = vunpack.c.l.b16 %v2192
        %v2389 = vunpack.c.l.b16 %v2193
        %v2390 = vunpack.c.l.b16 %v2194
        %v2391 = vunpack.c.l.b16 %v2195
        %v2392 = vunpack.c.l.b16 %v2196
        %v2393 = vunpack.c.l.b16 %v2197
        %v2394 = vunpack.c.l.b16 %v2198
        %v2395 = vunpack.c.l.b16 %v2199
        %v2396 = vunpack.c.l.b16 %v2200
        %v2397 = vunpack.c.l.b16 %v2201
        %v2398 = vunpack.c.l.b16 %v2202
        %v2399 = vunpack.c.l.b16 %v2203
        %v2400 = vunpack.c.l.b16 %v2204
        %v2401 = vunpack.c.l.b16 %v2205
        %v2402 = vunpack.c.l.b16 %v2206
        %v2403 = vunpack.c.l.b16 %v2207
        %v2404 = vunpack.c.l.b16 %v2208
        %v2405 = vunpack.c.l.b16 %v2209
        %v2406 = vunpack.c.l.b16 %v2210
        %v2407 = vunpack.c.l.b16 %v2211
        %v2408 = vunpack.c.l.b16 %v2212
        %v2409 = vunpack.c.l.b16 %v2213
        %v2410 = vunpack.c.l.b16 %v2214
        %v2411 = vunpack.c.l.b16 %v2215
        %v2412 = vunpack.c.l.b16 %v2216
        %v2413 = vunpack.c.l.b16 %v2217
        %v2414 = vunpack.c.l.b16 %v2218
        %v2415 = vunpack.c.l.b16 %v2219
        %v2416 = vunpack.c.l.b16 %v2220
        %v2417 = vunpack.c.l.b16 %v2221
        %v2418 = vunpack.c.l.b16 %v2222
        %v2419 = vunpack.c.l.b16 %v2223
        %v2420 = vunpack.c.l.b16 %v2224
        %v2421 = vunpack.c.l.b16 %v2225
        %v2422 = vunpack.c.l.b16 %v2226
        %v2423 = vunpack.c.l.b16 %v2227
        %v2424 = vunpack.c.l.b16 %v2228
        %v2425 = vunpack.c.l.b16 %v2229
        %v2426 = vunpack.c.l.b16 %v2230
        %v2427 = vunpack.c.l.b16 %v2231
        %v2428 = vunpack.c.l.b16 %v2232
        %v2429 = vunpack.c.l.b16 %v2233
        %v2430 = vpack.c.b16 %v2335, %v2334
        %v2431 = vpack.c.b16 %v2337, %v2336
        %v2432 = vpack.c.b16 %v2339, %v2338
        %v2433 = vpack.c.b16 %v2341, %v2340
        %v2434 = vpack.c.b16 %v2343, %v2342
        %v2435 = vpack.c.b16 %v2345, %v2344
        %v2436 = vpack.c.b16 %v2347, %v2346
        %v2437 = vpack.c.b16 %v2349, %v2348
        %v2438 = vpack.c.b16 %v2351, %v2350
        %v2439 = vpack.c.b16 %v2353, %v2352
        %v2440 = vpack.c.b16 %v2355, %v2354
        %v2441 = vpack.c.b16 %v2357, %v2356
        %v2442 = vpack.c.b16 %v2359, %v2358
        %v2443 = vpack.c.b16 %v2361, %v2360
        %v2444 = vpack.c.b16 %v2363, %v2362
        %v2445 = vpack.c.b16 %v2365, %v2364
        %v2446 = vpack.c.b16 %v2367, %v2366
        %v2447 = vpack.c.b16 %v2369, %v2368
        %v2448 = vpack.c.b16 %v2371, %v2370
        %v2449 = vpack.c.b16 %v2373, %v2372
        %v2450 = vpack.c.b16 %v2375, %v2374
        %v2451 = vpack.c.b16 %v2377, %v2376
        %v2452 = vpack.c.b16 %v2379, %v2378
        %v2453 = vpack.c.b16 %v2381, %v2380
        %v2454 = vpack.c.b16 %v2383, %v2382
        %v2455 = vpack.c.b16 %v2385, %v2384
        %v2456 = vpack.c.b16 %v2387, %v2386
        %v2457 = vpack.c.b16 %v2389, %v2388
        %v2458 = vpack.c.b16 %v2391, %v2390
        %v2459 = vpack.c.b16 %v2393, %v2392
        %v2460 = vpack.c.b16 %v2395, %v2394
        %v2461 = vpack.c.b16 %v2397, %v2396
        %v2462 = vpack.c.b16 %v2399, %v2398
        %v2463 = vpack.c.b16 %v2401, %v2400
        %v2464 = vpack.c.b16 %v2403, %v2402
        %v2465 = vpack.c.b16 %v2405, %v2404
        %v2466 = vpack.c.b16 %v2407, %v2406
        %v2467 = vpack.c.b16 %v2409, %v2408
        %v2468 = vpack.c.b16 %v2411, %v2410
        %v2469 = vpack.c.b16 %v2413, %v2412
        %v2470 = vpack.c.b16 %v2415, %v2414
        %v2471 = vpack.c.b16 %v2417, %v2416
        %v2472 = vpack.c.b16 %v2419, %v2418
        %v2473 = vpack.c.b16 %v2421, %v2420
        %v2474 = vpack.c.b16 %v2423, %v2422
        %v2475 = vpack.c.b16 %v2425, %v2424
        %v2476 = vpack.c.b16 %v2427, %v2426
        %v2477 = vpack.c.b16 %v2429, %v2428
        %2526 = vmatpush.bf16.msra.mxu0 %v2437
        %2527 = vmatpush.bf16.msra.mxu0 %v2436
        %2528 = vmatpush.bf16.msra.mxu0 %v2435
        %2529 = vmatpush.bf16.msra.mxu0 %v2434
        %2530 = vmatpush.bf16.msra.mxu0 %v2433
        %2531 = vmatpush.bf16.msra.mxu0 %v2432
        %2532 = vmatpush.bf16.msra.mxu0 %v2431
        %2533 = vmatpush.bf16.msra.mxu0 %v2430
        %2534 = vmatmul.bf16.gmra.mxu0 %v2042
        %v2535 = vpop.f32.mrf.mxu0
        %v2536 = vadd.f32 %v2236, %v2535
        %v2537 = vpop.f32.mrf.mxu0
        %v2538 = vadd.f32 %v2236, %v2537
        %2539 = vmatmul.bf16.gmra.mxu0 %v2048
        %v2540 = vpop.f32.mrf.mxu0
        %v2541 = vadd.f32 %v2236, %v2540
        %v2542 = vpop.f32.mrf.mxu0
        %v2543 = vadd.f32 %v2236, %v2542
        %2544 = vmatmul.bf16.gmra.mxu0 %v2054
        %v2545 = vpop.f32.mrf.mxu0
        %v2546 = vadd.f32 %v2236, %v2545
        %v2547 = vpop.f32.mrf.mxu0
        %v2548 = vadd.f32 %v2236, %v2547
        %2549 = vmatmul.bf16.gmra.mxu0 %v2060
        %v2550 = vpop.f32.mrf.mxu0
        %v2551 = vadd.f32 %v2236, %v2550
        %v2552 = vpop.f32.mrf.mxu0
        %v2553 = vadd.f32 %v2236, %v2552
        %2554 = vmatmul.bf16.gmra.mxu0 %v2066
        %v2555 = vpop.f32.mrf.mxu0
        %v2556 = vadd.f32 %v2236, %v2555
        %v2557 = vpop.f32.mrf.mxu0
        %v2558 = vadd.f32 %v2236, %v2557
        %2559 = vmatmul.bf16.gmra.mxu0 %v2072
        %v2560 = vpop.f32.mrf.mxu0
        %v2561 = vadd.f32 %v2236, %v2560
        %v2562 = vpop.f32.mrf.mxu0
        %v2563 = vadd.f32 %v2236, %v2562
        %2564 = vmatmul.bf16.gmra.mxu0 %v2078
        %v2565 = vpop.f32.mrf.mxu0
        %v2566 = vadd.f32 %v2236, %v2565
        %v2567 = vpop.f32.mrf.mxu0
        %v2568 = vadd.f32 %v2236, %v2567
        %2569 = vmatmul.bf16.gmra.mxu0 %v2084
        %v2570 = vpop.f32.mrf.mxu0
        %v2571 = vadd.f32 %v2236, %v2570
        %v2572 = vpop.f32.mrf.mxu0
        %v2573 = vadd.f32 %v2236, %v2572
        %2574 = vmatmul.bf16.gmra.mxu0 %v2090
        %v2575 = vpop.f32.mrf.mxu0
        %v2576 = vadd.f32 %v2236, %v2575
        %v2577 = vpop.f32.mrf.mxu0
        %v2578 = vadd.f32 %v2236, %v2577
        %2579 = vmatmul.bf16.gmra.mxu0 %v2096
        %v2580 = vpop.f32.mrf.mxu0
        %v2581 = vadd.f32 %v2236, %v2580
        %v2582 = vpop.f32.mrf.mxu0
        %v2583 = vadd.f32 %v2236, %v2582
        %2584 = vmatmul.bf16.gmra.mxu0 %v2102
        %v2585 = vpop.f32.mrf.mxu0
        %v2586 = vadd.f32 %v2236, %v2585
        %v2587 = vpop.f32.mrf.mxu0
        %v2588 = vadd.f32 %v2236, %v2587
        %2589 = vmatmul.bf16.gmra.mxu0 %v2108
        %v2590 = vpop.f32.mrf.mxu0
        %v2591 = vadd.f32 %v2236, %v2590
        %v2592 = vpop.f32.mrf.mxu0
        %v2593 = vadd.f32 %v2236, %v2592
        %2594 = vmatmul.bf16.gmra.mxu0 %v2114
        %v2595 = vpop.f32.mrf.mxu0
        %v2596 = vadd.f32 %v2236, %v2595
        %v2597 = vpop.f32.mrf.mxu0
        %v2598 = vadd.f32 %v2236, %v2597
        %2599 = vmatmul.bf16.gmra.mxu0 %v2120
        %v2600 = vpop.f32.mrf.mxu0
        %v2601 = vadd.f32 %v2236, %v2600
        %v2602 = vpop.f32.mrf.mxu0
        %v2603 = vadd.f32 %v2236, %v2602
        %2604 = vmatmul.bf16.gmra.mxu0 %v2126
        %v2605 = vpop.f32.mrf.mxu0
        %v2606 = vadd.f32 %v2236, %v2605
        %v2607 = vpop.f32.mrf.mxu0
        %v2608 = vadd.f32 %v2236, %v2607
        %2609 = vmatmul.bf16.gmra.mxu0 %v2132
        %v2610 = vpop.f32.mrf.mxu0
        %v2611 = vadd.f32 %v2236, %v2610
        %v2612 = vpop.f32.mrf.mxu0
        %v2613 = vadd.f32 %v2236, %v2612
        %2614 = vdwg.mxu0
        %2615 = vmatpush.bf16.msra.mxu0 %v2445
        %2616 = vmatpush.bf16.msra.mxu0 %v2444
        %2617 = vmatpush.bf16.msra.mxu0 %v2443
        %2618 = vmatpush.bf16.msra.mxu0 %v2442
        %2619 = vmatpush.bf16.msra.mxu0 %v2441
        %2620 = vmatpush.bf16.msra.mxu0 %v2440
        %2621 = vmatpush.bf16.msra.mxu0 %v2439
        %2622 = vmatpush.bf16.msra.mxu0 %v2438
        %2623 = vmatmul.bf16.gmra.mxu0 %v2043
        %v2624 = vpop.f32.mrf.mxu0
        %v2625 = vadd.f32 %v2536, %v2624
        %v2626 = vpop.f32.mrf.mxu0
        %v2627 = vadd.f32 %v2538, %v2626
        %2628 = vmatmul.bf16.gmra.mxu0 %v2049
        %v2629 = vpop.f32.mrf.mxu0
        %v2630 = vadd.f32 %v2541, %v2629
        %v2631 = vpop.f32.mrf.mxu0
        %v2632 = vadd.f32 %v2543, %v2631
        %2633 = vmatmul.bf16.gmra.mxu0 %v2055
        %v2634 = vpop.f32.mrf.mxu0
        %v2635 = vadd.f32 %v2546, %v2634
        %v2636 = vpop.f32.mrf.mxu0
        %v2637 = vadd.f32 %v2548, %v2636
        %2638 = vmatmul.bf16.gmra.mxu0 %v2061
        %v2639 = vpop.f32.mrf.mxu0
        %v2640 = vadd.f32 %v2551, %v2639
        %v2641 = vpop.f32.mrf.mxu0
        %v2642 = vadd.f32 %v2553, %v2641
        %2643 = vmatmul.bf16.gmra.mxu0 %v2067
        %v2644 = vpop.f32.mrf.mxu0
        %v2645 = vadd.f32 %v2556, %v2644
        %v2646 = vpop.f32.mrf.mxu0
        %v2647 = vadd.f32 %v2558, %v2646
        %2648 = vmatmul.bf16.gmra.mxu0 %v2073
        %v2649 = vpop.f32.mrf.mxu0
        %v2650 = vadd.f32 %v2561, %v2649
        %v2651 = vpop.f32.mrf.mxu0
        %v2652 = vadd.f32 %v2563, %v2651
        %2653 = vmatmul.bf16.gmra.mxu0 %v2079
        %v2654 = vpop.f32.mrf.mxu0
        %v2655 = vadd.f32 %v2566, %v2654
        %v2656 = vpop.f32.mrf.mxu0
        %v2657 = vadd.f32 %v2568, %v2656
        %2658 = vmatmul.bf16.gmra.mxu0 %v2085
        %v2659 = vpop.f32.mrf.mxu0
        %v2660 = vadd.f32 %v2571, %v2659
        %v2661 = vpop.f32.mrf.mxu0
        %v2662 = vadd.f32 %v2573, %v2661
        %2663 = vmatmul.bf16.gmra.mxu0 %v2091
        %v2664 = vpop.f32.mrf.mxu0
        %v2665 = vadd.f32 %v2576, %v2664
        %v2666 = vpop.f32.mrf.mxu0
        %v2667 = vadd.f32 %v2578, %v2666
        %2668 = vmatmul.bf16.gmra.mxu0 %v2097
        %v2669 = vpop.f32.mrf.mxu0
        %v2670 = vadd.f32 %v2581, %v2669
        %v2671 = vpop.f32.mrf.mxu0
        %v2672 = vadd.f32 %v2583, %v2671
        %2673 = vmatmul.bf16.gmra.mxu0 %v2103
        %v2674 = vpop.f32.mrf.mxu0
        %v2675 = vadd.f32 %v2586, %v2674
        %v2676 = vpop.f32.mrf.mxu0
        %v2677 = vadd.f32 %v2588, %v2676
        %2678 = vmatmul.bf16.gmra.mxu0 %v2109
        %v2679 = vpop.f32.mrf.mxu0
        %v2680 = vadd.f32 %v2591, %v2679
        %v2681 = vpop.f32.mrf.mxu0
        %v2682 = vadd.f32 %v2593, %v2681
        %2683 = vmatmul.bf16.gmra.mxu0 %v2115
        %v2684 = vpop.f32.mrf.mxu0
        %v2685 = vadd.f32 %v2596, %v2684
        %v2686 = vpop.f32.mrf.mxu0
        %v2687 = vadd.f32 %v2598, %v2686
        %2688 = vmatmul.bf16.gmra.mxu0 %v2121
        %v2689 = vpop.f32.mrf.mxu0
        %v2690 = vadd.f32 %v2601, %v2689
        %v2691 = vpop.f32.mrf.mxu0
        %v2692 = vadd.f32 %v2603, %v2691
        %2693 = vmatmul.bf16.gmra.mxu0 %v2127
        %v2694 = vpop.f32.mrf.mxu0
        %v2695 = vadd.f32 %v2606, %v2694
        %v2696 = vpop.f32.mrf.mxu0
        %v2697 = vadd.f32 %v2608, %v2696
        %2698 = vmatmul.bf16.gmra.mxu0 %v2133
        %v2699 = vpop.f32.mrf.mxu0
        %v2700 = vadd.f32 %v2611, %v2699
        %v2701 = vpop.f32.mrf.mxu0
        %v2702 = vadd.f32 %v2613, %v2701
        %2703 = vdwg.mxu0
        %2704 = vmatpush.bf16.msra.mxu0 %v2453
        %2705 = vmatpush.bf16.msra.mxu0 %v2452
        %2706 = vmatpush.bf16.msra.mxu0 %v2451
        %2707 = vmatpush.bf16.msra.mxu0 %v2450
        %2708 = vmatpush.bf16.msra.mxu0 %v2449
        %2709 = vmatpush.bf16.msra.mxu0 %v2448
        %2710 = vmatpush.bf16.msra.mxu0 %v2447
        %2711 = vmatpush.bf16.msra.mxu0 %v2446
        %2712 = vmatmul.bf16.gmra.mxu0 %v2044
        %v2713 = vpop.f32.mrf.mxu0
        %v2714 = vadd.f32 %v2625, %v2713
        %v2715 = vpop.f32.mrf.mxu0
        %v2716 = vadd.f32 %v2627, %v2715
        %2717 = vmatmul.bf16.gmra.mxu0 %v2050
        %v2718 = vpop.f32.mrf.mxu0
        %v2719 = vadd.f32 %v2630, %v2718
        %v2720 = vpop.f32.mrf.mxu0
        %v2721 = vadd.f32 %v2632, %v2720
        %2722 = vmatmul.bf16.gmra.mxu0 %v2056
        %v2723 = vpop.f32.mrf.mxu0
        %v2724 = vadd.f32 %v2635, %v2723
        %v2725 = vpop.f32.mrf.mxu0
        %v2726 = vadd.f32 %v2637, %v2725
        %2727 = vmatmul.bf16.gmra.mxu0 %v2062
        %v2728 = vpop.f32.mrf.mxu0
        %v2729 = vadd.f32 %v2640, %v2728
        %v2730 = vpop.f32.mrf.mxu0
        %v2731 = vadd.f32 %v2642, %v2730
        %2732 = vmatmul.bf16.gmra.mxu0 %v2068
        %v2733 = vpop.f32.mrf.mxu0
        %v2734 = vadd.f32 %v2645, %v2733
        %v2735 = vpop.f32.mrf.mxu0
        %v2736 = vadd.f32 %v2647, %v2735
        %2737 = vmatmul.bf16.gmra.mxu0 %v2074
        %v2738 = vpop.f32.mrf.mxu0
        %v2739 = vadd.f32 %v2650, %v2738
        %v2740 = vpop.f32.mrf.mxu0
        %v2741 = vadd.f32 %v2652, %v2740
        %2742 = vmatmul.bf16.gmra.mxu0 %v2080
        %v2743 = vpop.f32.mrf.mxu0
        %v2744 = vadd.f32 %v2655, %v2743
        %v2745 = vpop.f32.mrf.mxu0
        %v2746 = vadd.f32 %v2657, %v2745
        %2747 = vmatmul.bf16.gmra.mxu0 %v2086
        %v2748 = vpop.f32.mrf.mxu0
        %v2749 = vadd.f32 %v2660, %v2748
        %v2750 = vpop.f32.mrf.mxu0
        %v2751 = vadd.f32 %v2662, %v2750
        %2752 = vmatmul.bf16.gmra.mxu0 %v2092
        %v2753 = vpop.f32.mrf.mxu0
        %v2754 = vadd.f32 %v2665, %v2753
        %v2755 = vpop.f32.mrf.mxu0
        %v2756 = vadd.f32 %v2667, %v2755
        %2757 = vmatmul.bf16.gmra.mxu0 %v2098
        %v2758 = vpop.f32.mrf.mxu0
        %v2759 = vadd.f32 %v2670, %v2758
        %v2760 = vpop.f32.mrf.mxu0
        %v2761 = vadd.f32 %v2672, %v2760
        %2762 = vmatmul.bf16.gmra.mxu0 %v2104
        %v2763 = vpop.f32.mrf.mxu0
        %v2764 = vadd.f32 %v2675, %v2763
        %v2765 = vpop.f32.mrf.mxu0
        %v2766 = vadd.f32 %v2677, %v2765
        %2767 = vmatmul.bf16.gmra.mxu0 %v2110
        %v2768 = vpop.f32.mrf.mxu0
        %v2769 = vadd.f32 %v2680, %v2768
        %v2770 = vpop.f32.mrf.mxu0
        %v2771 = vadd.f32 %v2682, %v2770
        %2772 = vmatmul.bf16.gmra.mxu0 %v2116
        %v2773 = vpop.f32.mrf.mxu0
        %v2774 = vadd.f32 %v2685, %v2773
        %v2775 = vpop.f32.mrf.mxu0
        %v2776 = vadd.f32 %v2687, %v2775
        %2777 = vmatmul.bf16.gmra.mxu0 %v2122
        %v2778 = vpop.f32.mrf.mxu0
        %v2779 = vadd.f32 %v2690, %v2778
        %v2780 = vpop.f32.mrf.mxu0
        %v2781 = vadd.f32 %v2692, %v2780
        %2782 = vmatmul.bf16.gmra.mxu0 %v2128
        %v2783 = vpop.f32.mrf.mxu0
        %v2784 = vadd.f32 %v2695, %v2783
        %v2785 = vpop.f32.mrf.mxu0
        %v2786 = vadd.f32 %v2697, %v2785
        %2787 = vmatmul.bf16.gmra.mxu0 %v2134
        %v2788 = vpop.f32.mrf.mxu0
        %v2789 = vadd.f32 %v2700, %v2788
        %v2790 = vpop.f32.mrf.mxu0
        %v2791 = vadd.f32 %v2702, %v2790
        %2792 = vdwg.mxu0
        %2793 = vmatpush.bf16.msra.mxu0 %v2461
        %2794 = vmatpush.bf16.msra.mxu0 %v2460
        %2795 = vmatpush.bf16.msra.mxu0 %v2459
        %2796 = vmatpush.bf16.msra.mxu0 %v2458
        %2797 = vmatpush.bf16.msra.mxu0 %v2457
        %2798 = vmatpush.bf16.msra.mxu0 %v2456
        %2799 = vmatpush.bf16.msra.mxu0 %v2455
        %2800 = vmatpush.bf16.msra.mxu0 %v2454
        %2801 = vmatmul.bf16.gmra.mxu0 %v2045
        %v2802 = vpop.f32.mrf.mxu0
        %v2803 = vadd.f32 %v2714, %v2802
        %v2804 = vpop.f32.mrf.mxu0
        %v2805 = vadd.f32 %v2716, %v2804
        %2806 = vmatmul.bf16.gmra.mxu0 %v2051
        %v2807 = vpop.f32.mrf.mxu0
        %v2808 = vadd.f32 %v2719, %v2807
        %v2809 = vpop.f32.mrf.mxu0
        %v2810 = vadd.f32 %v2721, %v2809
        %2811 = vmatmul.bf16.gmra.mxu0 %v2057
        %v2812 = vpop.f32.mrf.mxu0
        %v2813 = vadd.f32 %v2724, %v2812
        %v2814 = vpop.f32.mrf.mxu0
        %v2815 = vadd.f32 %v2726, %v2814
        %2816 = vmatmul.bf16.gmra.mxu0 %v2063
        %v2817 = vpop.f32.mrf.mxu0
        %v2818 = vadd.f32 %v2729, %v2817
        %v2819 = vpop.f32.mrf.mxu0
        %v2820 = vadd.f32 %v2731, %v2819
        %2821 = vmatmul.bf16.gmra.mxu0 %v2069
        %v2822 = vpop.f32.mrf.mxu0
        %v2823 = vadd.f32 %v2734, %v2822
        %v2824 = vpop.f32.mrf.mxu0
        %v2825 = vadd.f32 %v2736, %v2824
        %2826 = vmatmul.bf16.gmra.mxu0 %v2075
        %v2827 = vpop.f32.mrf.mxu0
        %v2828 = vadd.f32 %v2739, %v2827
        %v2829 = vpop.f32.mrf.mxu0
        %v2830 = vadd.f32 %v2741, %v2829
        %2831 = vmatmul.bf16.gmra.mxu0 %v2081
        %v2832 = vpop.f32.mrf.mxu0
        %v2833 = vadd.f32 %v2744, %v2832
        %v2834 = vpop.f32.mrf.mxu0
        %v2835 = vadd.f32 %v2746, %v2834
        %2836 = vmatmul.bf16.gmra.mxu0 %v2087
        %v2837 = vpop.f32.mrf.mxu0
        %v2838 = vadd.f32 %v2749, %v2837
        %v2839 = vpop.f32.mrf.mxu0
        %v2840 = vadd.f32 %v2751, %v2839
        %2841 = vmatmul.bf16.gmra.mxu0 %v2093
        %v2842 = vpop.f32.mrf.mxu0
        %v2843 = vadd.f32 %v2754, %v2842
        %v2844 = vpop.f32.mrf.mxu0
        %v2845 = vadd.f32 %v2756, %v2844
        %2846 = vmatmul.bf16.gmra.mxu0 %v2099
        %v2847 = vpop.f32.mrf.mxu0
        %v2848 = vadd.f32 %v2759, %v2847
        %v2849 = vpop.f32.mrf.mxu0
        %v2850 = vadd.f32 %v2761, %v2849
        %2851 = vmatmul.bf16.gmra.mxu0 %v2105
        %v2852 = vpop.f32.mrf.mxu0
        %v2853 = vadd.f32 %v2764, %v2852
        %v2854 = vpop.f32.mrf.mxu0
        %v2855 = vadd.f32 %v2766, %v2854
        %2856 = vmatmul.bf16.gmra.mxu0 %v2111
        %v2857 = vpop.f32.mrf.mxu0
        %v2858 = vadd.f32 %v2769, %v2857
        %v2859 = vpop.f32.mrf.mxu0
        %v2860 = vadd.f32 %v2771, %v2859
        %2861 = vmatmul.bf16.gmra.mxu0 %v2117
        %v2862 = vpop.f32.mrf.mxu0
        %v2863 = vadd.f32 %v2774, %v2862
        %v2864 = vpop.f32.mrf.mxu0
        %v2865 = vadd.f32 %v2776, %v2864
        %2866 = vmatmul.bf16.gmra.mxu0 %v2123
        %v2867 = vpop.f32.mrf.mxu0
        %v2868 = vadd.f32 %v2779, %v2867
        %v2869 = vpop.f32.mrf.mxu0
        %v2870 = vadd.f32 %v2781, %v2869
        %2871 = vmatmul.bf16.gmra.mxu0 %v2129
        %v2872 = vpop.f32.mrf.mxu0
        %v2873 = vadd.f32 %v2784, %v2872
        %v2874 = vpop.f32.mrf.mxu0
        %v2875 = vadd.f32 %v2786, %v2874
        %2876 = vmatmul.bf16.gmra.mxu0 %v2135
        %v2877 = vpop.f32.mrf.mxu0
        %v2878 = vadd.f32 %v2789, %v2877
        %v2879 = vpop.f32.mrf.mxu0
        %v2880 = vadd.f32 %v2791, %v2879
        %2881 = vdwg.mxu0
        %2882 = vmatpush.bf16.msra.mxu0 %v2469
        %2883 = vmatpush.bf16.msra.mxu0 %v2468
        %2884 = vmatpush.bf16.msra.mxu0 %v2467
        %2885 = vmatpush.bf16.msra.mxu0 %v2466
        %2886 = vmatpush.bf16.msra.mxu0 %v2465
        %2887 = vmatpush.bf16.msra.mxu0 %v2464
        %2888 = vmatpush.bf16.msra.mxu0 %v2463
        %2889 = vmatpush.bf16.msra.mxu0 %v2462
        %2890 = vmatmul.bf16.gmra.mxu0 %v2046
        %v2891 = vpop.f32.mrf.mxu0
        %v2892 = vadd.f32 %v2803, %v2891
        %v2893 = vpop.f32.mrf.mxu0
        %v2894 = vadd.f32 %v2805, %v2893
        %2895 = vmatmul.bf16.gmra.mxu0 %v2052
        %v2896 = vpop.f32.mrf.mxu0
        %v2897 = vadd.f32 %v2808, %v2896
        %v2898 = vpop.f32.mrf.mxu0
        %v2899 = vadd.f32 %v2810, %v2898
        %2900 = vmatmul.bf16.gmra.mxu0 %v2058
        %v2901 = vpop.f32.mrf.mxu0
        %v2902 = vadd.f32 %v2813, %v2901
        %v2903 = vpop.f32.mrf.mxu0
        %v2904 = vadd.f32 %v2815, %v2903
        %2905 = vmatmul.bf16.gmra.mxu0 %v2064
        %v2906 = vpop.f32.mrf.mxu0
        %v2907 = vadd.f32 %v2818, %v2906
        %v2908 = vpop.f32.mrf.mxu0
        %v2909 = vadd.f32 %v2820, %v2908
        %2910 = vmatmul.bf16.gmra.mxu0 %v2070
        %v2911 = vpop.f32.mrf.mxu0
        %v2912 = vadd.f32 %v2823, %v2911
        %v2913 = vpop.f32.mrf.mxu0
        %v2914 = vadd.f32 %v2825, %v2913
        %2915 = vmatmul.bf16.gmra.mxu0 %v2076
        %v2916 = vpop.f32.mrf.mxu0
        %v2917 = vadd.f32 %v2828, %v2916
        %v2918 = vpop.f32.mrf.mxu0
        %v2919 = vadd.f32 %v2830, %v2918
        %2920 = vmatmul.bf16.gmra.mxu0 %v2082
        %v2921 = vpop.f32.mrf.mxu0
        %v2922 = vadd.f32 %v2833, %v2921
        %v2923 = vpop.f32.mrf.mxu0
        %v2924 = vadd.f32 %v2835, %v2923
        %2925 = vmatmul.bf16.gmra.mxu0 %v2088
        %v2926 = vpop.f32.mrf.mxu0
        %v2927 = vadd.f32 %v2838, %v2926
        %v2928 = vpop.f32.mrf.mxu0
        %v2929 = vadd.f32 %v2840, %v2928
        %2930 = vmatmul.bf16.gmra.mxu0 %v2094
        %v2931 = vpop.f32.mrf.mxu0
        %v2932 = vadd.f32 %v2843, %v2931
        %v2933 = vpop.f32.mrf.mxu0
        %v2934 = vadd.f32 %v2845, %v2933
        %2935 = vmatmul.bf16.gmra.mxu0 %v2100
        %v2936 = vpop.f32.mrf.mxu0
        %v2937 = vadd.f32 %v2848, %v2936
        %v2938 = vpop.f32.mrf.mxu0
        %v2939 = vadd.f32 %v2850, %v2938
        %2940 = vmatmul.bf16.gmra.mxu0 %v2106
        %v2941 = vpop.f32.mrf.mxu0
        %v2942 = vadd.f32 %v2853, %v2941
        %v2943 = vpop.f32.mrf.mxu0
        %v2944 = vadd.f32 %v2855, %v2943
        %2945 = vmatmul.bf16.gmra.mxu0 %v2112
        %v2946 = vpop.f32.mrf.mxu0
        %v2947 = vadd.f32 %v2858, %v2946
        %v2948 = vpop.f32.mrf.mxu0
        %v2949 = vadd.f32 %v2860, %v2948
        %2950 = vmatmul.bf16.gmra.mxu0 %v2118
        %v2951 = vpop.f32.mrf.mxu0
        %v2952 = vadd.f32 %v2863, %v2951
        %v2953 = vpop.f32.mrf.mxu0
        %v2954 = vadd.f32 %v2865, %v2953
        %2955 = vmatmul.bf16.gmra.mxu0 %v2124
        %v2956 = vpop.f32.mrf.mxu0
        %v2957 = vadd.f32 %v2868, %v2956
        %v2958 = vpop.f32.mrf.mxu0
        %v2959 = vadd.f32 %v2870, %v2958
        %2960 = vmatmul.bf16.gmra.mxu0 %v2130
        %v2961 = vpop.f32.mrf.mxu0
        %v2962 = vadd.f32 %v2873, %v2961
        %v2963 = vpop.f32.mrf.mxu0
        %v2964 = vadd.f32 %v2875, %v2963
        %2965 = vmatmul.bf16.gmra.mxu0 %v2136
        %v2966 = vpop.f32.mrf.mxu0
        %v2967 = vadd.f32 %v2878, %v2966
        %v2968 = vpop.f32.mrf.mxu0
        %v2969 = vadd.f32 %v2880, %v2968
        %2970 = vdwg.mxu0
        %2971 = vmatpush.bf16.msra.mxu0 %v2477
        %2972 = vmatpush.bf16.msra.mxu0 %v2476
        %2973 = vmatpush.bf16.msra.mxu0 %v2475
        %2974 = vmatpush.bf16.msra.mxu0 %v2474
        %2975 = vmatpush.bf16.msra.mxu0 %v2473
        %2976 = vmatpush.bf16.msra.mxu0 %v2472
        %2977 = vmatpush.bf16.msra.mxu0 %v2471
        %2978 = vmatpush.bf16.msra.mxu0 %v2470
        %2979 = vmatmul.bf16.gmra.mxu0 %v2047
        %v2980 = vpop.f32.mrf.mxu0
        %v2981 = vadd.f32 %v2892, %v2980
        %v2982 = vpop.f32.mrf.mxu0
        %v2983 = vadd.f32 %v2894, %v2982
        %2984 = vmatmul.bf16.gmra.mxu0 %v2053
        %v2985 = vpop.f32.mrf.mxu0
        %v2986 = vadd.f32 %v2897, %v2985
        %v2987 = vpop.f32.mrf.mxu0
        %v2988 = vadd.f32 %v2899, %v2987
        %2989 = vmatmul.bf16.gmra.mxu0 %v2059
        %v2990 = vpop.f32.mrf.mxu0
        %v2991 = vadd.f32 %v2902, %v2990
        %v2992 = vpop.f32.mrf.mxu0
        %v2993 = vadd.f32 %v2904, %v2992
        %2994 = vmatmul.bf16.gmra.mxu0 %v2065
        %v2995 = vpop.f32.mrf.mxu0
        %v2996 = vadd.f32 %v2907, %v2995
        %v2997 = vpop.f32.mrf.mxu0
        %v2998 = vadd.f32 %v2909, %v2997
        %2999 = vmatmul.bf16.gmra.mxu0 %v2071
        %v3000 = vpop.f32.mrf.mxu0
        %v3001 = vadd.f32 %v2912, %v3000
        %v3002 = vpop.f32.mrf.mxu0
        %v3003 = vadd.f32 %v2914, %v3002
        %3004 = vmatmul.bf16.gmra.mxu0 %v2077
        %v3005 = vpop.f32.mrf.mxu0
        %v3006 = vadd.f32 %v2917, %v3005
        %v3007 = vpop.f32.mrf.mxu0
        %v3008 = vadd.f32 %v2919, %v3007
        %3009 = vmatmul.bf16.gmra.mxu0 %v2083
        %v3010 = vpop.f32.mrf.mxu0
        %v3011 = vadd.f32 %v2922, %v3010
        %v3012 = vpop.f32.mrf.mxu0
        %v3013 = vadd.f32 %v2924, %v3012
        %3014 = vmatmul.bf16.gmra.mxu0 %v2089
        %v3015 = vpop.f32.mrf.mxu0
        %v3016 = vadd.f32 %v2927, %v3015
        %v3017 = vpop.f32.mrf.mxu0
        %v3018 = vadd.f32 %v2929, %v3017
        %3019 = vmatmul.bf16.gmra.mxu0 %v2095
        %v3020 = vpop.f32.mrf.mxu0
        %v3021 = vadd.f32 %v2932, %v3020
        %v3022 = vpop.f32.mrf.mxu0
        %v3023 = vadd.f32 %v2934, %v3022
        %3024 = vmatmul.bf16.gmra.mxu0 %v2101
        %v3025 = vpop.f32.mrf.mxu0
        %v3026 = vadd.f32 %v2937, %v3025
        %v3027 = vpop.f32.mrf.mxu0
        %v3028 = vadd.f32 %v2939, %v3027
        %3029 = vmatmul.bf16.gmra.mxu0 %v2107
        %v3030 = vpop.f32.mrf.mxu0
        %v3031 = vadd.f32 %v2942, %v3030
        %v3032 = vpop.f32.mrf.mxu0
        %v3033 = vadd.f32 %v2944, %v3032
        %3034 = vmatmul.bf16.gmra.mxu0 %v2113
        %v3035 = vpop.f32.mrf.mxu0
        %v3036 = vadd.f32 %v2947, %v3035
        %v3037 = vpop.f32.mrf.mxu0
        %v3038 = vadd.f32 %v2949, %v3037
        %3039 = vmatmul.bf16.gmra.mxu0 %v2119
        %v3040 = vpop.f32.mrf.mxu0
        %v3041 = vadd.f32 %v2952, %v3040
        %v3042 = vpop.f32.mrf.mxu0
        %v3043 = vadd.f32 %v2954, %v3042
        %3044 = vmatmul.bf16.gmra.mxu0 %v2125
        %v3045 = vpop.f32.mrf.mxu0
        %v3046 = vadd.f32 %v2957, %v3045
        %v3047 = vpop.f32.mrf.mxu0
        %v3048 = vadd.f32 %v2959, %v3047
        %3049 = vmatmul.bf16.gmra.mxu0 %v2131
        %v3050 = vpop.f32.mrf.mxu0
        %v3051 = vadd.f32 %v2962, %v3050
        %v3052 = vpop.f32.mrf.mxu0
        %v3053 = vadd.f32 %v2964, %v3052
        %3054 = vmatmul.bf16.gmra.mxu0 %v2137
        %v3055 = vpop.f32.mrf.mxu0
        %v3056 = vadd.f32 %v2967, %v3055
        %v3057 = vpop.f32.mrf.mxu0
        %v3058 = vadd.f32 %v2969, %v3057
        %3059 = vdwg.mxu0
        %v3060 = vmax.f32 %v2981, 0.0
        %v3061 = vmax.f32 %v2983, 0.0
        %v3062 = vmax.f32 %v2986, 0.0
        %v3063 = vmax.f32 %v2988, 0.0
        %v3064 = vmax.f32 %v2991, 0.0
        %v3065 = vmax.f32 %v2993, 0.0
        %v3066 = vmax.f32 %v2996, 0.0
        %v3067 = vmax.f32 %v2998, 0.0
        %v3068 = vmax.f32 %v3001, 0.0
        %v3069 = vmax.f32 %v3003, 0.0
        %v3070 = vmax.f32 %v3006, 0.0
        %v3071 = vmax.f32 %v3008, 0.0
        %v3072 = vmax.f32 %v3011, 0.0
        %v3073 = vmax.f32 %v3013, 0.0
        %v3074 = vmax.f32 %v3016, 0.0
        %v3075 = vmax.f32 %v3018, 0.0
        %v3076 = vmax.f32 %v3021, 0.0
        %v3077 = vmax.f32 %v3023, 0.0
        %v3078 = vmax.f32 %v3026, 0.0
        %v3079 = vmax.f32 %v3028, 0.0
        %v3080 = vmax.f32 %v3031, 0.0
        %v3081 = vmax.f32 %v3033, 0.0
        %v3082 = vmax.f32 %v3036, 0.0
        %v3083 = vmax.f32 %v3038, 0.0
        %v3084 = vmax.f32 %v3041, 0.0
        %v3085 = vmax.f32 %v3043, 0.0
        %v3086 = vmax.f32 %v3046, 0.0
        %v3087 = vmax.f32 %v3048, 0.0
        %v3088 = vmax.f32 %v3051, 0.0
        %v3089 = vmax.f32 %v3053, 0.0
        %v3090 = vmax.f32 %v3056, 0.0
        %v3091 = vmax.f32 %v3058, 0.0
        %v3092 = vpack.c.bf16 %v3061, %v3060
        %v3093 = vpack.c.bf16 %v3063, %v3062
        %v3094 = vpack.c.bf16 %v3065, %v3064
        %v3095 = vpack.c.bf16 %v3067, %v3066
        %v3096 = vpack.c.bf16 %v3069, %v3068
        %v3097 = vpack.c.bf16 %v3071, %v3070
        %v3098 = vpack.c.bf16 %v3073, %v3072
        %v3099 = vpack.c.bf16 %v3075, %v3074
        %v3100 = vpack.c.bf16 %v3077, %v3076
        %v3101 = vpack.c.bf16 %v3079, %v3078
        %v3102 = vpack.c.bf16 %v3081, %v3080
        %v3103 = vpack.c.bf16 %v3083, %v3082
        %v3104 = vpack.c.bf16 %v3085, %v3084
        %v3105 = vpack.c.bf16 %v3087, %v3086
        %v3106 = vpack.c.bf16 %v3089, %v3088
        %v3107 = vpack.c.bf16 %v3091, %v3090
        %v3108 = vld [vmem:[#allocation10] sm:$0xff]
        %v3109 = vld [vmem:[#allocation10 + $0x8] sm:$0xff]
        %v3110 = vld [vmem:[#allocation10 + $0x10] sm:$0xff]
        %v3111 = vld [vmem:[#allocation10 + $0x18] sm:$0xff]
        %v3112 = vld [vmem:[#allocation10 + $0x20] sm:$0xff]
        %v3113 = vld [vmem:[#allocation10 + $0x28] sm:$0xff]
        %v3114 = vld [vmem:[#allocation10 + $0x30] sm:$0xff]
        %v3115 = vld [vmem:[#allocation10 + $0x38] sm:$0xff]
        %v3116 = vld [vmem:[#allocation10 + $0x40] sm:$0xff]
        %v3117 = vld [vmem:[#allocation10 + $0x48] sm:$0xff]
        %v3118 = vld [vmem:[#allocation10 + $0x50] sm:$0xff]
        %v3119 = vld [vmem:[#allocation10 + $0x58] sm:$0xff]
        %v3120 = vld [vmem:[#allocation10 + $0x60] sm:$0xff]
        %v3121 = vld [vmem:[#allocation10 + $0x68] sm:$0xff]
        %v3122 = vld [vmem:[#allocation10 + $0x70] sm:$0xff]
        %v3123 = vld [vmem:[#allocation10 + $0x78] sm:$0xff]
        %v3140 = vunpack.c.l.b16 %v3108
        %v3141 = vunpack.c.h.b16 %v3108
        %v3142 = vunpack.c.l.b16 %v3109
        %v3143 = vunpack.c.h.b16 %v3109
        %v3144 = vunpack.c.l.b16 %v3110
        %v3145 = vunpack.c.h.b16 %v3110
        %v3146 = vunpack.c.l.b16 %v3111
        %v3147 = vunpack.c.h.b16 %v3111
        %v3148 = vunpack.c.l.b16 %v3112
        %v3149 = vunpack.c.h.b16 %v3112
        %v3150 = vunpack.c.l.b16 %v3113
        %v3151 = vunpack.c.h.b16 %v3113
        %v3152 = vunpack.c.l.b16 %v3114
        %v3153 = vunpack.c.h.b16 %v3114
        %v3154 = vunpack.c.l.b16 %v3115
        %v3155 = vunpack.c.h.b16 %v3115
        %v3156 = vunpack.c.l.b16 %v3116
        %v3157 = vunpack.c.h.b16 %v3116
        %v3158 = vunpack.c.l.b16 %v3117
        %v3159 = vunpack.c.h.b16 %v3117
        %v3160 = vunpack.c.l.b16 %v3118
        %v3161 = vunpack.c.h.b16 %v3118
        %v3162 = vunpack.c.l.b16 %v3119
        %v3163 = vunpack.c.h.b16 %v3119
        %v3164 = vunpack.c.l.b16 %v3120
        %v3165 = vunpack.c.h.b16 %v3120
        %v3166 = vunpack.c.l.b16 %v3121
        %v3167 = vunpack.c.h.b16 %v3121
        %v3168 = vunpack.c.l.b16 %v3122
        %v3169 = vunpack.c.h.b16 %v3122
        %v3170 = vunpack.c.l.b16 %v3123
        %v3171 = vunpack.c.h.b16 %v3123
        %v3172 = vpack.c.b16 %v3142, %v3140
        %v3173 = vpack.c.b16 %v3143, %v3141
        %v3174 = vpack.c.b16 %v3146, %v3144
        %v3175 = vpack.c.b16 %v3147, %v3145
        %v3176 = vpack.c.b16 %v3150, %v3148
        %v3177 = vpack.c.b16 %v3151, %v3149
        %v3178 = vpack.c.b16 %v3154, %v3152
        %v3179 = vpack.c.b16 %v3155, %v3153
        %v3180 = vpack.c.b16 %v3158, %v3156
        %v3181 = vpack.c.b16 %v3159, %v3157
        %v3182 = vpack.c.b16 %v3162, %v3160
        %v3183 = vpack.c.b16 %v3163, %v3161
        %v3184 = vpack.c.b16 %v3166, %v3164
        %v3185 = vpack.c.b16 %v3167, %v3165
        %v3186 = vpack.c.b16 %v3170, %v3168
        %v3187 = vpack.c.b16 %v3171, %v3169
        %3204 = vmatpush.bf16.msra.mxu0 %v3186
        %3205 = vmatpush.bf16.msra.mxu0 %v3184
        %3206 = vmatpush.bf16.msra.mxu0 %v3182
        %3207 = vmatpush.bf16.msra.mxu0 %v3180
        %3208 = vmatpush.bf16.msra.mxu0 %v3178
        %3209 = vmatpush.bf16.msra.mxu0 %v3176
        %3210 = vmatpush.bf16.msra.mxu0 %v3174
        %3211 = vmatpush.bf16.msra.mxu0 %v3172
        %3212 = vmatmul.bf16.gmra.mxu0 %v3092
        %v3213 = vpop.f32.mrf.mxu0
        %v3214 = vadd.f32 %v695, %v3213
        %v3215 = vpop.f32.mrf.mxu0
        %v3216 = vadd.f32 %v697, %v3215
        %3217 = vmatmul.bf16.gmra.mxu0 %v3093
        %v3218 = vpop.f32.mrf.mxu0
        %v3219 = vadd.f32 %v700, %v3218
        %v3220 = vpop.f32.mrf.mxu0
        %v3221 = vadd.f32 %v702, %v3220
        %3222 = vmatmul.bf16.gmra.mxu0 %v3094
        %v3223 = vpop.f32.mrf.mxu0
        %v3224 = vadd.f32 %v705, %v3223
        %v3225 = vpop.f32.mrf.mxu0
        %v3226 = vadd.f32 %v707, %v3225
        %3227 = vmatmul.bf16.gmra.mxu0 %v3095
        %v3228 = vpop.f32.mrf.mxu0
        %v3229 = vadd.f32 %v710, %v3228
        %v3230 = vpop.f32.mrf.mxu0
        %v3231 = vadd.f32 %v712, %v3230
        %3232 = vmatmul.bf16.gmra.mxu0 %v3096
        %v3233 = vpop.f32.mrf.mxu0
        %v3234 = vadd.f32 %v715, %v3233
        %v3235 = vpop.f32.mrf.mxu0
        %v3236 = vadd.f32 %v717, %v3235
        %3237 = vmatmul.bf16.gmra.mxu0 %v3097
        %v3238 = vpop.f32.mrf.mxu0
        %v3239 = vadd.f32 %v720, %v3238
        %v3240 = vpop.f32.mrf.mxu0
        %v3241 = vadd.f32 %v722, %v3240
        %3242 = vmatmul.bf16.gmra.mxu0 %v3098
        %v3243 = vpop.f32.mrf.mxu0
        %v3244 = vadd.f32 %v725, %v3243
        %v3245 = vpop.f32.mrf.mxu0
        %v3246 = vadd.f32 %v727, %v3245
        %3247 = vmatmul.bf16.gmra.mxu0 %v3099
        %v3248 = vpop.f32.mrf.mxu0
        %v3249 = vadd.f32 %v730, %v3248
        %v3250 = vpop.f32.mrf.mxu0
        %v3251 = vadd.f32 %v732, %v3250
        %3252 = vmatmul.bf16.gmra.mxu0 %v3100
        %v3253 = vpop.f32.mrf.mxu0
        %v3254 = vadd.f32 %v735, %v3253
        %v3255 = vpop.f32.mrf.mxu0
        %v3256 = vadd.f32 %v737, %v3255
        %3257 = vmatmul.bf16.gmra.mxu0 %v3101
        %v3258 = vpop.f32.mrf.mxu0
        %v3259 = vadd.f32 %v740, %v3258
        %v3260 = vpop.f32.mrf.mxu0
        %v3261 = vadd.f32 %v742, %v3260
        %3262 = vmatmul.bf16.gmra.mxu0 %v3102
        %v3263 = vpop.f32.mrf.mxu0
        %v3264 = vadd.f32 %v745, %v3263
        %v3265 = vpop.f32.mrf.mxu0
        %v3266 = vadd.f32 %v747, %v3265
        %3267 = vmatmul.bf16.gmra.mxu0 %v3103
        %v3268 = vpop.f32.mrf.mxu0
        %v3269 = vadd.f32 %v750, %v3268
        %v3270 = vpop.f32.mrf.mxu0
        %v3271 = vadd.f32 %v752, %v3270
        %3272 = vmatmul.bf16.gmra.mxu0 %v3104
        %v3273 = vpop.f32.mrf.mxu0
        %v3274 = vadd.f32 %v755, %v3273
        %v3275 = vpop.f32.mrf.mxu0
        %v3276 = vadd.f32 %v757, %v3275
        %3277 = vmatmul.bf16.gmra.mxu0 %v3105
        %v3278 = vpop.f32.mrf.mxu0
        %v3279 = vadd.f32 %v760, %v3278
        %v3280 = vpop.f32.mrf.mxu0
        %v3281 = vadd.f32 %v762, %v3280
        %3282 = vmatmul.bf16.gmra.mxu0 %v3106
        %v3283 = vpop.f32.mrf.mxu0
        %v3284 = vadd.f32 %v765, %v3283
        %v3285 = vpop.f32.mrf.mxu0
        %v3286 = vadd.f32 %v767, %v3285
        %3287 = vmatmul.bf16.gmra.mxu0 %v3107
        %v3288 = vpop.f32.mrf.mxu0
        %v3289 = vadd.f32 %v770, %v3288
        %v3290 = vpop.f32.mrf.mxu0
        %v3291 = vadd.f32 %v772, %v3290
        %3292 = vdwg.mxu0
        %3293 = vmatpush.bf16.msra.mxu0 %v3187
        %3294 = vmatpush.bf16.msra.mxu0 %v3185
        %3295 = vmatpush.bf16.msra.mxu0 %v3183
        %3296 = vmatpush.bf16.msra.mxu0 %v3181
        %3297 = vmatpush.bf16.msra.mxu0 %v3179
        %3298 = vmatpush.bf16.msra.mxu0 %v3177
        %3299 = vmatpush.bf16.msra.mxu0 %v3175
        %3300 = vmatpush.bf16.msra.mxu0 %v3173
        %3301 = vmatmul.bf16.gmra.mxu0 %v3092
        %v3302 = vpop.f32.mrf.mxu0
        %v3303 = vadd.f32 %v784, %v3302
        %v3304 = vpop.f32.mrf.mxu0
        %v3305 = vadd.f32 %v786, %v3304
        %3306 = vmatmul.bf16.gmra.mxu0 %v3093
        %v3307 = vpop.f32.mrf.mxu0
        %v3308 = vadd.f32 %v789, %v3307
        %v3309 = vpop.f32.mrf.mxu0
        %v3310 = vadd.f32 %v791, %v3309
        %3311 = vmatmul.bf16.gmra.mxu0 %v3094
        %v3312 = vpop.f32.mrf.mxu0
        %v3313 = vadd.f32 %v794, %v3312
        %v3314 = vpop.f32.mrf.mxu0
        %v3315 = vadd.f32 %v796, %v3314
        %3316 = vmatmul.bf16.gmra.mxu0 %v3095
        %v3317 = vpop.f32.mrf.mxu0
        %v3318 = vadd.f32 %v799, %v3317
        %v3319 = vpop.f32.mrf.mxu0
        %v3320 = vadd.f32 %v801, %v3319
        %3321 = vmatmul.bf16.gmra.mxu0 %v3096
        %v3322 = vpop.f32.mrf.mxu0
        %v3323 = vadd.f32 %v804, %v3322
        %v3324 = vpop.f32.mrf.mxu0
        %v3325 = vadd.f32 %v806, %v3324
        %3326 = vmatmul.bf16.gmra.mxu0 %v3097
        %v3327 = vpop.f32.mrf.mxu0
        %v3328 = vadd.f32 %v809, %v3327
        %v3329 = vpop.f32.mrf.mxu0
        %v3330 = vadd.f32 %v811, %v3329
        %3331 = vmatmul.bf16.gmra.mxu0 %v3098
        %v3332 = vpop.f32.mrf.mxu0
        %v3333 = vadd.f32 %v814, %v3332
        %v3334 = vpop.f32.mrf.mxu0
        %v3335 = vadd.f32 %v816, %v3334
        %3336 = vmatmul.bf16.gmra.mxu0 %v3099
        %v3337 = vpop.f32.mrf.mxu0
        %v3338 = vadd.f32 %v819, %v3337
        %v3339 = vpop.f32.mrf.mxu0
        %v3340 = vadd.f32 %v821, %v3339
        %3341 = vmatmul.bf16.gmra.mxu0 %v3100
        %v3342 = vpop.f32.mrf.mxu0
        %v3343 = vadd.f32 %v824, %v3342
        %v3344 = vpop.f32.mrf.mxu0
        %v3345 = vadd.f32 %v826, %v3344
        %3346 = vmatmul.bf16.gmra.mxu0 %v3101
        %v3347 = vpop.f32.mrf.mxu0
        %v3348 = vadd.f32 %v829, %v3347
        %v3349 = vpop.f32.mrf.mxu0
        %v3350 = vadd.f32 %v831, %v3349
        %3351 = vmatmul.bf16.gmra.mxu0 %v3102
        %v3352 = vpop.f32.mrf.mxu0
        %v3353 = vadd.f32 %v834, %v3352
        %v3354 = vpop.f32.mrf.mxu0
        %v3355 = vadd.f32 %v836, %v3354
        %3356 = vmatmul.bf16.gmra.mxu0 %v3103
        %v3357 = vpop.f32.mrf.mxu0
        %v3358 = vadd.f32 %v839, %v3357
        %v3359 = vpop.f32.mrf.mxu0
        %v3360 = vadd.f32 %v841, %v3359
        %3361 = vmatmul.bf16.gmra.mxu0 %v3104
        %v3362 = vpop.f32.mrf.mxu0
        %v3363 = vadd.f32 %v844, %v3362
        %v3364 = vpop.f32.mrf.mxu0
        %v3365 = vadd.f32 %v846, %v3364
        %3366 = vmatmul.bf16.gmra.mxu0 %v3105
        %v3367 = vpop.f32.mrf.mxu0
        %v3368 = vadd.f32 %v849, %v3367
        %v3369 = vpop.f32.mrf.mxu0
        %v3370 = vadd.f32 %v851, %v3369
        %3371 = vmatmul.bf16.gmra.mxu0 %v3106
        %v3372 = vpop.f32.mrf.mxu0
        %v3373 = vadd.f32 %v854, %v3372
        %v3374 = vpop.f32.mrf.mxu0
        %v3375 = vadd.f32 %v856, %v3374
        %3376 = vmatmul.bf16.gmra.mxu0 %v3107
        %v3377 = vpop.f32.mrf.mxu0
        %v3378 = vadd.f32 %v859, %v3377
        %v3379 = vpop.f32.mrf.mxu0
        %v3380 = vadd.f32 %v861, %v3379
        %3381 = vdwg.mxu0
        %v3382 = vld [vmem:[%s6] sm:$0x3]
        %v3384 = vperm.slane %v3382, 0
        %v3385 = vperm.slane %v3382, 1
        %v3388 = vadd.f32 %v3214, %v3384
        %v3389 = vadd.f32 %v3303, %v3385
        %v3390 = vadd.f32 %v3216, %v3384
        %v3391 = vadd.f32 %v3305, %v3385
        %v3392 = vadd.f32 %v3219, %v3384
        %v3393 = vadd.f32 %v3308, %v3385
        %v3394 = vadd.f32 %v3221, %v3384
        %v3395 = vadd.f32 %v3310, %v3385
        %v3396 = vadd.f32 %v3224, %v3384
        %v3397 = vadd.f32 %v3313, %v3385
        %v3398 = vadd.f32 %v3226, %v3384
        %v3399 = vadd.f32 %v3315, %v3385
        %v3400 = vadd.f32 %v3229, %v3384
        %v3401 = vadd.f32 %v3318, %v3385
        %v3402 = vadd.f32 %v3231, %v3384
        %v3403 = vadd.f32 %v3320, %v3385
        %v3404 = vadd.f32 %v3234, %v3384
        %v3405 = vadd.f32 %v3323, %v3385
        %v3406 = vadd.f32 %v3236, %v3384
        %v3407 = vadd.f32 %v3325, %v3385
        %v3408 = vadd.f32 %v3239, %v3384
        %v3409 = vadd.f32 %v3328, %v3385
        %v3410 = vadd.f32 %v3241, %v3384
        %v3411 = vadd.f32 %v3330, %v3385
        %v3412 = vadd.f32 %v3244, %v3384
        %v3413 = vadd.f32 %v3333, %v3385
        %v3414 = vadd.f32 %v3246, %v3384
        %v3415 = vadd.f32 %v3335, %v3385
        %v3416 = vadd.f32 %v3249, %v3384
        %v3417 = vadd.f32 %v3338, %v3385
        %v3418 = vadd.f32 %v3251, %v3384
        %v3419 = vadd.f32 %v3340, %v3385
        %v3420 = vadd.f32 %v3254, %v3384
        %v3421 = vadd.f32 %v3343, %v3385
        %v3422 = vadd.f32 %v3256, %v3384
        %v3423 = vadd.f32 %v3345, %v3385
        %v3424 = vadd.f32 %v3259, %v3384
        %v3425 = vadd.f32 %v3348, %v3385
        %v3426 = vadd.f32 %v3261, %v3384
        %v3427 = vadd.f32 %v3350, %v3385
        %v3428 = vadd.f32 %v3264, %v3384
        %v3429 = vadd.f32 %v3353, %v3385
        %v3430 = vadd.f32 %v3266, %v3384
        %v3431 = vadd.f32 %v3355, %v3385
        %v3432 = vadd.f32 %v3269, %v3384
        %v3433 = vadd.f32 %v3358, %v3385
        %v3434 = vadd.f32 %v3271, %v3384
        %v3435 = vadd.f32 %v3360, %v3385
        %v3436 = vadd.f32 %v3274, %v3384
        %v3437 = vadd.f32 %v3363, %v3385
        %v3438 = vadd.f32 %v3276, %v3384
        %v3439 = vadd.f32 %v3365, %v3385
        %v3440 = vadd.f32 %v3279, %v3384
        %v3441 = vadd.f32 %v3368, %v3385
        %v3442 = vadd.f32 %v3281, %v3384
        %v3443 = vadd.f32 %v3370, %v3385
        %v3444 = vadd.f32 %v3284, %v3384
        %v3445 = vadd.f32 %v3373, %v3385
        %v3446 = vadd.f32 %v3286, %v3384
        %v3447 = vadd.f32 %v3375, %v3385
        %v3448 = vadd.f32 %v3289, %v3384
        %v3449 = vadd.f32 %v3378, %v3385
        %v3450 = vadd.f32 %v3291, %v3384
        %v3451 = vadd.f32 %v3380, %v3385
        %v3452 = vmax.f32 %v3388, 0.0
        %v3453 = vmax.f32 %v3389, 0.0
        %v3454 = vmax.f32 %v3390, 0.0
        %v3455 = vmax.f32 %v3391, 0.0
        %v3456 = vmax.f32 %v3392, 0.0
        %v3457 = vmax.f32 %v3393, 0.0
        %v3458 = vmax.f32 %v3394, 0.0
        %v3459 = vmax.f32 %v3395, 0.0
        %v3460 = vmax.f32 %v3396, 0.0
        %v3461 = vmax.f32 %v3397, 0.0
        %v3462 = vmax.f32 %v3398, 0.0
        %v3463 = vmax.f32 %v3399, 0.0
        %v3464 = vmax.f32 %v3400, 0.0
        %v3465 = vmax.f32 %v3401, 0.0
        %v3466 = vmax.f32 %v3402, 0.0
        %v3467 = vmax.f32 %v3403, 0.0
        %v3468 = vmax.f32 %v3404, 0.0
        %v3469 = vmax.f32 %v3405, 0.0
        %v3470 = vmax.f32 %v3406, 0.0
        %v3471 = vmax.f32 %v3407, 0.0
        %v3472 = vmax.f32 %v3408, 0.0
        %v3473 = vmax.f32 %v3409, 0.0
        %v3474 = vmax.f32 %v3410, 0.0
        %v3475 = vmax.f32 %v3411, 0.0
        %v3476 = vmax.f32 %v3412, 0.0
        %v3477 = vmax.f32 %v3413, 0.0
        %v3478 = vmax.f32 %v3414, 0.0
        %v3479 = vmax.f32 %v3415, 0.0
        %v3480 = vmax.f32 %v3416, 0.0
        %v3481 = vmax.f32 %v3417, 0.0
        %v3482 = vmax.f32 %v3418, 0.0
        %v3483 = vmax.f32 %v3419, 0.0
        %v3484 = vmax.f32 %v3420, 0.0
        %v3485 = vmax.f32 %v3421, 0.0
        %v3486 = vmax.f32 %v3422, 0.0
        %v3487 = vmax.f32 %v3423, 0.0
        %v3488 = vmax.f32 %v3424, 0.0
        %v3489 = vmax.f32 %v3425, 0.0
        %v3490 = vmax.f32 %v3426, 0.0
        %v3491 = vmax.f32 %v3427, 0.0
        %v3492 = vmax.f32 %v3428, 0.0
        %v3493 = vmax.f32 %v3429, 0.0
        %v3494 = vmax.f32 %v3430, 0.0
        %v3495 = vmax.f32 %v3431, 0.0
        %v3496 = vmax.f32 %v3432, 0.0
        %v3497 = vmax.f32 %v3433, 0.0
        %v3498 = vmax.f32 %v3434, 0.0
        %v3499 = vmax.f32 %v3435, 0.0
        %v3500 = vmax.f32 %v3436, 0.0
        %v3501 = vmax.f32 %v3437, 0.0
        %v3502 = vmax.f32 %v3438, 0.0
        %v3503 = vmax.f32 %v3439, 0.0
        %v3504 = vmax.f32 %v3440, 0.0
        %v3505 = vmax.f32 %v3441, 0.0
        %v3506 = vmax.f32 %v3442, 0.0
        %v3507 = vmax.f32 %v3443, 0.0
        %v3508 = vmax.f32 %v3444, 0.0
        %v3509 = vmax.f32 %v3445, 0.0
        %v3510 = vmax.f32 %v3446, 0.0
        %v3511 = vmax.f32 %v3447, 0.0
        %v3512 = vmax.f32 %v3448, 0.0
        %v3513 = vmax.f32 %v3449, 0.0
        %v3514 = vmax.f32 %v3450, 0.0
        %v3515 = vmax.f32 %v3451, 0.0
        %3516 = vst [vmem:[%s362] sm:$0xff] %v3452
        %3517 = vst [vmem:[%s362 + $0x8] sm:$0xff] %v3453
        %3518 = vst [vmem:[%s362 + $0x10] sm:$0xff] %v3454
        %3519 = vst [vmem:[%s362 + $0x18] sm:$0xff] %v3455
        %3520 = vst [vmem:[%s362 + $0x20] sm:$0xff] %v3456
        %3521 = vst [vmem:[%s362 + $0x28] sm:$0xff] %v3457
        %3522 = vst [vmem:[%s362 + $0x30] sm:$0xff] %v3458
        %3523 = vst [vmem:[%s362 + $0x38] sm:$0xff] %v3459
        %3524 = vst [vmem:[%s362 + $0x40] sm:$0xff] %v3460
        %3525 = vst [vmem:[%s362 + $0x48] sm:$0xff] %v3461
        %3526 = vst [vmem:[%s362 + $0x50] sm:$0xff] %v3462
        %3527 = vst [vmem:[%s362 + $0x58] sm:$0xff] %v3463
        %3528 = vst [vmem:[%s362 + $0x60] sm:$0xff] %v3464
        %3529 = vst [vmem:[%s362 + $0x68] sm:$0xff] %v3465
        %3530 = vst [vmem:[%s362 + $0x70] sm:$0xff] %v3466
        %3531 = vst [vmem:[%s362 + $0x78] sm:$0xff] %v3467
        %3532 = vst [vmem:[%s362 + $0x80] sm:$0xff] %v3468
        %3533 = vst [vmem:[%s362 + $0x88] sm:$0xff] %v3469
        %3534 = vst [vmem:[%s362 + $0x90] sm:$0xff] %v3470
        %3535 = vst [vmem:[%s362 + $0x98] sm:$0xff] %v3471
        %3536 = vst [vmem:[%s362 + $0xa0] sm:$0xff] %v3472
        %3537 = vst [vmem:[%s362 + $0xa8] sm:$0xff] %v3473
        %3538 = vst [vmem:[%s362 + $0xb0] sm:$0xff] %v3474
        %3539 = vst [vmem:[%s362 + $0xb8] sm:$0xff] %v3475
        %3540 = vst [vmem:[%s362 + $0xc0] sm:$0xff] %v3476
        %3541 = vst [vmem:[%s362 + $0xc8] sm:$0xff] %v3477
        %3542 = vst [vmem:[%s362 + $0xd0] sm:$0xff] %v3478
        %3543 = vst [vmem:[%s362 + $0xd8] sm:$0xff] %v3479
        %3544 = vst [vmem:[%s362 + $0xe0] sm:$0xff] %v3480
        %3545 = vst [vmem:[%s362 + $0xe8] sm:$0xff] %v3481
        %3546 = vst [vmem:[%s362 + $0xf0] sm:$0xff] %v3482
        %3547 = vst [vmem:[%s362 + $0xf8] sm:$0xff] %v3483
        %3548 = vst [vmem:[%s362 + $0x100] sm:$0xff] %v3484
        %3549 = vst [vmem:[%s362 + $0x108] sm:$0xff] %v3485
        %3550 = vst [vmem:[%s362 + $0x110] sm:$0xff] %v3486
        %3551 = vst [vmem:[%s362 + $0x118] sm:$0xff] %v3487
        %3552 = vst [vmem:[%s362 + $0x120] sm:$0xff] %v3488
        %3553 = vst [vmem:[%s362 + $0x128] sm:$0xff] %v3489
        %3554 = vst [vmem:[%s362 + $0x130] sm:$0xff] %v3490
        %3555 = vst [vmem:[%s362 + $0x138] sm:$0xff] %v3491
        %3556 = vst [vmem:[%s362 + $0x140] sm:$0xff] %v3492
        %3557 = vst [vmem:[%s362 + $0x148] sm:$0xff] %v3493
        %3558 = vst [vmem:[%s362 + $0x150] sm:$0xff] %v3494
        %3559 = vst [vmem:[%s362 + $0x158] sm:$0xff] %v3495
        %3560 = vst [vmem:[%s362 + $0x160] sm:$0xff] %v3496
        %3561 = vst [vmem:[%s362 + $0x168] sm:$0xff] %v3497
        %3562 = vst [vmem:[%s362 + $0x170] sm:$0xff] %v3498
        %3563 = vst [vmem:[%s362 + $0x178] sm:$0xff] %v3499
        %3564 = vst [vmem:[%s362 + $0x180] sm:$0xff] %v3500
        %3565 = vst [vmem:[%s362 + $0x188] sm:$0xff] %v3501
        %3566 = vst [vmem:[%s362 + $0x190] sm:$0xff] %v3502
        %3567 = vst [vmem:[%s362 + $0x198] sm:$0xff] %v3503
        %3568 = vst [vmem:[%s362 + $0x1a0] sm:$0xff] %v3504
        %3569 = vst [vmem:[%s362 + $0x1a8] sm:$0xff] %v3505
        %3570 = vst [vmem:[%s362 + $0x1b0] sm:$0xff] %v3506
        %3571 = vst [vmem:[%s362 + $0x1b8] sm:$0xff] %v3507
        %3572 = vst [vmem:[%s362 + $0x1c0] sm:$0xff] %v3508
        %3573 = vst [vmem:[%s362 + $0x1c8] sm:$0xff] %v3509
        %3574 = vst [vmem:[%s362 + $0x1d0] sm:$0xff] %v3510
        %3575 = vst [vmem:[%s362 + $0x1d8] sm:$0xff] %v3511
        %3576 = vst [vmem:[%s362 + $0x1e0] sm:$0xff] %v3512
        %3577 = vst [vmem:[%s362 + $0x1e8] sm:$0xff] %v3513
        %3578 = vst [vmem:[%s362 + $0x1f0] sm:$0xff] %v3514
        %3579 = vst [vmem:[%s362 + $0x1f8] sm:$0xff] %v3515
        %s3580 = sand.u32 %s186, 1
        %s3581 = scalar_lea.sflag [#allocation4], %s3580
        %s3582 = sand.u32 %s186, 1
        %s3583 = smul.addr %s3582, 512
        %s3584 = scalar_lea.vmem [#allocation11], %s3583
        // Predicated region
        $region69: #{tpu_custom_call.1} parent=47 // pred_check
          %p3585 = pneg %p196
        $region70: #{tpu_custom_call.1} parent=47 // pred_check_branch
          %3587 = sbr.rel (%p3585) target = $region72
        $region71: #{tpu_custom_call.1} parent=47 // pred_region
          %s3588 = smul.u32 32, %s26
          %3590 = vsyncadd %s3581, 0
          %s3591 = smul.addr %s3588, 2
          %s3592 = smul.addr %s3591, 8
          %s3593 = scalar_lea.hbm %s7, %s3592
          %s3594 = sshll.u32 %s3584, 4
          %s3595 = int_to_ptr.vmem [resolvable:$true] %s3594
          %s3596 = sshll.u32 %s3593, 4
          %s3597 = int_to_ptr.hbm [resolvable:$true] %s3596
          %3602 = dma.vmem_to_hbm [thread:$0]  %s3595, 8192, %s3597, %s3581, 256, 256, 16
        $region72: #{tpu_custom_call.1} parent=47 // pred_fallthru
          _
      $region48: #{tpu_custom_call.1} parent=5 // pred_fallthru
        _
      %p3603 = scmp.le.s32.totalorder 2, %s21
      // Predicated region
      $region73: #{tpu_custom_call.1} parent=5 // pred_check
        %p3604 = pneg %p3603
      $region74: #{tpu_custom_call.1} parent=5 // pred_check_branch
        %3606 = sbr.rel (%p3604) target = $region76
      $region75: #{tpu_custom_call.1} parent=5 // pred_region
        %s3607 = ssub.s32 %s21, 2
        // Predicated region
        $region77: #{tpu_custom_call.1} parent=75 // pred_check
          %p3608 = pneg %p202
        $region78: #{tpu_custom_call.1} parent=75 // pred_check_branch
          %3610 = sbr.rel (%p3608) target = $region80
        $region79: #{tpu_custom_call.1} parent=75 // pred_region
          %s3611 = sand.u32 %s187, 1
          %s3612 = scalar_lea.sflag [#allocation4], %s3611
          %s3613 = sand.u32 %s187, 1
          %s3614 = smul.addr %s3613, 512
          %s3615 = scalar_lea.vmem [#allocation11], %s3614
          %3617 = dma.done %s3612, 8192
        $region80: #{tpu_custom_call.1} parent=75 // pred_fallthru
          _
      $region76: #{tpu_custom_call.1} parent=5 // pred_fallthru
        _
    $region6: #{tpu_custom_call.1} parent=1 // loop_footer
      %s25 = sadd.s32 1, %s21
    $region7: #{tpu_custom_call.1} parent=1 // loop_footer_branch
      %20 = sbr.rel target = $region3
    $region8: #{tpu_custom_call.1} parent=1 // loop_exit
      _
    %3618 = vsyncpa [#allocation3], 1
    %s3619 = scalar_lea.sflag [#allocation3], 1
    %3620 = vsyncpa %s3619, 1
    %3621 = vsyncpa [#allocation6], 1
    %3622 = vsyncpa [#allocation9], 1
    %3623 = vsyncpa [#allocation4], 1
    %s3624 = scalar_lea.sflag [#allocation4], 1
    %3625 = vsyncpa %s3624, 1

</llo_original>
